<compile_context>
chip_gen: v7x
topology: tpu7x:2x2x1
jax: 0.10.0
libtpu: 0.0.40
codegen_flags: <defaults>
</compile_context>

<pallas_src>
import jax
import jax.numpy as jnp
import numpy as np
from jax import lax
from jax.experimental import pallas as pl
from jax.experimental.pallas import tpu as pltpu

EPS = 1e-5


def _round_up(x, m):
    return -(-x // m) * m


def _vmem_capacity_bytes():
    try:
        info = pltpu.get_tpu_info()
        cap = getattr(info, "vmem_capacity_bytes", None)
        if cap:
            return int(cap)
    except Exception:
        pass
    return 64 << 20  # conservative fallback (v7x per-core VMEM)


def _vmem_limit_bytes(B, CP, Lg, Lout):
    act = B * CP * Lg * 2                                   # one bf16 activation block
    need = 2 * 2 * act                                      # in + out, double-buffered
    need += 2 * (9 * CP * CP * 2 + 4 * CP * 4 + Lg * 4)     # weights/bias/scale/mask
    need += B * (6 * CP * Lout * 4 + 2 * CP * Lg * 4)       # in-kernel temporaries
    cap = _vmem_capacity_bytes()
    limit = max(int(need * 1.25) + (4 << 20), 32 << 20)
    return int(min(limit, max(cap - (16 << 20), 32 << 20)))


def _pick_sample_block(N, per_sample_bytes, target=2 << 20, cap=8 << 20):
    """Block several samples per grid step when tiles are tiny, but keep at
    least 2 grid steps (pipelining + megacore split on v7x)."""
    best = 1
    for cand in range(1, N + 1):
        if N % cand:
            continue
        if cand > 1 and (cand * per_sample_bytes > cap or N // cand < 2):
            break
        best = cand
        if cand * per_sample_bytes >= target:
            break
    return best


def _make_conv_kernel(H, W, CP, B, G, Lout, with_bn_prelu):
    """One grid step = B samples.  Per sample: (optional fused BN1-affine +
    PReLU) -> 3x3 conv as 9 per-tap MXU matmuls over lane-offset slices ->
    bias -> halo zeroing -> per-channel sum / centered-M2 partials."""
    Wp = W + 2
    cnt = float(H * W)
    deltas = [(kh - 1) * Wp + (kw - 1) for kh in range(3) for kw in range(3)]

    def conv_bias_stats(z, w_ref, b_ref, valid, b, y_ref, s_ref, m2_ref):
        acc = None
        for t, d in enumerate(deltas):
            tap = z[:, G + d:G + d + Lout]          # static lane-offset view (bf16)
            part = jnp.dot(w_ref[t], tap, preferred_element_type=jnp.float32)
            acc = part if acc is None else acc + part
        y = jnp.where(valid, acc + b_ref[...], 0.0)         # bias + zero halo (f32)
        s = jnp.sum(y, axis=1, keepdims=True)               # (CP, 1)
        mean = s * (1.0 / cnt)
        cen = jnp.where(valid, y - mean, 0.0)
        m2 = jnp.sum(cen * cen, axis=1, keepdims=True)      # centered 2nd moment
        y_ref[b, :, :G] = jnp.zeros((CP, G), y_ref.dtype)   # zero guard bands
        y_ref[b, :, G + Lout:] = jnp.zeros((CP, G), y_ref.dtype)
        y_ref[b, :, G:G + Lout] = y.astype(y_ref.dtype)     # bf16 activation out
        s_ref[b] = s
        m2_ref[b] = m2

    if with_bn_prelu:
        def kernel(x_ref, sc_ref, sh_ref, a_ref, w_ref, b_ref, m_ref,
                   y_ref, s_ref, m2_ref):
            maskg = m_ref[...] != 0.0                       # (1, Lg)
            valid = maskg[:, G:G + Lout]                    # lane-aligned slice
            alpha = a_ref[0]
            for b in range(B):
                z = x_ref[b].astype(jnp.float32) * sc_ref[...] + sh_ref[...]
                z = jnp.where(z >= 0.0, z, alpha * z)       # PReLU (shared a)
                z = jnp.where(maskg, z, 0.0)                # zero conv-input halo
                conv_bias_stats(z.astype(jnp.bfloat16), w_ref, b_ref, valid,
                                b, y_ref, s_ref, m2_ref)
    else:
        def kernel(x_ref, w_ref, b_ref, m_ref, y_ref, s_ref, m2_ref):
            maskg = m_ref[...] != 0.0
            valid = maskg[:, G:G + Lout]
            for b in range(B):
                conv_bias_stats(x_ref[b], w_ref, b_ref, valid,
                                b, y_ref, s_ref, m2_ref)
    return kernel


def _make_residual_kernel(H, W, C, CP, B, G):
    """out = x + (y2 * scale2 + shift2), written directly in cropped NCHW."""
    Wp = W + 2

    def kernel(y_ref, sc_ref, sh_ref, x_ref, o_ref):
        for b in range(B):
            for h in range(H):
                off = G + (h + 1) * Wp + 1
                row = y_ref[b, :, off:off + W].astype(jnp.float32)
                row = row * sc_ref[...] + sh_ref[...]       # fused BN2 affine (f32)
                o_ref[b, :, h, :] = x_ref[b, :, h, :] + row[:C, :]
    return kernel


def residual_block_forward(x, params):
    """x: (N, C, H, W) float32 (PyTorch NCHW layout). Returns (N, C, H, W)."""
    N, C, H, W = x.shape
    Hp, Wp = H + 2, W + 2
    Limg = Hp * Wp
    CP = max(16, _round_up(C, 16))          # channel pad -> aligned sublanes
    pc = CP - C
    G = _round_up(Wp + 1, 128)              # zero guard band (>= one stencil row)
    Lout = _round_up(Limg, 128)             # lane-dense conv-output span
    Lg = Lout + 2 * G                       # stored flattened-spatial width
    cnt = H * W

    # ---- layout plumbing (plain XLA, once per call) --------------------------
    xp = jnp.pad(x, ((0, 0), (0, pc), (1, 1), (1, 1))).reshape(N, CP, Limg)
    xpf = jnp.pad(xp, ((0, 0), (0, 0), (G, Lg - G - Limg))).astype(jnp.bfloat16)
    m2d = jnp.zeros((Hp, Wp), jnp.float32).at[1:H + 1, 1:W + 1].set(1.0)
    maskg = jnp.pad(m2d.reshape(Limg), (G, Lg - G - Limg)).reshape(1, Lg)

    def prep_w(w):                          # OIHW -> (9, CP, CP) bf16, t = kh*3+kw
        w9 = jnp.transpose(w, (2, 3, 0, 1)).reshape(9, C, C)
        return jnp.pad(w9, ((0, 0), (0, pc), (0, pc))).astype(jnp.bfloat16)

    def padc(v):                            # per-channel vector -> (CP, 1) f32
        return jnp.pad(v, (0, pc)).reshape(CP, 1).astype(jnp.float32)

    w1t, w2t = prep_w(params["w1"]), prep_w(params["w2"])
    b1c, b2c = padc(params["b1"]), padc(params["b2"])
    g1c, be1c = padc(params["g1"]), padc(params["be1"])
    g2c, be2c = padc(params["g2"]), padc(params["be2"])
    alpha = params["a"].reshape(1).astype(jnp.float32)

    # ---- grid / specs ---------------------------------------------------------
    B = _pick_sample_block(N, CP * Lg * 2)
    grid = (N // B,)

    blk_act = pl.BlockSpec((B, CP, Lg), lambda n: (n, 0, 0))
    blk_stat = pl.BlockSpec((B, CP, 1), lambda n: (n, 0, 0))
    blk_w = pl.BlockSpec((9, CP, CP), lambda n: (0, 0, 0))
    blk_c1 = pl.BlockSpec((CP, 1), lambda n: (0, 0))
    blk_m = pl.BlockSpec((1, Lg), lambda n: (0, 0))
    blk_x = pl.BlockSpec((B, C, H, W), lambda n: (n, 0, 0, 0))
    smem = pl.BlockSpec(memory_space=pltpu.MemorySpace.SMEM)

    cparams = pltpu.CompilerParams(
        dimension_semantics=("parallel",),
        vmem_limit_bytes=_vmem_limit_bytes(B, CP, Lg, Lout))

    conv_out_shape = (jax.ShapeDtypeStruct((N, CP, Lg), jnp.bfloat16),
                      jax.ShapeDtypeStruct((N, CP, 1), jnp.float32),
                      jax.ShapeDtypeStruct((N, CP, 1), jnp.float32))
    conv_cost = pl.CostEstimate(
        flops=2 * N * 9 * CP * CP * Lout + 10 * N * CP * Lout,
        transcendentals=0,
        bytes_accessed=2 * N * CP * Lg * 2 + 9 * CP * CP * 2 + 4 * N * CP * 4)

    def bn_scale_shift(s, m2, gamma, beta):
        # Chan-style combine of per-sample (equal-count) centered partials.
        mean_b = s / cnt                                    # (N, CP, 1)
        mean = jnp.mean(mean_b, axis=0)                     # (CP, 1)
        m2_tot = jnp.sum(m2, axis=0) + cnt * jnp.sum(
            jnp.square(mean_b - mean), axis=0)
        var = jnp.maximum(m2_tot / (N * cnt), 0.0)          # biased (training BN)
        scale = gamma * lax.rsqrt(var + EPS)
        return scale, beta - mean * scale

    # ---- stage 1: conv1 + per-sample channel stats ----------------------------
    k1 = _make_conv_kernel(H, W, CP, B, G, Lout, with_bn_prelu=False)
    y1, s1, m21 = pl.pallas_call(
        k1, grid=grid,
        in_specs=[blk_act, blk_w, blk_c1, blk_m],
        out_specs=[blk_act, blk_stat, blk_stat],
        out_shape=conv_out_shape,
        compiler_params=cparams,
        cost_estimate=conv_cost,
    )(xpf, w1t, b1c, maskg)

    scale1, shift1 = bn_scale_shift(s1, m21, g1c, be1c)

    # ---- stage 2: BN1 affine + PReLU + conv2 + stats --------------------------
    k2 = _make_conv_kernel(H, W, CP, B, G, Lout, with_bn_prelu=True)
    y2, s2, m22 = pl.pallas_call(
        k2, grid=grid,
        in_specs=[blk_act, blk_c1, blk_c1, smem, blk_w, blk_c1, blk_m],
        out_specs=[blk_act, blk_stat, blk_stat],
        out_shape=conv_out_shape,
        compiler_params=cparams,
        cost_estimate=conv_cost,
    )(y1, scale1, shift1, alpha, w2t, b2c, maskg)

    scale2, shift2 = bn_scale_shift(s2, m22, g2c, be2c)

    # ---- stage 3: BN2 affine + residual add, cropped NCHW output --------------
    k3 = _make_residual_kernel(H, W, C, CP, B, G)
    out = pl.pallas_call(
        k3, grid=grid,
        in_specs=[blk_act, blk_c1, blk_c1, blk_x],
        out_specs=blk_x,
        out_shape=jax.ShapeDtypeStruct((N, C, H, W), jnp.float32),
        compiler_params=cparams,
    )(y2, scale2, shift2, x)

    return out


# ---------------------------- reference & params ------------------------------
def ref_forward(x, p):
    """Pure-JAX f32 reference matching the PyTorch module in training mode."""
    def conv(x, w, b):
        y = lax.conv_general_dilated(
            x, w, window_strides=(1, 1), padding=((1, 1), (1, 1)),
            dimension_numbers=("NCHW", "OIHW", "NCHW"),
            precision=lax.Precision.HIGHEST)
        return y + b.reshape(1, -1, 1, 1)

    def bn(y, g, be):
        m = jnp.mean(y, axis=(0, 2, 3), keepdims=True)
        v = jnp.mean(jnp.square(y - m), axis=(0, 2, 3), keepdims=True)
        return (y - m) * lax.rsqrt(v + EPS) * g.reshape(1, -1, 1, 1) \
            + be.reshape(1, -1, 1, 1)

    y = bn(conv(x, p["w1"], p["b1"]), p["g1"], p["be1"])
    y = jnp.where(y >= 0.0, y, p["a"][0] * y)
    y = bn(conv(y, p["w2"], p["b2"]), p["g2"], p["be2"])
    return x + y


def init_params(key, channels):
    C = channels
    k1, k2, k3, k4 = jax.random.split(key, 4)
    return {
        # conv weights in PyTorch OIHW layout
        "w1": 0.1 * jax.random.normal(k1, (C, C, 3, 3), jnp.float32),
        "b1": 0.05 * jax.random.normal(k2, (C,), jnp.float32),
        "w2": 0.1 * jax.random.normal(k3, (C, C, 3, 3), jnp.float32),
        "b2": 0.05 * jax.random.normal(k4, (C,), jnp.float32),
        # BatchNorm affine params (PyTorch defaults)
        "g1": jnp.ones((C,), jnp.float32), "be1": jnp.zeros((C,), jnp.float32),
        "g2": jnp.ones((C,), jnp.float32), "be2": jnp.zeros((C,), jnp.float32),
        # PReLU default init (single shared parameter)
        "a": jnp.full((1,), 0.25, jnp.float32),
    }


if __name__ == "__main__":
    key = jax.random.PRNGKey(0)
    kx, kp = jax.random.split(key)

    N, C, H, W = 2, 4, 16, 16
    x = jax.random.normal(kx, (N, C, H, W), jnp.float32)   # PyTorch NCHW layout
    params = init_params(kp, C)

    fwd = jax.jit(residual_block_forward)
    out = jax.block_until_ready(fwd(x, params))

    ref = jax.block_until_ready(ref_forward(x, params))
    np.testing.assert_allclose(np.asarray(out), np.asarray(ref),
                               rtol=2e-2, atol=2e-2)

    print("KERNEL_OK")
</pallas_src>

<mosaic_0001>
module attributes {stable_mosaic.version = 11 : i64} {
  func.func @kernel(%arg0: i32, %arg1: memref<1x16x640xbf16, #tpu.memory_space<vmem>>, %arg2: memref<16x1xf32, #tpu.memory_space<vmem>>, %arg3: memref<16x1xf32, #tpu.memory_space<vmem>>, %arg4: memref<1xf32, #tpu.memory_space<smem>>, %arg5: memref<9x16x16xbf16, #tpu.memory_space<vmem>>, %arg6: memref<16x1xf32, #tpu.memory_space<vmem>>, %arg7: memref<1x640xf32, #tpu.memory_space<vmem>>, %arg8: memref<1x16x640xbf16, #tpu.memory_space<vmem>>, %arg9: memref<1x16x1xf32, #tpu.memory_space<vmem>>, %arg10: memref<1x16x1xf32, #tpu.memory_space<vmem>>) attributes {dimension_semantics = [#tpu.dimension_semantics<parallel>], iteration_bounds = array<i64: 2>, scalar_prefetch = 0 : i64, scratch_operands = 0 : i64, tpu.core_type = #tpu.core_type<tc>, window_params = [{transform_indices = @transform_0, window_bounds = array<i64: 1, 16, 640>}, {pipeline_mode = #tpu.pipeline_mode<synchronous>, transform_indices = @transform_1, window_bounds = array<i64: 16, 1>}, {pipeline_mode = #tpu.pipeline_mode<synchronous>, transform_indices = @transform_2, window_bounds = array<i64: 16, 1>}, {transform_indices = @transform_3, window_bounds = array<i64: 1>}, {pipeline_mode = #tpu.pipeline_mode<synchronous>, transform_indices = @transform_4, window_bounds = array<i64: 9, 16, 16>}, {pipeline_mode = #tpu.pipeline_mode<synchronous>, transform_indices = @transform_5, window_bounds = array<i64: 16, 1>}, {pipeline_mode = #tpu.pipeline_mode<synchronous>, transform_indices = @transform_6, window_bounds = array<i64: 1, 640>}, {transform_indices = @transform_7, window_bounds = array<i64: 1, 16, 640>}, {transform_indices = @transform_8, window_bounds = array<i64: 1, 16, 1>}, {transform_indices = @transform_9, window_bounds = array<i64: 1, 16, 1>}]} {
    %c0 = arith.constant 0 : index
    %c0_0 = arith.constant 0 : index
    %0 = vector.load %arg7[%c0, %c0_0] : memref<1x640xf32, #tpu.memory_space<vmem>>, vector<1x640xf32>
    %cst = arith.constant 0.000000e+00 : f32
    %1 = vector.broadcast %cst : f32 to vector<1x640xf32>
    %2 = arith.cmpf one, %0, %1 : vector<1x640xf32>
    %3 = vector.extract_strided_slice %2 {offsets = [0, 128], sizes = [1, 384], strides = [1, 1]} : vector<1x640xi1> to vector<1x384xi1>
    %c0_1 = arith.constant 0 : index
    %4 = memref.load %arg4[%c0_1] : memref<1xf32, #tpu.memory_space<smem>>
    %c0_2 = arith.constant 0 : index
    %c0_3 = arith.constant 0 : index
    %c0_4 = arith.constant 0 : index
    %5 = vector.load %arg1[%c0_2, %c0_3, %c0_4] : memref<1x16x640xbf16, #tpu.memory_space<vmem>>, vector<1x16x640xbf16>
    %6 = vector.shape_cast %5 : vector<1x16x640xbf16> to vector<16x640xbf16>
    %7 = arith.extf %6 : vector<16x640xbf16> to vector<16x640xf32>
    %c0_5 = arith.constant 0 : index
    %c0_6 = arith.constant 0 : index
    %8 = vector.load %arg2[%c0_5, %c0_6] : memref<16x1xf32, #tpu.memory_space<vmem>>, vector<16x1xf32>
    %9 = vector.broadcast %8 : vector<16x1xf32> to vector<16x640xf32>
    %10 = arith.mulf %7, %9 : vector<16x640xf32>
    %c0_7 = arith.constant 0 : index
    %c0_8 = arith.constant 0 : index
    %11 = vector.load %arg3[%c0_7, %c0_8] : memref<16x1xf32, #tpu.memory_space<vmem>>, vector<16x1xf32>
    %12 = vector.broadcast %11 : vector<16x1xf32> to vector<16x640xf32>
    %13 = arith.addf %10, %12 : vector<16x640xf32>
    %cst_9 = arith.constant 0.000000e+00 : f32
    %14 = vector.broadcast %cst_9 : f32 to vector<16x640xf32>
    %15 = arith.cmpf oge, %13, %14 : vector<16x640xf32>
    %16 = vector.broadcast %4 : f32 to vector<16x640xf32>
    %17 = arith.mulf %16, %13 : vector<16x640xf32>
    %18 = arith.select %15, %13, %17 : vector<16x640xi1>, vector<16x640xf32>
    %cst_10 = arith.constant 0.000000e+00 : f32
    %19 = vector.shape_cast %2 : vector<1x640xi1> to vector<1x640xi1>
    %20 = vector.broadcast %19 : vector<1x640xi1> to vector<16x640xi1>
    %21 = vector.broadcast %cst_10 : f32 to vector<16x640xf32>
    %22 = arith.select %20, %18, %21 : vector<16x640xi1>, vector<16x640xf32>
    %23 = arith.truncf %22 : vector<16x640xf32> to vector<16x640xbf16>
    %24 = vector.extract_strided_slice %23 {offsets = [0, 109], sizes = [16, 384], strides = [1, 1]} : vector<16x640xbf16> to vector<16x384xbf16>
    %c0_11 = arith.constant 0 : index
    %c0_12 = arith.constant 0 : index
    %c0_13 = arith.constant 0 : index
    %25 = vector.load %arg5[%c0_11, %c0_12, %c0_13] : memref<9x16x16xbf16, #tpu.memory_space<vmem>>, vector<1x16x16xbf16>
    %26 = vector.shape_cast %25 : vector<1x16x16xbf16> to vector<16x16xbf16>
    %cst_14 = arith.constant dense<0.000000e+00> : vector<16x384xf32>
    %27 = tpu.matmul %26, %24, %cst_14 {dimension_numbers = #tpu.dot_dimension_numbers<[1], [0], [0], [1], [0, 0, 1, 1], [], []>} : vector<16x16xbf16>, vector<16x384xbf16>, vector<16x384xf32> -> vector<16x384xf32>
    %28 = vector.extract_strided_slice %23 {offsets = [0, 110], sizes = [16, 384], strides = [1, 1]} : vector<16x640xbf16> to vector<16x384xbf16>
    %c1 = arith.constant 1 : index
    %c0_15 = arith.constant 0 : index
    %c0_16 = arith.constant 0 : index
    %29 = vector.load %arg5[%c1, %c0_15, %c0_16] : memref<9x16x16xbf16, #tpu.memory_space<vmem>>, vector<1x16x16xbf16>
    %30 = vector.shape_cast %29 : vector<1x16x16xbf16> to vector<16x16xbf16>
    %cst_17 = arith.constant dense<0.000000e+00> : vector<16x384xf32>
    %31 = tpu.matmul %30, %28, %cst_17 {dimension_numbers = #tpu.dot_dimension_numbers<[1], [0], [0], [1], [0, 0, 1, 1], [], []>} : vector<16x16xbf16>, vector<16x384xbf16>, vector<16x384xf32> -> vector<16x384xf32>
    %32 = arith.addf %27, %31 : vector<16x384xf32>
    %33 = vector.extract_strided_slice %23 {offsets = [0, 111], sizes = [16, 384], strides = [1, 1]} : vector<16x640xbf16> to vector<16x384xbf16>
    %c2 = arith.constant 2 : index
    %c0_18 = arith.constant 0 : index
    %c0_19 = arith.constant 0 : index
    %34 = vector.load %arg5[%c2, %c0_18, %c0_19] : memref<9x16x16xbf16, #tpu.memory_space<vmem>>, vector<1x16x16xbf16>
    %35 = vector.shape_cast %34 : vector<1x16x16xbf16> to vector<16x16xbf16>
    %cst_20 = arith.constant dense<0.000000e+00> : vector<16x384xf32>
    %36 = tpu.matmul %35, %33, %cst_20 {dimension_numbers = #tpu.dot_dimension_numbers<[1], [0], [0], [1], [0, 0, 1, 1], [], []>} : vector<16x16xbf16>, vector<16x384xbf16>, vector<16x384xf32> -> vector<16x384xf32>
    %37 = arith.addf %32, %36 : vector<16x384xf32>
    %38 = vector.extract_strided_slice %23 {offsets = [0, 127], sizes = [16, 384], strides = [1, 1]} : vector<16x640xbf16> to vector<16x384xbf16>
    %c3 = arith.constant 3 : index
    %c0_21 = arith.constant 0 : index
    %c0_22 = arith.constant 0 : index
    %39 = vector.load %arg5[%c3, %c0_21, %c0_22] : memref<9x16x16xbf16, #tpu.memory_space<vmem>>, vector<1x16x16xbf16>
    %40 = vector.shape_cast %39 : vector<1x16x16xbf16> to vector<16x16xbf16>
    %cst_23 = arith.constant dense<0.000000e+00> : vector<16x384xf32>
    %41 = tpu.matmul %40, %38, %cst_23 {dimension_numbers = #tpu.dot_dimension_numbers<[1], [0], [0], [1], [0, 0, 1, 1], [], []>} : vector<16x16xbf16>, vector<16x384xbf16>, vector<16x384xf32> -> vector<16x384xf32>
    %42 = arith.addf %37, %41 : vector<16x384xf32>
    %43 = vector.extract_strided_slice %23 {offsets = [0, 128], sizes = [16, 384], strides = [1, 1]} : vector<16x640xbf16> to vector<16x384xbf16>
    %c4 = arith.constant 4 : index
    %c0_24 = arith.constant 0 : index
    %c0_25 = arith.constant 0 : index
    %44 = vector.load %arg5[%c4, %c0_24, %c0_25] : memref<9x16x16xbf16, #tpu.memory_space<vmem>>, vector<1x16x16xbf16>
    %45 = vector.shape_cast %44 : vector<1x16x16xbf16> to vector<16x16xbf16>
    %cst_26 = arith.constant dense<0.000000e+00> : vector<16x384xf32>
    %46 = tpu.matmul %45, %43, %cst_26 {dimension_numbers = #tpu.dot_dimension_numbers<[1], [0], [0], [1], [0, 0, 1, 1], [], []>} : vector<16x16xbf16>, vector<16x384xbf16>, vector<16x384xf32> -> vector<16x384xf32>
    %47 = arith.addf %42, %46 : vector<16x384xf32>
    %48 = vector.extract_strided_slice %23 {offsets = [0, 129], sizes = [16, 384], strides = [1, 1]} : vector<16x640xbf16> to vector<16x384xbf16>
    %c5 = arith.constant 5 : index
    %c0_27 = arith.constant 0 : index
    %c0_28 = arith.constant 0 : index
    %49 = vector.load %arg5[%c5, %c0_27, %c0_28] : memref<9x16x16xbf16, #tpu.memory_space<vmem>>, vector<1x16x16xbf16>
    %50 = vector.shape_cast %49 : vector<1x16x16xbf16> to vector<16x16xbf16>
    %cst_29 = arith.constant dense<0.000000e+00> : vector<16x384xf32>
    %51 = tpu.matmul %50, %48, %cst_29 {dimension_numbers = #tpu.dot_dimension_numbers<[1], [0], [0], [1], [0, 0, 1, 1], [], []>} : vector<16x16xbf16>, vector<16x384xbf16>, vector<16x384xf32> -> vector<16x384xf32>
    %52 = arith.addf %47, %51 : vector<16x384xf32>
    %53 = vector.extract_strided_slice %23 {offsets = [0, 145], sizes = [16, 384], strides = [1, 1]} : vector<16x640xbf16> to vector<16x384xbf16>
    %c6 = arith.constant 6 : index
    %c0_30 = arith.constant 0 : index
    %c0_31 = arith.constant 0 : index
    %54 = vector.load %arg5[%c6, %c0_30, %c0_31] : memref<9x16x16xbf16, #tpu.memory_space<vmem>>, vector<1x16x16xbf16>
    %55 = vector.shape_cast %54 : vector<1x16x16xbf16> to vector<16x16xbf16>
    %cst_32 = arith.constant dense<0.000000e+00> : vector<16x384xf32>
    %56 = tpu.matmul %55, %53, %cst_32 {dimension_numbers = #tpu.dot_dimension_numbers<[1], [0], [0], [1], [0, 0, 1, 1], [], []>} : vector<16x16xbf16>, vector<16x384xbf16>, vector<16x384xf32> -> vector<16x384xf32>
    %57 = arith.addf %52, %56 : vector<16x384xf32>
    %58 = vector.extract_strided_slice %23 {offsets = [0, 146], sizes = [16, 384], strides = [1, 1]} : vector<16x640xbf16> to vector<16x384xbf16>
    %c7 = arith.constant 7 : index
    %c0_33 = arith.constant 0 : index
    %c0_34 = arith.constant 0 : index
    %59 = vector.load %arg5[%c7, %c0_33, %c0_34] : memref<9x16x16xbf16, #tpu.memory_space<vmem>>, vector<1x16x16xbf16>
    %60 = vector.shape_cast %59 : vector<1x16x16xbf16> to vector<16x16xbf16>
    %cst_35 = arith.constant dense<0.000000e+00> : vector<16x384xf32>
    %61 = tpu.matmul %60, %58, %cst_35 {dimension_numbers = #tpu.dot_dimension_numbers<[1], [0], [0], [1], [0, 0, 1, 1], [], []>} : vector<16x16xbf16>, vector<16x384xbf16>, vector<16x384xf32> -> vector<16x384xf32>
    %62 = arith.addf %57, %61 : vector<16x384xf32>
    %63 = vector.extract_strided_slice %23 {offsets = [0, 147], sizes = [16, 384], strides = [1, 1]} : vector<16x640xbf16> to vector<16x384xbf16>
    %c8 = arith.constant 8 : index
    %c0_36 = arith.constant 0 : index
    %c0_37 = arith.constant 0 : index
    %64 = vector.load %arg5[%c8, %c0_36, %c0_37] : memref<9x16x16xbf16, #tpu.memory_space<vmem>>, vector<1x16x16xbf16>
    %65 = vector.shape_cast %64 : vector<1x16x16xbf16> to vector<16x16xbf16>
    %cst_38 = arith.constant dense<0.000000e+00> : vector<16x384xf32>
    %66 = tpu.matmul %65, %63, %cst_38 {dimension_numbers = #tpu.dot_dimension_numbers<[1], [0], [0], [1], [0, 0, 1, 1], [], []>} : vector<16x16xbf16>, vector<16x384xbf16>, vector<16x384xf32> -> vector<16x384xf32>
    %67 = arith.addf %62, %66 : vector<16x384xf32>
    %c0_39 = arith.constant 0 : index
    %c0_40 = arith.constant 0 : index
    %68 = vector.load %arg6[%c0_39, %c0_40] : memref<16x1xf32, #tpu.memory_space<vmem>>, vector<16x1xf32>
    %69 = vector.broadcast %68 : vector<16x1xf32> to vector<16x384xf32>
    %70 = arith.addf %67, %69 : vector<16x384xf32>
    %cst_41 = arith.constant 0.000000e+00 : f32
    %71 = vector.shape_cast %3 : vector<1x384xi1> to vector<1x384xi1>
    %72 = vector.broadcast %71 : vector<1x384xi1> to vector<16x384xi1>
    %73 = vector.broadcast %cst_41 : f32 to vector<16x384xf32>
    %74 = arith.select %72, %70, %73 : vector<16x384xi1>, vector<16x384xf32>
    %cst_42 = arith.constant dense<0.000000e+00> : vector<16xf32>
    %75 = vector.multi_reduction <add>, %74, %cst_42 [1] : vector<16x384xf32> to vector<16xf32>
    %76 = vector.shape_cast %75 : vector<16xf32> to vector<16x1xf32>
    %cst_43 = arith.constant 3.906250e-03 : f32
    %77 = vector.broadcast %cst_43 : f32 to vector<16x1xf32>
    %78 = arith.mulf %76, %77 : vector<16x1xf32>
    %79 = vector.broadcast %78 : vector<16x1xf32> to vector<16x384xf32>
    %80 = arith.subf %74, %79 : vector<16x384xf32>
    %cst_44 = arith.constant 0.000000e+00 : f32
    %81 = vector.shape_cast %3 : vector<1x384xi1> to vector<1x384xi1>
    %82 = vector.broadcast %81 : vector<1x384xi1> to vector<16x384xi1>
    %83 = vector.broadcast %cst_44 : f32 to vector<16x384xf32>
    %84 = arith.select %82, %80, %83 : vector<16x384xi1>, vector<16x384xf32>
    %85 = arith.mulf %84, %84 : vector<16x384xf32>
    %cst_45 = arith.constant dense<0.000000e+00> : vector<16xf32>
    %86 = vector.multi_reduction <add>, %85, %cst_45 [1] : vector<16x384xf32> to vector<16xf32>
    %87 = vector.shape_cast %86 : vector<16xf32> to vector<16x1xf32>
    %cst_46 = arith.constant 0.000000e+00 : bf16
    %88 = vector.broadcast %cst_46 : bf16 to vector<16x128xbf16>
    %c0_47 = arith.constant 0 : index
    %c0_48 = arith.constant 0 : index
    %c0_49 = arith.constant 0 : index
    %89 = vector.load %arg8[%c0_47, %c0_48, %c0_49] : memref<1x16x640xbf16, #tpu.memory_space<vmem>>, vector<1x16x128xbf16>
    %90 = vector.shape_cast %89 : vector<1x16x128xbf16> to vector<16x128xbf16>
    %91 = vector.shape_cast %88 : vector<16x128xbf16> to vector<1x16x128xbf16>
    tpu.vector_store %arg8[%c0_47, %c0_48, %c0_49], %91 {strides = array<i32>} : memref<1x16x640xbf16, #tpu.memory_space<vmem>>, vector<1x16x128xbf16>,
    %cst_50 = arith.constant 0.000000e+00 : bf16
    %92 = vector.broadcast %cst_50 : bf16 to vector<16x128xbf16>
    %c0_51 = arith.constant 0 : index
    %c0_52 = arith.constant 0 : index
    %c512 = arith.constant 512 : index
    %93 = vector.load %arg8[%c0_51, %c0_52, %c512] : memref<1x16x640xbf16, #tpu.memory_space<vmem>>, vector<1x16x128xbf16>
    %94 = vector.shape_cast %93 : vector<1x16x128xbf16> to vector<16x128xbf16>
    %95 = vector.shape_cast %92 : vector<16x128xbf16> to vector<1x16x128xbf16>
    tpu.vector_store %arg8[%c0_51, %c0_52, %c512], %95 {strides = array<i32>} : memref<1x16x640xbf16, #tpu.memory_space<vmem>>, vector<1x16x128xbf16>,
    %96 = arith.truncf %74 : vector<16x384xf32> to vector<16x384xbf16>
    %c0_53 = arith.constant 0 : index
    %c0_54 = arith.constant 0 : index
    %c128 = arith.constant 128 : index
    %97 = vector.load %arg8[%c0_53, %c0_54, %c128] : memref<1x16x640xbf16, #tpu.memory_space<vmem>>, vector<1x16x384xbf16>
    %98 = vector.shape_cast %97 : vector<1x16x384xbf16> to vector<16x384xbf16>
    %99 = vector.shape_cast %96 : vector<16x384xbf16> to vector<1x16x384xbf16>
    tpu.vector_store %arg8[%c0_53, %c0_54, %c128], %99 {strides = array<i32>} : memref<1x16x640xbf16, #tpu.memory_space<vmem>>, vector<1x16x384xbf16>,
    %c0_55 = arith.constant 0 : index
    %c0_56 = arith.constant 0 : index
    %c0_57 = arith.constant 0 : index
    %100 = vector.load %arg9[%c0_55, %c0_56, %c0_57] : memref<1x16x1xf32, #tpu.memory_space<vmem>>, vector<1x16x1xf32>
    %101 = vector.shape_cast %100 : vector<1x16x1xf32> to vector<16x1xf32>
    %102 = vector.shape_cast %76 : vector<16x1xf32> to vector<1x16x1xf32>
    tpu.vector_store %arg9[%c0_55, %c0_56, %c0_57], %102 {strides = array<i32>} : memref<1x16x1xf32, #tpu.memory_space<vmem>>, vector<1x16x1xf32>,
    %c0_58 = arith.constant 0 : index
    %c0_59 = arith.constant 0 : index
    %c0_60 = arith.constant 0 : index
    %103 = vector.load %arg10[%c0_58, %c0_59, %c0_60] : memref<1x16x1xf32, #tpu.memory_space<vmem>>, vector<1x16x1xf32>
    %104 = vector.shape_cast %103 : vector<1x16x1xf32> to vector<16x1xf32>
    %105 = vector.shape_cast %87 : vector<16x1xf32> to vector<1x16x1xf32>
    tpu.vector_store %arg10[%c0_58, %c0_59, %c0_60], %105 {strides = array<i32>} : memref<1x16x1xf32, #tpu.memory_space<vmem>>, vector<1x16x1xf32>,
    return
  }
  func.func @transform_0(%arg0: i32) -> (i32, i32, i32) {
    %c0_i32 = arith.constant 0 : i32
    %c0_i32_0 = arith.constant 0 : i32
    %c0_i32_1 = arith.constant 0 : i32
    return %arg0, %c0_i32, %c0_i32_0 : i32, i32, i32
  }
  func.func @transform_1(%arg0: i32) -> (i32, i32) {
    %c0_i32 = arith.constant 0 : i32
    %c0_i32_0 = arith.constant 0 : i32
    %c0_i32_1 = arith.constant 0 : i32
    return %c0_i32, %c0_i32_0 : i32, i32
  }
  func.func @transform_2(%arg0: i32) -> (i32, i32) {
    %c0_i32 = arith.constant 0 : i32
    %c0_i32_0 = arith.constant 0 : i32
    %c0_i32_1 = arith.constant 0 : i32
    return %c0_i32, %c0_i32_0 : i32, i32
  }
  func.func @transform_3(%arg0: i32) -> i32 {
    %c0_i32 = arith.constant 0 : i32
    %c0_i32_0 = arith.constant 0 : i32
    return %c0_i32 : i32
  }
  func.func @transform_4(%arg0: i32) -> (i32, i32, i32) {
    %c0_i32 = arith.constant 0 : i32
    %c0_i32_0 = arith.constant 0 : i32
    %c0_i32_1 = arith.constant 0 : i32
    %c0_i32_2 = arith.constant 0 : i32
    return %c0_i32, %c0_i32_0, %c0_i32_1 : i32, i32, i32
  }
  func.func @transform_5(%arg0: i32) -> (i32, i32) {
    %c0_i32 = arith.constant 0 : i32
    %c0_i32_0 = arith.constant 0 : i32
    %c0_i32_1 = arith.constant 0 : i32
    return %c0_i32, %c0_i32_0 : i32, i32
  }
  func.func @transform_6(%arg0: i32) -> (i32, i32) {
    %c0_i32 = arith.constant 0 : i32
    %c0_i32_0 = arith.constant 0 : i32
    %c0_i32_1 = arith.constant 0 : i32
    return %c0_i32, %c0_i32_0 : i32, i32
  }
  func.func @transform_7(%arg0: i32) -> (i32, i32, i32) {
    %c0_i32 = arith.constant 0 : i32
    %c0_i32_0 = arith.constant 0 : i32
    %c0_i32_1 = arith.constant 0 : i32
    return %arg0, %c0_i32, %c0_i32_0 : i32, i32, i32
  }
  func.func @transform_8(%arg0: i32) -> (i32, i32, i32) {
    %c0_i32 = arith.constant 0 : i32
    %c0_i32_0 = arith.constant 0 : i32
    %c0_i32_1 = arith.constant 0 : i32
    return %arg0, %c0_i32, %c0_i32_0 : i32, i32, i32
  }
  func.func @transform_9(%arg0: i32) -> (i32, i32, i32) {
    %c0_i32 = arith.constant 0 : i32
    %c0_i32_0 = arith.constant 0 : i32
    %c0_i32_1 = arith.constant 0 : i32
    return %arg0, %c0_i32, %c0_i32_0 : i32, i32, i32
  }
}

module attributes {stable_mosaic.version = 11 : i64} {
  func.func @kernel(%arg0: i32, %arg1: memref<1x16x640xbf16, #tpu.memory_space<vmem>>, %arg2: memref<9x16x16xbf16, #tpu.memory_space<vmem>>, %arg3: memref<16x1xf32, #tpu.memory_space<vmem>>, %arg4: memref<1x640xf32, #tpu.memory_space<vmem>>, %arg5: memref<1x16x640xbf16, #tpu.memory_space<vmem>>, %arg6: memref<1x16x1xf32, #tpu.memory_space<vmem>>, %arg7: memref<1x16x1xf32, #tpu.memory_space<vmem>>) attributes {dimension_semantics = [#tpu.dimension_semantics<parallel>], iteration_bounds = array<i64: 2>, scalar_prefetch = 0 : i64, scratch_operands = 0 : i64, tpu.core_type = #tpu.core_type<tc>, window_params = [{transform_indices = @transform_0, window_bounds = array<i64: 1, 16, 640>}, {pipeline_mode = #tpu.pipeline_mode<synchronous>, transform_indices = @transform_1, window_bounds = array<i64: 9, 16, 16>}, {pipeline_mode = #tpu.pipeline_mode<synchronous>, transform_indices = @transform_2, window_bounds = array<i64: 16, 1>}, {pipeline_mode = #tpu.pipeline_mode<synchronous>, transform_indices = @transform_3, window_bounds = array<i64: 1, 640>}, {transform_indices = @transform_4, window_bounds = array<i64: 1, 16, 640>}, {transform_indices = @transform_5, window_bounds = array<i64: 1, 16, 1>}, {transform_indices = @transform_6, window_bounds = array<i64: 1, 16, 1>}]} {
    %c0 = arith.constant 0 : index
    %c0_0 = arith.constant 0 : index
    %0 = vector.load %arg4[%c0, %c0_0] : memref<1x640xf32, #tpu.memory_space<vmem>>, vector<1x640xf32>
    %cst = arith.constant 0.000000e+00 : f32
    %1 = vector.broadcast %cst : f32 to vector<1x640xf32>
    %2 = arith.cmpf one, %0, %1 : vector<1x640xf32>
    %3 = vector.extract_strided_slice %2 {offsets = [0, 128], sizes = [1, 384], strides = [1, 1]} : vector<1x640xi1> to vector<1x384xi1>
    %c0_1 = arith.constant 0 : index
    %c0_2 = arith.constant 0 : index
    %c0_3 = arith.constant 0 : index
    %4 = vector.load %arg1[%c0_1, %c0_2, %c0_3] : memref<1x16x640xbf16, #tpu.memory_space<vmem>>, vector<1x16x640xbf16>
    %5 = vector.shape_cast %4 : vector<1x16x640xbf16> to vector<16x640xbf16>
    %6 = vector.extract_strided_slice %5 {offsets = [0, 109], sizes = [16, 384], strides = [1, 1]} : vector<16x640xbf16> to vector<16x384xbf16>
    %c0_4 = arith.constant 0 : index
    %c0_5 = arith.constant 0 : index
    %c0_6 = arith.constant 0 : index
    %7 = vector.load %arg2[%c0_4, %c0_5, %c0_6] : memref<9x16x16xbf16, #tpu.memory_space<vmem>>, vector<1x16x16xbf16>
    %8 = vector.shape_cast %7 : vector<1x16x16xbf16> to vector<16x16xbf16>
    %cst_7 = arith.constant dense<0.000000e+00> : vector<16x384xf32>
    %9 = tpu.matmul %8, %6, %cst_7 {dimension_numbers = #tpu.dot_dimension_numbers<[1], [0], [0], [1], [0, 0, 1, 1], [], []>} : vector<16x16xbf16>, vector<16x384xbf16>, vector<16x384xf32> -> vector<16x384xf32>
    %10 = vector.extract_strided_slice %5 {offsets = [0, 110], sizes = [16, 384], strides = [1, 1]} : vector<16x640xbf16> to vector<16x384xbf16>
    %c1 = arith.constant 1 : index
    %c0_8 = arith.constant 0 : index
    %c0_9 = arith.constant 0 : index
    %11 = vector.load %arg2[%c1, %c0_8, %c0_9] : memref<9x16x16xbf16, #tpu.memory_space<vmem>>, vector<1x16x16xbf16>
    %12 = vector.shape_cast %11 : vector<1x16x16xbf16> to vector<16x16xbf16>
    %cst_10 = arith.constant dense<0.000000e+00> : vector<16x384xf32>
    %13 = tpu.matmul %12, %10, %cst_10 {dimension_numbers = #tpu.dot_dimension_numbers<[1], [0], [0], [1], [0, 0, 1, 1], [], []>} : vector<16x16xbf16>, vector<16x384xbf16>, vector<16x384xf32> -> vector<16x384xf32>
    %14 = arith.addf %9, %13 : vector<16x384xf32>
    %15 = vector.extract_strided_slice %5 {offsets = [0, 111], sizes = [16, 384], strides = [1, 1]} : vector<16x640xbf16> to vector<16x384xbf16>
    %c2 = arith.constant 2 : index
    %c0_11 = arith.constant 0 : index
    %c0_12 = arith.constant 0 : index
    %16 = vector.load %arg2[%c2, %c0_11, %c0_12] : memref<9x16x16xbf16, #tpu.memory_space<vmem>>, vector<1x16x16xbf16>
    %17 = vector.shape_cast %16 : vector<1x16x16xbf16> to vector<16x16xbf16>
    %cst_13 = arith.constant dense<0.000000e+00> : vector<16x384xf32>
    %18 = tpu.matmul %17, %15, %cst_13 {dimension_numbers = #tpu.dot_dimension_numbers<[1], [0], [0], [1], [0, 0, 1, 1], [], []>} : vector<16x16xbf16>, vector<16x384xbf16>, vector<16x384xf32> -> vector<16x384xf32>
    %19 = arith.addf %14, %18 : vector<16x384xf32>
    %20 = vector.extract_strided_slice %5 {offsets = [0, 127], sizes = [16, 384], strides = [1, 1]} : vector<16x640xbf16> to vector<16x384xbf16>
    %c3 = arith.constant 3 : index
    %c0_14 = arith.constant 0 : index
    %c0_15 = arith.constant 0 : index
    %21 = vector.load %arg2[%c3, %c0_14, %c0_15] : memref<9x16x16xbf16, #tpu.memory_space<vmem>>, vector<1x16x16xbf16>
    %22 = vector.shape_cast %21 : vector<1x16x16xbf16> to vector<16x16xbf16>
    %cst_16 = arith.constant dense<0.000000e+00> : vector<16x384xf32>
    %23 = tpu.matmul %22, %20, %cst_16 {dimension_numbers = #tpu.dot_dimension_numbers<[1], [0], [0], [1], [0, 0, 1, 1], [], []>} : vector<16x16xbf16>, vector<16x384xbf16>, vector<16x384xf32> -> vector<16x384xf32>
    %24 = arith.addf %19, %23 : vector<16x384xf32>
    %25 = vector.extract_strided_slice %5 {offsets = [0, 128], sizes = [16, 384], strides = [1, 1]} : vector<16x640xbf16> to vector<16x384xbf16>
    %c4 = arith.constant 4 : index
    %c0_17 = arith.constant 0 : index
    %c0_18 = arith.constant 0 : index
    %26 = vector.load %arg2[%c4, %c0_17, %c0_18] : memref<9x16x16xbf16, #tpu.memory_space<vmem>>, vector<1x16x16xbf16>
    %27 = vector.shape_cast %26 : vector<1x16x16xbf16> to vector<16x16xbf16>
    %cst_19 = arith.constant dense<0.000000e+00> : vector<16x384xf32>
    %28 = tpu.matmul %27, %25, %cst_19 {dimension_numbers = #tpu.dot_dimension_numbers<[1], [0], [0], [1], [0, 0, 1, 1], [], []>} : vector<16x16xbf16>, vector<16x384xbf16>, vector<16x384xf32> -> vector<16x384xf32>
    %29 = arith.addf %24, %28 : vector<16x384xf32>
    %30 = vector.extract_strided_slice %5 {offsets = [0, 129], sizes = [16, 384], strides = [1, 1]} : vector<16x640xbf16> to vector<16x384xbf16>
    %c5 = arith.constant 5 : index
    %c0_20 = arith.constant 0 : index
    %c0_21 = arith.constant 0 : index
    %31 = vector.load %arg2[%c5, %c0_20, %c0_21] : memref<9x16x16xbf16, #tpu.memory_space<vmem>>, vector<1x16x16xbf16>
    %32 = vector.shape_cast %31 : vector<1x16x16xbf16> to vector<16x16xbf16>
    %cst_22 = arith.constant dense<0.000000e+00> : vector<16x384xf32>
    %33 = tpu.matmul %32, %30, %cst_22 {dimension_numbers = #tpu.dot_dimension_numbers<[1], [0], [0], [1], [0, 0, 1, 1], [], []>} : vector<16x16xbf16>, vector<16x384xbf16>, vector<16x384xf32> -> vector<16x384xf32>
    %34 = arith.addf %29, %33 : vector<16x384xf32>
    %35 = vector.extract_strided_slice %5 {offsets = [0, 145], sizes = [16, 384], strides = [1, 1]} : vector<16x640xbf16> to vector<16x384xbf16>
    %c6 = arith.constant 6 : index
    %c0_23 = arith.constant 0 : index
    %c0_24 = arith.constant 0 : index
    %36 = vector.load %arg2[%c6, %c0_23, %c0_24] : memref<9x16x16xbf16, #tpu.memory_space<vmem>>, vector<1x16x16xbf16>
    %37 = vector.shape_cast %36 : vector<1x16x16xbf16> to vector<16x16xbf16>
    %cst_25 = arith.constant dense<0.000000e+00> : vector<16x384xf32>
    %38 = tpu.matmul %37, %35, %cst_25 {dimension_numbers = #tpu.dot_dimension_numbers<[1], [0], [0], [1], [0, 0, 1, 1], [], []>} : vector<16x16xbf16>, vector<16x384xbf16>, vector<16x384xf32> -> vector<16x384xf32>
    %39 = arith.addf %34, %38 : vector<16x384xf32>
    %40 = vector.extract_strided_slice %5 {offsets = [0, 146], sizes = [16, 384], strides = [1, 1]} : vector<16x640xbf16> to vector<16x384xbf16>
    %c7 = arith.constant 7 : index
    %c0_26 = arith.constant 0 : index
    %c0_27 = arith.constant 0 : index
    %41 = vector.load %arg2[%c7, %c0_26, %c0_27] : memref<9x16x16xbf16, #tpu.memory_space<vmem>>, vector<1x16x16xbf16>
    %42 = vector.shape_cast %41 : vector<1x16x16xbf16> to vector<16x16xbf16>
    %cst_28 = arith.constant dense<0.000000e+00> : vector<16x384xf32>
    %43 = tpu.matmul %42, %40, %cst_28 {dimension_numbers = #tpu.dot_dimension_numbers<[1], [0], [0], [1], [0, 0, 1, 1], [], []>} : vector<16x16xbf16>, vector<16x384xbf16>, vector<16x384xf32> -> vector<16x384xf32>
    %44 = arith.addf %39, %43 : vector<16x384xf32>
    %45 = vector.extract_strided_slice %5 {offsets = [0, 147], sizes = [16, 384], strides = [1, 1]} : vector<16x640xbf16> to vector<16x384xbf16>
    %c8 = arith.constant 8 : index
    %c0_29 = arith.constant 0 : index
    %c0_30 = arith.constant 0 : index
    %46 = vector.load %arg2[%c8, %c0_29, %c0_30] : memref<9x16x16xbf16, #tpu.memory_space<vmem>>, vector<1x16x16xbf16>
    %47 = vector.shape_cast %46 : vector<1x16x16xbf16> to vector<16x16xbf16>
    %cst_31 = arith.constant dense<0.000000e+00> : vector<16x384xf32>
    %48 = tpu.matmul %47, %45, %cst_31 {dimension_numbers = #tpu.dot_dimension_numbers<[1], [0], [0], [1], [0, 0, 1, 1], [], []>} : vector<16x16xbf16>, vector<16x384xbf16>, vector<16x384xf32> -> vector<16x384xf32>
    %49 = arith.addf %44, %48 : vector<16x384xf32>
    %c0_32 = arith.constant 0 : index
    %c0_33 = arith.constant 0 : index
    %50 = vector.load %arg3[%c0_32, %c0_33] : memref<16x1xf32, #tpu.memory_space<vmem>>, vector<16x1xf32>
    %51 = vector.broadcast %50 : vector<16x1xf32> to vector<16x384xf32>
    %52 = arith.addf %49, %51 : vector<16x384xf32>
    %cst_34 = arith.constant 0.000000e+00 : f32
    %53 = vector.shape_cast %3 : vector<1x384xi1> to vector<1x384xi1>
    %54 = vector.broadcast %53 : vector<1x384xi1> to vector<16x384xi1>
    %55 = vector.broadcast %cst_34 : f32 to vector<16x384xf32>
    %56 = arith.select %54, %52, %55 : vector<16x384xi1>, vector<16x384xf32>
    %cst_35 = arith.constant dense<0.000000e+00> : vector<16xf32>
    %57 = vector.multi_reduction <add>, %56, %cst_35 [1] : vector<16x384xf32> to vector<16xf32>
    %58 = vector.shape_cast %57 : vector<16xf32> to vector<16x1xf32>
    %cst_36 = arith.constant 3.906250e-03 : f32
    %59 = vector.broadcast %cst_36 : f32 to vector<16x1xf32>
    %60 = arith.mulf %58, %59 : vector<16x1xf32>
    %61 = vector.broadcast %60 : vector<16x1xf32> to vector<16x384xf32>
    %62 = arith.subf %56, %61 : vector<16x384xf32>
    %cst_37 = arith.constant 0.000000e+00 : f32
    %63 = vector.shape_cast %3 : vector<1x384xi1> to vector<1x384xi1>
    %64 = vector.broadcast %63 : vector<1x384xi1> to vector<16x384xi1>
    %65 = vector.broadcast %cst_37 : f32 to vector<16x384xf32>
    %66 = arith.select %64, %62, %65 : vector<16x384xi1>, vector<16x384xf32>
    %67 = arith.mulf %66, %66 : vector<16x384xf32>
    %cst_38 = arith.constant dense<0.000000e+00> : vector<16xf32>
    %68 = vector.multi_reduction <add>, %67, %cst_38 [1] : vector<16x384xf32> to vector<16xf32>
    %69 = vector.shape_cast %68 : vector<16xf32> to vector<16x1xf32>
    %cst_39 = arith.constant 0.000000e+00 : bf16
    %70 = vector.broadcast %cst_39 : bf16 to vector<16x128xbf16>
    %c0_40 = arith.constant 0 : index
    %c0_41 = arith.constant 0 : index
    %c0_42 = arith.constant 0 : index
    %71 = vector.load %arg5[%c0_40, %c0_41, %c0_42] : memref<1x16x640xbf16, #tpu.memory_space<vmem>>, vector<1x16x128xbf16>
    %72 = vector.shape_cast %71 : vector<1x16x128xbf16> to vector<16x128xbf16>
    %73 = vector.shape_cast %70 : vector<16x128xbf16> to vector<1x16x128xbf16>
    tpu.vector_store %arg5[%c0_40, %c0_41, %c0_42], %73 {strides = array<i32>} : memref<1x16x640xbf16, #tpu.memory_space<vmem>>, vector<1x16x128xbf16>,
    %cst_43 = arith.constant 0.000000e+00 : bf16
    %74 = vector.broadcast %cst_43 : bf16 to vector<16x128xbf16>
    %c0_44 = arith.constant 0 : index
    %c0_45 = arith.constant 0 : index
    %c512 = arith.constant 512 : index
    %75 = vector.load %arg5[%c0_44, %c0_45, %c512] : memref<1x16x640xbf16, #tpu.memory_space<vmem>>, vector<1x16x128xbf16>
    %76 = vector.shape_cast %75 : vector<1x16x128xbf16> to vector<16x128xbf16>
    %77 = vector.shape_cast %74 : vector<16x128xbf16> to vector<1x16x128xbf16>
    tpu.vector_store %arg5[%c0_44, %c0_45, %c512], %77 {strides = array<i32>} : memref<1x16x640xbf16, #tpu.memory_space<vmem>>, vector<1x16x128xbf16>,
    %78 = arith.truncf %56 : vector<16x384xf32> to vector<16x384xbf16>
    %c0_46 = arith.constant 0 : index
    %c0_47 = arith.constant 0 : index
    %c128 = arith.constant 128 : index
    %79 = vector.load %arg5[%c0_46, %c0_47, %c128] : memref<1x16x640xbf16, #tpu.memory_space<vmem>>, vector<1x16x384xbf16>
    %80 = vector.shape_cast %79 : vector<1x16x384xbf16> to vector<16x384xbf16>
    %81 = vector.shape_cast %78 : vector<16x384xbf16> to vector<1x16x384xbf16>
    tpu.vector_store %arg5[%c0_46, %c0_47, %c128], %81 {strides = array<i32>} : memref<1x16x640xbf16, #tpu.memory_space<vmem>>, vector<1x16x384xbf16>,
    %c0_48 = arith.constant 0 : index
    %c0_49 = arith.constant 0 : index
    %c0_50 = arith.constant 0 : index
    %82 = vector.load %arg6[%c0_48, %c0_49, %c0_50] : memref<1x16x1xf32, #tpu.memory_space<vmem>>, vector<1x16x1xf32>
    %83 = vector.shape_cast %82 : vector<1x16x1xf32> to vector<16x1xf32>
    %84 = vector.shape_cast %58 : vector<16x1xf32> to vector<1x16x1xf32>
    tpu.vector_store %arg6[%c0_48, %c0_49, %c0_50], %84 {strides = array<i32>} : memref<1x16x1xf32, #tpu.memory_space<vmem>>, vector<1x16x1xf32>,
    %c0_51 = arith.constant 0 : index
    %c0_52 = arith.constant 0 : index
    %c0_53 = arith.constant 0 : index
    %85 = vector.load %arg7[%c0_51, %c0_52, %c0_53] : memref<1x16x1xf32, #tpu.memory_space<vmem>>, vector<1x16x1xf32>
    %86 = vector.shape_cast %85 : vector<1x16x1xf32> to vector<16x1xf32>
    %87 = vector.shape_cast %69 : vector<16x1xf32> to vector<1x16x1xf32>
    tpu.vector_store %arg7[%c0_51, %c0_52, %c0_53], %87 {strides = array<i32>} : memref<1x16x1xf32, #tpu.memory_space<vmem>>, vector<1x16x1xf32>,
    return
  }
  func.func @transform_0(%arg0: i32) -> (i32, i32, i32) {
    %c0_i32 = arith.constant 0 : i32
    %c0_i32_0 = arith.constant 0 : i32
    %c0_i32_1 = arith.constant 0 : i32
    return %arg0, %c0_i32, %c0_i32_0 : i32, i32, i32
  }
  func.func @transform_1(%arg0: i32) -> (i32, i32, i32) {
    %c0_i32 = arith.constant 0 : i32
    %c0_i32_0 = arith.constant 0 : i32
    %c0_i32_1 = arith.constant 0 : i32
    %c0_i32_2 = arith.constant 0 : i32
    return %c0_i32, %c0_i32_0, %c0_i32_1 : i32, i32, i32
  }
  func.func @transform_2(%arg0: i32) -> (i32, i32) {
    %c0_i32 = arith.constant 0 : i32
    %c0_i32_0 = arith.constant 0 : i32
    %c0_i32_1 = arith.constant 0 : i32
    return %c0_i32, %c0_i32_0 : i32, i32
  }
  func.func @transform_3(%arg0: i32) -> (i32, i32) {
    %c0_i32 = arith.constant 0 : i32
    %c0_i32_0 = arith.constant 0 : i32
    %c0_i32_1 = arith.constant 0 : i32
    return %c0_i32, %c0_i32_0 : i32, i32
  }
  func.func @transform_4(%arg0: i32) -> (i32, i32, i32) {
    %c0_i32 = arith.constant 0 : i32
    %c0_i32_0 = arith.constant 0 : i32
    %c0_i32_1 = arith.constant 0 : i32
    return %arg0, %c0_i32, %c0_i32_0 : i32, i32, i32
  }
  func.func @transform_5(%arg0: i32) -> (i32, i32, i32) {
    %c0_i32 = arith.constant 0 : i32
    %c0_i32_0 = arith.constant 0 : i32
    %c0_i32_1 = arith.constant 0 : i32
    return %arg0, %c0_i32, %c0_i32_0 : i32, i32, i32
  }
  func.func @transform_6(%arg0: i32) -> (i32, i32, i32) {
    %c0_i32 = arith.constant 0 : i32
    %c0_i32_0 = arith.constant 0 : i32
    %c0_i32_1 = arith.constant 0 : i32
    return %arg0, %c0_i32, %c0_i32_0 : i32, i32, i32
  }
}

module attributes {stable_mosaic.version = 11 : i64} {
  func.func @kernel(%arg0: i32, %arg1: memref<1x16x640xbf16, #tpu.memory_space<vmem>>, %arg2: memref<16x1xf32, #tpu.memory_space<vmem>>, %arg3: memref<16x1xf32, #tpu.memory_space<vmem>>, %arg4: memref<1x4x16x16xf32, #tpu.memory_space<vmem>>, %arg5: memref<1x4x16x16xf32, #tpu.memory_space<vmem>>) attributes {dimension_semantics = [#tpu.dimension_semantics<parallel>], iteration_bounds = array<i64: 2>, scalar_prefetch = 0 : i64, scratch_operands = 0 : i64, tpu.core_type = #tpu.core_type<tc>, window_params = [{transform_indices = @transform_0, window_bounds = array<i64: 1, 16, 640>}, {pipeline_mode = #tpu.pipeline_mode<synchronous>, transform_indices = @transform_1, window_bounds = array<i64: 16, 1>}, {pipeline_mode = #tpu.pipeline_mode<synchronous>, transform_indices = @transform_2, window_bounds = array<i64: 16, 1>}, {transform_indices = @transform_3, window_bounds = array<i64: 1, 4, 16, 16>}, {transform_indices = @transform_4, window_bounds = array<i64: 1, 4, 16, 16>}]} {
    %c0 = arith.constant 0 : index
    %c0_0 = arith.constant 0 : index
    %c147 = arith.constant 147 : index
    %0 = vector.load %arg1[%c0, %c0_0, %c147] : memref<1x16x640xbf16, #tpu.memory_space<vmem>>, vector<1x16x16xbf16>
    %1 = vector.shape_cast %0 : vector<1x16x16xbf16> to vector<16x16xbf16>
    %2 = arith.extf %1 : vector<16x16xbf16> to vector<16x16xf32>
    %c0_1 = arith.constant 0 : index
    %c0_2 = arith.constant 0 : index
    %3 = vector.load %arg2[%c0_1, %c0_2] : memref<16x1xf32, #tpu.memory_space<vmem>>, vector<16x1xf32>
    %4 = vector.broadcast %3 : vector<16x1xf32> to vector<16x16xf32>
    %5 = arith.mulf %2, %4 : vector<16x16xf32>
    %c0_3 = arith.constant 0 : index
    %c0_4 = arith.constant 0 : index
    %6 = vector.load %arg3[%c0_3, %c0_4] : memref<16x1xf32, #tpu.memory_space<vmem>>, vector<16x1xf32>
    %7 = vector.broadcast %6 : vector<16x1xf32> to vector<16x16xf32>
    %8 = arith.addf %5, %7 : vector<16x16xf32>
    %c0_5 = arith.constant 0 : index
    %c0_6 = arith.constant 0 : index
    %c0_7 = arith.constant 0 : index
    %c0_8 = arith.constant 0 : index
    %9 = vector.load %arg4[%c0_5, %c0_6, %c0_7, %c0_8] : memref<1x4x16x16xf32, #tpu.memory_space<vmem>>, vector<1x4x1x16xf32>
    %10 = vector.shape_cast %9 : vector<1x4x1x16xf32> to vector<4x16xf32>
    %11 = vector.extract_strided_slice %8 {offsets = [0, 0], sizes = [4, 16], strides = [1, 1]} : vector<16x16xf32> to vector<4x16xf32>
    %12 = arith.addf %10, %11 : vector<4x16xf32>
    %c0_9 = arith.constant 0 : index
    %c0_10 = arith.constant 0 : index
    %c0_11 = arith.constant 0 : index
    %c0_12 = arith.constant 0 : index
    %13 = vector.load %arg5[%c0_9, %c0_10, %c0_11, %c0_12] : memref<1x4x16x16xf32, #tpu.memory_space<vmem>>, vector<1x4x1x16xf32>
    %14 = vector.shape_cast %13 : vector<1x4x1x16xf32> to vector<4x16xf32>
    %15 = vector.shape_cast %12 : vector<4x16xf32> to vector<1x4x1x16xf32>
    tpu.vector_store %arg5[%c0_9, %c0_10, %c0_11, %c0_12], %15 {strides = array<i32>} : memref<1x4x16x16xf32, #tpu.memory_space<vmem>>, vector<1x4x1x16xf32>,
    %c0_13 = arith.constant 0 : index
    %c0_14 = arith.constant 0 : index
    %c165 = arith.constant 165 : index
    %16 = vector.load %arg1[%c0_13, %c0_14, %c165] : memref<1x16x640xbf16, #tpu.memory_space<vmem>>, vector<1x16x16xbf16>
    %17 = vector.shape_cast %16 : vector<1x16x16xbf16> to vector<16x16xbf16>
    %18 = arith.extf %17 : vector<16x16xbf16> to vector<16x16xf32>
    %c0_15 = arith.constant 0 : index
    %c0_16 = arith.constant 0 : index
    %19 = vector.load %arg2[%c0_15, %c0_16] : memref<16x1xf32, #tpu.memory_space<vmem>>, vector<16x1xf32>
    %20 = vector.broadcast %19 : vector<16x1xf32> to vector<16x16xf32>
    %21 = arith.mulf %18, %20 : vector<16x16xf32>
    %c0_17 = arith.constant 0 : index
    %c0_18 = arith.constant 0 : index
    %22 = vector.load %arg3[%c0_17, %c0_18] : memref<16x1xf32, #tpu.memory_space<vmem>>, vector<16x1xf32>
    %23 = vector.broadcast %22 : vector<16x1xf32> to vector<16x16xf32>
    %24 = arith.addf %21, %23 : vector<16x16xf32>
    %c0_19 = arith.constant 0 : index
    %c0_20 = arith.constant 0 : index
    %c1 = arith.constant 1 : index
    %c0_21 = arith.constant 0 : index
    %25 = vector.load %arg4[%c0_19, %c0_20, %c1, %c0_21] : memref<1x4x16x16xf32, #tpu.memory_space<vmem>>, vector<1x4x1x16xf32>
    %26 = vector.shape_cast %25 : vector<1x4x1x16xf32> to vector<4x16xf32>
    %27 = vector.extract_strided_slice %24 {offsets = [0, 0], sizes = [4, 16], strides = [1, 1]} : vector<16x16xf32> to vector<4x16xf32>
    %28 = arith.addf %26, %27 : vector<4x16xf32>
    %c0_22 = arith.constant 0 : index
    %c0_23 = arith.constant 0 : index
    %c1_24 = arith.constant 1 : index
    %c0_25 = arith.constant 0 : index
    %29 = vector.load %arg5[%c0_22, %c0_23, %c1_24, %c0_25] : memref<1x4x16x16xf32, #tpu.memory_space<vmem>>, vector<1x4x1x16xf32>
    %30 = vector.shape_cast %29 : vector<1x4x1x16xf32> to vector<4x16xf32>
    %31 = vector.shape_cast %28 : vector<4x16xf32> to vector<1x4x1x16xf32>
    tpu.vector_store %arg5[%c0_22, %c0_23, %c1_24, %c0_25], %31 {strides = array<i32>} : memref<1x4x16x16xf32, #tpu.memory_space<vmem>>, vector<1x4x1x16xf32>,
    %c0_26 = arith.constant 0 : index
    %c0_27 = arith.constant 0 : index
    %c183 = arith.constant 183 : index
    %32 = vector.load %arg1[%c0_26, %c0_27, %c183] : memref<1x16x640xbf16, #tpu.memory_space<vmem>>, vector<1x16x16xbf16>
    %33 = vector.shape_cast %32 : vector<1x16x16xbf16> to vector<16x16xbf16>
    %34 = arith.extf %33 : vector<16x16xbf16> to vector<16x16xf32>
    %c0_28 = arith.constant 0 : index
    %c0_29 = arith.constant 0 : index
    %35 = vector.load %arg2[%c0_28, %c0_29] : memref<16x1xf32, #tpu.memory_space<vmem>>, vector<16x1xf32>
    %36 = vector.broadcast %35 : vector<16x1xf32> to vector<16x16xf32>
    %37 = arith.mulf %34, %36 : vector<16x16xf32>
    %c0_30 = arith.constant 0 : index
    %c0_31 = arith.constant 0 : index
    %38 = vector.load %arg3[%c0_30, %c0_31] : memref<16x1xf32, #tpu.memory_space<vmem>>, vector<16x1xf32>
    %39 = vector.broadcast %38 : vector<16x1xf32> to vector<16x16xf32>
    %40 = arith.addf %37, %39 : vector<16x16xf32>
    %c0_32 = arith.constant 0 : index
    %c0_33 = arith.constant 0 : index
    %c2 = arith.constant 2 : index
    %c0_34 = arith.constant 0 : index
    %41 = vector.load %arg4[%c0_32, %c0_33, %c2, %c0_34] : memref<1x4x16x16xf32, #tpu.memory_space<vmem>>, vector<1x4x1x16xf32>
    %42 = vector.shape_cast %41 : vector<1x4x1x16xf32> to vector<4x16xf32>
    %43 = vector.extract_strided_slice %40 {offsets = [0, 0], sizes = [4, 16], strides = [1, 1]} : vector<16x16xf32> to vector<4x16xf32>
    %44 = arith.addf %42, %43 : vector<4x16xf32>
    %c0_35 = arith.constant 0 : index
    %c0_36 = arith.constant 0 : index
    %c2_37 = arith.constant 2 : index
    %c0_38 = arith.constant 0 : index
    %45 = vector.load %arg5[%c0_35, %c0_36, %c2_37, %c0_38] : memref<1x4x16x16xf32, #tpu.memory_space<vmem>>, vector<1x4x1x16xf32>
    %46 = vector.shape_cast %45 : vector<1x4x1x16xf32> to vector<4x16xf32>
    %47 = vector.shape_cast %44 : vector<4x16xf32> to vector<1x4x1x16xf32>
    tpu.vector_store %arg5[%c0_35, %c0_36, %c2_37, %c0_38], %47 {strides = array<i32>} : memref<1x4x16x16xf32, #tpu.memory_space<vmem>>, vector<1x4x1x16xf32>,
    %c0_39 = arith.constant 0 : index
    %c0_40 = arith.constant 0 : index
    %c201 = arith.constant 201 : index
    %48 = vector.load %arg1[%c0_39, %c0_40, %c201] : memref<1x16x640xbf16, #tpu.memory_space<vmem>>, vector<1x16x16xbf16>
    %49 = vector.shape_cast %48 : vector<1x16x16xbf16> to vector<16x16xbf16>
    %50 = arith.extf %49 : vector<16x16xbf16> to vector<16x16xf32>
    %c0_41 = arith.constant 0 : index
    %c0_42 = arith.constant 0 : index
    %51 = vector.load %arg2[%c0_41, %c0_42] : memref<16x1xf32, #tpu.memory_space<vmem>>, vector<16x1xf32>
    %52 = vector.broadcast %51 : vector<16x1xf32> to vector<16x16xf32>
    %53 = arith.mulf %50, %52 : vector<16x16xf32>
    %c0_43 = arith.constant 0 : index
    %c0_44 = arith.constant 0 : index
    %54 = vector.load %arg3[%c0_43, %c0_44] : memref<16x1xf32, #tpu.memory_space<vmem>>, vector<16x1xf32>
    %55 = vector.broadcast %54 : vector<16x1xf32> to vector<16x16xf32>
    %56 = arith.addf %53, %55 : vector<16x16xf32>
    %c0_45 = arith.constant 0 : index
    %c0_46 = arith.constant 0 : index
    %c3 = arith.constant 3 : index
    %c0_47 = arith.constant 0 : index
    %57 = vector.load %arg4[%c0_45, %c0_46, %c3, %c0_47] : memref<1x4x16x16xf32, #tpu.memory_space<vmem>>, vector<1x4x1x16xf32>
    %58 = vector.shape_cast %57 : vector<1x4x1x16xf32> to vector<4x16xf32>
    %59 = vector.extract_strided_slice %56 {offsets = [0, 0], sizes = [4, 16], strides = [1, 1]} : vector<16x16xf32> to vector<4x16xf32>
    %60 = arith.addf %58, %59 : vector<4x16xf32>
    %c0_48 = arith.constant 0 : index
    %c0_49 = arith.constant 0 : index
    %c3_50 = arith.constant 3 : index
    %c0_51 = arith.constant 0 : index
    %61 = vector.load %arg5[%c0_48, %c0_49, %c3_50, %c0_51] : memref<1x4x16x16xf32, #tpu.memory_space<vmem>>, vector<1x4x1x16xf32>
    %62 = vector.shape_cast %61 : vector<1x4x1x16xf32> to vector<4x16xf32>
    %63 = vector.shape_cast %60 : vector<4x16xf32> to vector<1x4x1x16xf32>
    tpu.vector_store %arg5[%c0_48, %c0_49, %c3_50, %c0_51], %63 {strides = array<i32>} : memref<1x4x16x16xf32, #tpu.memory_space<vmem>>, vector<1x4x1x16xf32>,
    %c0_52 = arith.constant 0 : index
    %c0_53 = arith.constant 0 : index
    %c219 = arith.constant 219 : index
    %64 = vector.load %arg1[%c0_52, %c0_53, %c219] : memref<1x16x640xbf16, #tpu.memory_space<vmem>>, vector<1x16x16xbf16>
    %65 = vector.shape_cast %64 : vector<1x16x16xbf16> to vector<16x16xbf16>
    %66 = arith.extf %65 : vector<16x16xbf16> to vector<16x16xf32>
    %c0_54 = arith.constant 0 : index
    %c0_55 = arith.constant 0 : index
    %67 = vector.load %arg2[%c0_54, %c0_55] : memref<16x1xf32, #tpu.memory_space<vmem>>, vector<16x1xf32>
    %68 = vector.broadcast %67 : vector<16x1xf32> to vector<16x16xf32>
    %69 = arith.mulf %66, %68 : vector<16x16xf32>
    %c0_56 = arith.constant 0 : index
    %c0_57 = arith.constant 0 : index
    %70 = vector.load %arg3[%c0_56, %c0_57] : memref<16x1xf32, #tpu.memory_space<vmem>>, vector<16x1xf32>
    %71 = vector.broadcast %70 : vector<16x1xf32> to vector<16x16xf32>
    %72 = arith.addf %69, %71 : vector<16x16xf32>
    %c0_58 = arith.constant 0 : index
    %c0_59 = arith.constant 0 : index
    %c4 = arith.constant 4 : index
    %c0_60 = arith.constant 0 : index
    %73 = vector.load %arg4[%c0_58, %c0_59, %c4, %c0_60] : memref<1x4x16x16xf32, #tpu.memory_space<vmem>>, vector<1x4x1x16xf32>
    %74 = vector.shape_cast %73 : vector<1x4x1x16xf32> to vector<4x16xf32>
    %75 = vector.extract_strided_slice %72 {offsets = [0, 0], sizes = [4, 16], strides = [1, 1]} : vector<16x16xf32> to vector<4x16xf32>
    %76 = arith.addf %74, %75 : vector<4x16xf32>
    %c0_61 = arith.constant 0 : index
    %c0_62 = arith.constant 0 : index
    %c4_63 = arith.constant 4 : index
    %c0_64 = arith.constant 0 : index
    %77 = vector.load %arg5[%c0_61, %c0_62, %c4_63, %c0_64] : memref<1x4x16x16xf32, #tpu.memory_space<vmem>>, vector<1x4x1x16xf32>
    %78 = vector.shape_cast %77 : vector<1x4x1x16xf32> to vector<4x16xf32>
    %79 = vector.shape_cast %76 : vector<4x16xf32> to vector<1x4x1x16xf32>
    tpu.vector_store %arg5[%c0_61, %c0_62, %c4_63, %c0_64], %79 {strides = array<i32>} : memref<1x4x16x16xf32, #tpu.memory_space<vmem>>, vector<1x4x1x16xf32>,
    %c0_65 = arith.constant 0 : index
    %c0_66 = arith.constant 0 : index
    %c237 = arith.constant 237 : index
    %80 = vector.load %arg1[%c0_65, %c0_66, %c237] : memref<1x16x640xbf16, #tpu.memory_space<vmem>>, vector<1x16x16xbf16>
    %81 = vector.shape_cast %80 : vector<1x16x16xbf16> to vector<16x16xbf16>
    %82 = arith.extf %81 : vector<16x16xbf16> to vector<16x16xf32>
    %c0_67 = arith.constant 0 : index
    %c0_68 = arith.constant 0 : index
    %83 = vector.load %arg2[%c0_67, %c0_68] : memref<16x1xf32, #tpu.memory_space<vmem>>, vector<16x1xf32>
    %84 = vector.broadcast %83 : vector<16x1xf32> to vector<16x16xf32>
    %85 = arith.mulf %82, %84 : vector<16x16xf32>
    %c0_69 = arith.constant 0 : index
    %c0_70 = arith.constant 0 : index
    %86 = vector.load %arg3[%c0_69, %c0_70] : memref<16x1xf32, #tpu.memory_space<vmem>>, vector<16x1xf32>
    %87 = vector.broadcast %86 : vector<16x1xf32> to vector<16x16xf32>
    %88 = arith.addf %85, %87 : vector<16x16xf32>
    %c0_71 = arith.constant 0 : index
    %c0_72 = arith.constant 0 : index
    %c5 = arith.constant 5 : index
    %c0_73 = arith.constant 0 : index
    %89 = vector.load %arg4[%c0_71, %c0_72, %c5, %c0_73] : memref<1x4x16x16xf32, #tpu.memory_space<vmem>>, vector<1x4x1x16xf32>
    %90 = vector.shape_cast %89 : vector<1x4x1x16xf32> to vector<4x16xf32>
    %91 = vector.extract_strided_slice %88 {offsets = [0, 0], sizes = [4, 16], strides = [1, 1]} : vector<16x16xf32> to vector<4x16xf32>
    %92 = arith.addf %90, %91 : vector<4x16xf32>
    %c0_74 = arith.constant 0 : index
    %c0_75 = arith.constant 0 : index
    %c5_76 = arith.constant 5 : index
    %c0_77 = arith.constant 0 : index
    %93 = vector.load %arg5[%c0_74, %c0_75, %c5_76, %c0_77] : memref<1x4x16x16xf32, #tpu.memory_space<vmem>>, vector<1x4x1x16xf32>
    %94 = vector.shape_cast %93 : vector<1x4x1x16xf32> to vector<4x16xf32>
    %95 = vector.shape_cast %92 : vector<4x16xf32> to vector<1x4x1x16xf32>
    tpu.vector_store %arg5[%c0_74, %c0_75, %c5_76, %c0_77], %95 {strides = array<i32>} : memref<1x4x16x16xf32, #tpu.memory_space<vmem>>, vector<1x4x1x16xf32>,
    %c0_78 = arith.constant 0 : index
    %c0_79 = arith.constant 0 : index
    %c255 = arith.constant 255 : index
    %96 = vector.load %arg1[%c0_78, %c0_79, %c255] : memref<1x16x640xbf16, #tpu.memory_space<vmem>>, vector<1x16x16xbf16>
    %97 = vector.shape_cast %96 : vector<1x16x16xbf16> to vector<16x16xbf16>
    %98 = arith.extf %97 : vector<16x16xbf16> to vector<16x16xf32>
    %c0_80 = arith.constant 0 : index
    %c0_81 = arith.constant 0 : index
    %99 = vector.load %arg2[%c0_80, %c0_81] : memref<16x1xf32, #tpu.memory_space<vmem>>, vector<16x1xf32>
    %100 = vector.broadcast %99 : vector<16x1xf32> to vector<16x16xf32>
    %101 = arith.mulf %98, %100 : vector<16x16xf32>
    %c0_82 = arith.constant 0 : index
    %c0_83 = arith.constant 0 : index
    %102 = vector.load %arg3[%c0_82, %c0_83] : memref<16x1xf32, #tpu.memory_space<vmem>>, vector<16x1xf32>
    %103 = vector.broadcast %102 : vector<16x1xf32> to vector<16x16xf32>
    %104 = arith.addf %101, %103 : vector<16x16xf32>
    %c0_84 = arith.constant 0 : index
    %c0_85 = arith.constant 0 : index
    %c6 = arith.constant 6 : index
    %c0_86 = arith.constant 0 : index
    %105 = vector.load %arg4[%c0_84, %c0_85, %c6, %c0_86] : memref<1x4x16x16xf32, #tpu.memory_space<vmem>>, vector<1x4x1x16xf32>
    %106 = vector.shape_cast %105 : vector<1x4x1x16xf32> to vector<4x16xf32>
    %107 = vector.extract_strided_slice %104 {offsets = [0, 0], sizes = [4, 16], strides = [1, 1]} : vector<16x16xf32> to vector<4x16xf32>
    %108 = arith.addf %106, %107 : vector<4x16xf32>
    %c0_87 = arith.constant 0 : index
    %c0_88 = arith.constant 0 : index
    %c6_89 = arith.constant 6 : index
    %c0_90 = arith.constant 0 : index
    %109 = vector.load %arg5[%c0_87, %c0_88, %c6_89, %c0_90] : memref<1x4x16x16xf32, #tpu.memory_space<vmem>>, vector<1x4x1x16xf32>
    %110 = vector.shape_cast %109 : vector<1x4x1x16xf32> to vector<4x16xf32>
    %111 = vector.shape_cast %108 : vector<4x16xf32> to vector<1x4x1x16xf32>
    tpu.vector_store %arg5[%c0_87, %c0_88, %c6_89, %c0_90], %111 {strides = array<i32>} : memref<1x4x16x16xf32, #tpu.memory_space<vmem>>, vector<1x4x1x16xf32>,
    %c0_91 = arith.constant 0 : index
    %c0_92 = arith.constant 0 : index
    %c273 = arith.constant 273 : index
    %112 = vector.load %arg1[%c0_91, %c0_92, %c273] : memref<1x16x640xbf16, #tpu.memory_space<vmem>>, vector<1x16x16xbf16>
    %113 = vector.shape_cast %112 : vector<1x16x16xbf16> to vector<16x16xbf16>
    %114 = arith.extf %113 : vector<16x16xbf16> to vector<16x16xf32>
    %c0_93 = arith.constant 0 : index
    %c0_94 = arith.constant 0 : index
    %115 = vector.load %arg2[%c0_93, %c0_94] : memref<16x1xf32, #tpu.memory_space<vmem>>, vector<16x1xf32>
    %116 = vector.broadcast %115 : vector<16x1xf32> to vector<16x16xf32>
    %117 = arith.mulf %114, %116 : vector<16x16xf32>
    %c0_95 = arith.constant 0 : index
    %c0_96 = arith.constant 0 : index
    %118 = vector.load %arg3[%c0_95, %c0_96] : memref<16x1xf32, #tpu.memory_space<vmem>>, vector<16x1xf32>
    %119 = vector.broadcast %118 : vector<16x1xf32> to vector<16x16xf32>
    %120 = arith.addf %117, %119 : vector<16x16xf32>
    %c0_97 = arith.constant 0 : index
    %c0_98 = arith.constant 0 : index
    %c7 = arith.constant 7 : index
    %c0_99 = arith.constant 0 : index
    %121 = vector.load %arg4[%c0_97, %c0_98, %c7, %c0_99] : memref<1x4x16x16xf32, #tpu.memory_space<vmem>>, vector<1x4x1x16xf32>
    %122 = vector.shape_cast %121 : vector<1x4x1x16xf32> to vector<4x16xf32>
    %123 = vector.extract_strided_slice %120 {offsets = [0, 0], sizes = [4, 16], strides = [1, 1]} : vector<16x16xf32> to vector<4x16xf32>
    %124 = arith.addf %122, %123 : vector<4x16xf32>
    %c0_100 = arith.constant 0 : index
    %c0_101 = arith.constant 0 : index
    %c7_102 = arith.constant 7 : index
    %c0_103 = arith.constant 0 : index
    %125 = vector.load %arg5[%c0_100, %c0_101, %c7_102, %c0_103] : memref<1x4x16x16xf32, #tpu.memory_space<vmem>>, vector<1x4x1x16xf32>
    %126 = vector.shape_cast %125 : vector<1x4x1x16xf32> to vector<4x16xf32>
    %127 = vector.shape_cast %124 : vector<4x16xf32> to vector<1x4x1x16xf32>
    tpu.vector_store %arg5[%c0_100, %c0_101, %c7_102, %c0_103], %127 {strides = array<i32>} : memref<1x4x16x16xf32, #tpu.memory_space<vmem>>, vector<1x4x1x16xf32>,
    %c0_104 = arith.constant 0 : index
    %c0_105 = arith.constant 0 : index
    %c291 = arith.constant 291 : index
    %128 = vector.load %arg1[%c0_104, %c0_105, %c291] : memref<1x16x640xbf16, #tpu.memory_space<vmem>>, vector<1x16x16xbf16>
    %129 = vector.shape_cast %128 : vector<1x16x16xbf16> to vector<16x16xbf16>
    %130 = arith.extf %129 : vector<16x16xbf16> to vector<16x16xf32>
    %c0_106 = arith.constant 0 : index
    %c0_107 = arith.constant 0 : index
    %131 = vector.load %arg2[%c0_106, %c0_107] : memref<16x1xf32, #tpu.memory_space<vmem>>, vector<16x1xf32>
    %132 = vector.broadcast %131 : vector<16x1xf32> to vector<16x16xf32>
    %133 = arith.mulf %130, %132 : vector<16x16xf32>
    %c0_108 = arith.constant 0 : index
    %c0_109 = arith.constant 0 : index
    %134 = vector.load %arg3[%c0_108, %c0_109] : memref<16x1xf32, #tpu.memory_space<vmem>>, vector<16x1xf32>
    %135 = vector.broadcast %134 : vector<16x1xf32> to vector<16x16xf32>
    %136 = arith.addf %133, %135 : vector<16x16xf32>
    %c0_110 = arith.constant 0 : index
    %c0_111 = arith.constant 0 : index
    %c8 = arith.constant 8 : index
    %c0_112 = arith.constant 0 : index
    %137 = vector.load %arg4[%c0_110, %c0_111, %c8, %c0_112] : memref<1x4x16x16xf32, #tpu.memory_space<vmem>>, vector<1x4x1x16xf32>
    %138 = vector.shape_cast %137 : vector<1x4x1x16xf32> to vector<4x16xf32>
    %139 = vector.extract_strided_slice %136 {offsets = [0, 0], sizes = [4, 16], strides = [1, 1]} : vector<16x16xf32> to vector<4x16xf32>
    %140 = arith.addf %138, %139 : vector<4x16xf32>
    %c0_113 = arith.constant 0 : index
    %c0_114 = arith.constant 0 : index
    %c8_115 = arith.constant 8 : index
    %c0_116 = arith.constant 0 : index
    %141 = vector.load %arg5[%c0_113, %c0_114, %c8_115, %c0_116] : memref<1x4x16x16xf32, #tpu.memory_space<vmem>>, vector<1x4x1x16xf32>
    %142 = vector.shape_cast %141 : vector<1x4x1x16xf32> to vector<4x16xf32>
    %143 = vector.shape_cast %140 : vector<4x16xf32> to vector<1x4x1x16xf32>
    tpu.vector_store %arg5[%c0_113, %c0_114, %c8_115, %c0_116], %143 {strides = array<i32>} : memref<1x4x16x16xf32, #tpu.memory_space<vmem>>, vector<1x4x1x16xf32>,
    %c0_117 = arith.constant 0 : index
    %c0_118 = arith.constant 0 : index
    %c309 = arith.constant 309 : index
    %144 = vector.load %arg1[%c0_117, %c0_118, %c309] : memref<1x16x640xbf16, #tpu.memory_space<vmem>>, vector<1x16x16xbf16>
    %145 = vector.shape_cast %144 : vector<1x16x16xbf16> to vector<16x16xbf16>
    %146 = arith.extf %145 : vector<16x16xbf16> to vector<16x16xf32>
    %c0_119 = arith.constant 0 : index
    %c0_120 = arith.constant 0 : index
    %147 = vector.load %arg2[%c0_119, %c0_120] : memref<16x1xf32, #tpu.memory_space<vmem>>, vector<16x1xf32>
    %148 = vector.broadcast %147 : vector<16x1xf32> to vector<16x16xf32>
    %149 = arith.mulf %146, %148 : vector<16x16xf32>
    %c0_121 = arith.constant 0 : index
    %c0_122 = arith.constant 0 : index
    %150 = vector.load %arg3[%c0_121, %c0_122] : memref<16x1xf32, #tpu.memory_space<vmem>>, vector<16x1xf32>
    %151 = vector.broadcast %150 : vector<16x1xf32> to vector<16x16xf32>
    %152 = arith.addf %149, %151 : vector<16x16xf32>
    %c0_123 = arith.constant 0 : index
    %c0_124 = arith.constant 0 : index
    %c9 = arith.constant 9 : index
    %c0_125 = arith.constant 0 : index
    %153 = vector.load %arg4[%c0_123, %c0_124, %c9, %c0_125] : memref<1x4x16x16xf32, #tpu.memory_space<vmem>>, vector<1x4x1x16xf32>
    %154 = vector.shape_cast %153 : vector<1x4x1x16xf32> to vector<4x16xf32>
    %155 = vector.extract_strided_slice %152 {offsets = [0, 0], sizes = [4, 16], strides = [1, 1]} : vector<16x16xf32> to vector<4x16xf32>
    %156 = arith.addf %154, %155 : vector<4x16xf32>
    %c0_126 = arith.constant 0 : index
    %c0_127 = arith.constant 0 : index
    %c9_128 = arith.constant 9 : index
    %c0_129 = arith.constant 0 : index
    %157 = vector.load %arg5[%c0_126, %c0_127, %c9_128, %c0_129] : memref<1x4x16x16xf32, #tpu.memory_space<vmem>>, vector<1x4x1x16xf32>
    %158 = vector.shape_cast %157 : vector<1x4x1x16xf32> to vector<4x16xf32>
    %159 = vector.shape_cast %156 : vector<4x16xf32> to vector<1x4x1x16xf32>
    tpu.vector_store %arg5[%c0_126, %c0_127, %c9_128, %c0_129], %159 {strides = array<i32>} : memref<1x4x16x16xf32, #tpu.memory_space<vmem>>, vector<1x4x1x16xf32>,
    %c0_130 = arith.constant 0 : index
    %c0_131 = arith.constant 0 : index
    %c327 = arith.constant 327 : index
    %160 = vector.load %arg1[%c0_130, %c0_131, %c327] : memref<1x16x640xbf16, #tpu.memory_space<vmem>>, vector<1x16x16xbf16>
    %161 = vector.shape_cast %160 : vector<1x16x16xbf16> to vector<16x16xbf16>
    %162 = arith.extf %161 : vector<16x16xbf16> to vector<16x16xf32>
    %c0_132 = arith.constant 0 : index
    %c0_133 = arith.constant 0 : index
    %163 = vector.load %arg2[%c0_132, %c0_133] : memref<16x1xf32, #tpu.memory_space<vmem>>, vector<16x1xf32>
    %164 = vector.broadcast %163 : vector<16x1xf32> to vector<16x16xf32>
    %165 = arith.mulf %162, %164 : vector<16x16xf32>
    %c0_134 = arith.constant 0 : index
    %c0_135 = arith.constant 0 : index
    %166 = vector.load %arg3[%c0_134, %c0_135] : memref<16x1xf32, #tpu.memory_space<vmem>>, vector<16x1xf32>
    %167 = vector.broadcast %166 : vector<16x1xf32> to vector<16x16xf32>
    %168 = arith.addf %165, %167 : vector<16x16xf32>
    %c0_136 = arith.constant 0 : index
    %c0_137 = arith.constant 0 : index
    %c10 = arith.constant 10 : index
    %c0_138 = arith.constant 0 : index
    %169 = vector.load %arg4[%c0_136, %c0_137, %c10, %c0_138] : memref<1x4x16x16xf32, #tpu.memory_space<vmem>>, vector<1x4x1x16xf32>
    %170 = vector.shape_cast %169 : vector<1x4x1x16xf32> to vector<4x16xf32>
    %171 = vector.extract_strided_slice %168 {offsets = [0, 0], sizes = [4, 16], strides = [1, 1]} : vector<16x16xf32> to vector<4x16xf32>
    %172 = arith.addf %170, %171 : vector<4x16xf32>
    %c0_139 = arith.constant 0 : index
    %c0_140 = arith.constant 0 : index
    %c10_141 = arith.constant 10 : index
    %c0_142 = arith.constant 0 : index
    %173 = vector.load %arg5[%c0_139, %c0_140, %c10_141, %c0_142] : memref<1x4x16x16xf32, #tpu.memory_space<vmem>>, vector<1x4x1x16xf32>
    %174 = vector.shape_cast %173 : vector<1x4x1x16xf32> to vector<4x16xf32>
    %175 = vector.shape_cast %172 : vector<4x16xf32> to vector<1x4x1x16xf32>
    tpu.vector_store %arg5[%c0_139, %c0_140, %c10_141, %c0_142], %175 {strides = array<i32>} : memref<1x4x16x16xf32, #tpu.memory_space<vmem>>, vector<1x4x1x16xf32>,
    %c0_143 = arith.constant 0 : index
    %c0_144 = arith.constant 0 : index
    %c345 = arith.constant 345 : index
    %176 = vector.load %arg1[%c0_143, %c0_144, %c345] : memref<1x16x640xbf16, #tpu.memory_space<vmem>>, vector<1x16x16xbf16>
    %177 = vector.shape_cast %176 : vector<1x16x16xbf16> to vector<16x16xbf16>
    %178 = arith.extf %177 : vector<16x16xbf16> to vector<16x16xf32>
    %c0_145 = arith.constant 0 : index
    %c0_146 = arith.constant 0 : index
    %179 = vector.load %arg2[%c0_145, %c0_146] : memref<16x1xf32, #tpu.memory_space<vmem>>, vector<16x1xf32>
    %180 = vector.broadcast %179 : vector<16x1xf32> to vector<16x16xf32>
    %181 = arith.mulf %178, %180 : vector<16x16xf32>
    %c0_147 = arith.constant 0 : index
    %c0_148 = arith.constant 0 : index
    %182 = vector.load %arg3[%c0_147, %c0_148] : memref<16x1xf32, #tpu.memory_space<vmem>>, vector<16x1xf32>
    %183 = vector.broadcast %182 : vector<16x1xf32> to vector<16x16xf32>
    %184 = arith.addf %181, %183 : vector<16x16xf32>
    %c0_149 = arith.constant 0 : index
    %c0_150 = arith.constant 0 : index
    %c11 = arith.constant 11 : index
    %c0_151 = arith.constant 0 : index
    %185 = vector.load %arg4[%c0_149, %c0_150, %c11, %c0_151] : memref<1x4x16x16xf32, #tpu.memory_space<vmem>>, vector<1x4x1x16xf32>
    %186 = vector.shape_cast %185 : vector<1x4x1x16xf32> to vector<4x16xf32>
    %187 = vector.extract_strided_slice %184 {offsets = [0, 0], sizes = [4, 16], strides = [1, 1]} : vector<16x16xf32> to vector<4x16xf32>
    %188 = arith.addf %186, %187 : vector<4x16xf32>
    %c0_152 = arith.constant 0 : index
    %c0_153 = arith.constant 0 : index
    %c11_154 = arith.constant 11 : index
    %c0_155 = arith.constant 0 : index
    %189 = vector.load %arg5[%c0_152, %c0_153, %c11_154, %c0_155] : memref<1x4x16x16xf32, #tpu.memory_space<vmem>>, vector<1x4x1x16xf32>
    %190 = vector.shape_cast %189 : vector<1x4x1x16xf32> to vector<4x16xf32>
    %191 = vector.shape_cast %188 : vector<4x16xf32> to vector<1x4x1x16xf32>
    tpu.vector_store %arg5[%c0_152, %c0_153, %c11_154, %c0_155], %191 {strides = array<i32>} : memref<1x4x16x16xf32, #tpu.memory_space<vmem>>, vector<1x4x1x16xf32>,
    %c0_156 = arith.constant 0 : index
    %c0_157 = arith.constant 0 : index
    %c363 = arith.constant 363 : index
    %192 = vector.load %arg1[%c0_156, %c0_157, %c363] : memref<1x16x640xbf16, #tpu.memory_space<vmem>>, vector<1x16x16xbf16>
    %193 = vector.shape_cast %192 : vector<1x16x16xbf16> to vector<16x16xbf16>
    %194 = arith.extf %193 : vector<16x16xbf16> to vector<16x16xf32>
    %c0_158 = arith.constant 0 : index
    %c0_159 = arith.constant 0 : index
    %195 = vector.load %arg2[%c0_158, %c0_159] : memref<16x1xf32, #tpu.memory_space<vmem>>, vector<16x1xf32>
    %196 = vector.broadcast %195 : vector<16x1xf32> to vector<16x16xf32>
    %197 = arith.mulf %194, %196 : vector<16x16xf32>
    %c0_160 = arith.constant 0 : index
    %c0_161 = arith.constant 0 : index
    %198 = vector.load %arg3[%c0_160, %c0_161] : memref<16x1xf32, #tpu.memory_space<vmem>>, vector<16x1xf32>
    %199 = vector.broadcast %198 : vector<16x1xf32> to vector<16x16xf32>
    %200 = arith.addf %197, %199 : vector<16x16xf32>
    %c0_162 = arith.constant 0 : index
    %c0_163 = arith.constant 0 : index
    %c12 = arith.constant 12 : index
    %c0_164 = arith.constant 0 : index
    %201 = vector.load %arg4[%c0_162, %c0_163, %c12, %c0_164] : memref<1x4x16x16xf32, #tpu.memory_space<vmem>>, vector<1x4x1x16xf32>
    %202 = vector.shape_cast %201 : vector<1x4x1x16xf32> to vector<4x16xf32>
    %203 = vector.extract_strided_slice %200 {offsets = [0, 0], sizes = [4, 16], strides = [1, 1]} : vector<16x16xf32> to vector<4x16xf32>
    %204 = arith.addf %202, %203 : vector<4x16xf32>
    %c0_165 = arith.constant 0 : index
    %c0_166 = arith.constant 0 : index
    %c12_167 = arith.constant 12 : index
    %c0_168 = arith.constant 0 : index
    %205 = vector.load %arg5[%c0_165, %c0_166, %c12_167, %c0_168] : memref<1x4x16x16xf32, #tpu.memory_space<vmem>>, vector<1x4x1x16xf32>
    %206 = vector.shape_cast %205 : vector<1x4x1x16xf32> to vector<4x16xf32>
    %207 = vector.shape_cast %204 : vector<4x16xf32> to vector<1x4x1x16xf32>
    tpu.vector_store %arg5[%c0_165, %c0_166, %c12_167, %c0_168], %207 {strides = array<i32>} : memref<1x4x16x16xf32, #tpu.memory_space<vmem>>, vector<1x4x1x16xf32>,
    %c0_169 = arith.constant 0 : index
    %c0_170 = arith.constant 0 : index
    %c381 = arith.constant 381 : index
    %208 = vector.load %arg1[%c0_169, %c0_170, %c381] : memref<1x16x640xbf16, #tpu.memory_space<vmem>>, vector<1x16x16xbf16>
    %209 = vector.shape_cast %208 : vector<1x16x16xbf16> to vector<16x16xbf16>
    %210 = arith.extf %209 : vector<16x16xbf16> to vector<16x16xf32>
    %c0_171 = arith.constant 0 : index
    %c0_172 = arith.constant 0 : index
    %211 = vector.load %arg2[%c0_171, %c0_172] : memref<16x1xf32, #tpu.memory_space<vmem>>, vector<16x1xf32>
    %212 = vector.broadcast %211 : vector<16x1xf32> to vector<16x16xf32>
    %213 = arith.mulf %210, %212 : vector<16x16xf32>
    %c0_173 = arith.constant 0 : index
    %c0_174 = arith.constant 0 : index
    %214 = vector.load %arg3[%c0_173, %c0_174] : memref<16x1xf32, #tpu.memory_space<vmem>>, vector<16x1xf32>
    %215 = vector.broadcast %214 : vector<16x1xf32> to vector<16x16xf32>
    %216 = arith.addf %213, %215 : vector<16x16xf32>
    %c0_175 = arith.constant 0 : index
    %c0_176 = arith.constant 0 : index
    %c13 = arith.constant 13 : index
    %c0_177 = arith.constant 0 : index
    %217 = vector.load %arg4[%c0_175, %c0_176, %c13, %c0_177] : memref<1x4x16x16xf32, #tpu.memory_space<vmem>>, vector<1x4x1x16xf32>
    %218 = vector.shape_cast %217 : vector<1x4x1x16xf32> to vector<4x16xf32>
    %219 = vector.extract_strided_slice %216 {offsets = [0, 0], sizes = [4, 16], strides = [1, 1]} : vector<16x16xf32> to vector<4x16xf32>
    %220 = arith.addf %218, %219 : vector<4x16xf32>
    %c0_178 = arith.constant 0 : index
    %c0_179 = arith.constant 0 : index
    %c13_180 = arith.constant 13 : index
    %c0_181 = arith.constant 0 : index
    %221 = vector.load %arg5[%c0_178, %c0_179, %c13_180, %c0_181] : memref<1x4x16x16xf32, #tpu.memory_space<vmem>>, vector<1x4x1x16xf32>
    %222 = vector.shape_cast %221 : vector<1x4x1x16xf32> to vector<4x16xf32>
    %223 = vector.shape_cast %220 : vector<4x16xf32> to vector<1x4x1x16xf32>
    tpu.vector_store %arg5[%c0_178, %c0_179, %c13_180, %c0_181], %223 {strides = array<i32>} : memref<1x4x16x16xf32, #tpu.memory_space<vmem>>, vector<1x4x1x16xf32>,
    %c0_182 = arith.constant 0 : index
    %c0_183 = arith.constant 0 : index
    %c399 = arith.constant 399 : index
    %224 = vector.load %arg1[%c0_182, %c0_183, %c399] : memref<1x16x640xbf16, #tpu.memory_space<vmem>>, vector<1x16x16xbf16>
    %225 = vector.shape_cast %224 : vector<1x16x16xbf16> to vector<16x16xbf16>
    %226 = arith.extf %225 : vector<16x16xbf16> to vector<16x16xf32>
    %c0_184 = arith.constant 0 : index
    %c0_185 = arith.constant 0 : index
    %227 = vector.load %arg2[%c0_184, %c0_185] : memref<16x1xf32, #tpu.memory_space<vmem>>, vector<16x1xf32>
    %228 = vector.broadcast %227 : vector<16x1xf32> to vector<16x16xf32>
    %229 = arith.mulf %226, %228 : vector<16x16xf32>
    %c0_186 = arith.constant 0 : index
    %c0_187 = arith.constant 0 : index
    %230 = vector.load %arg3[%c0_186, %c0_187] : memref<16x1xf32, #tpu.memory_space<vmem>>, vector<16x1xf32>
    %231 = vector.broadcast %230 : vector<16x1xf32> to vector<16x16xf32>
    %232 = arith.addf %229, %231 : vector<16x16xf32>
    %c0_188 = arith.constant 0 : index
    %c0_189 = arith.constant 0 : index
    %c14 = arith.constant 14 : index
    %c0_190 = arith.constant 0 : index
    %233 = vector.load %arg4[%c0_188, %c0_189, %c14, %c0_190] : memref<1x4x16x16xf32, #tpu.memory_space<vmem>>, vector<1x4x1x16xf32>
    %234 = vector.shape_cast %233 : vector<1x4x1x16xf32> to vector<4x16xf32>
    %235 = vector.extract_strided_slice %232 {offsets = [0, 0], sizes = [4, 16], strides = [1, 1]} : vector<16x16xf32> to vector<4x16xf32>
    %236 = arith.addf %234, %235 : vector<4x16xf32>
    %c0_191 = arith.constant 0 : index
    %c0_192 = arith.constant 0 : index
    %c14_193 = arith.constant 14 : index
    %c0_194 = arith.constant 0 : index
    %237 = vector.load %arg5[%c0_191, %c0_192, %c14_193, %c0_194] : memref<1x4x16x16xf32, #tpu.memory_space<vmem>>, vector<1x4x1x16xf32>
    %238 = vector.shape_cast %237 : vector<1x4x1x16xf32> to vector<4x16xf32>
    %239 = vector.shape_cast %236 : vector<4x16xf32> to vector<1x4x1x16xf32>
    tpu.vector_store %arg5[%c0_191, %c0_192, %c14_193, %c0_194], %239 {strides = array<i32>} : memref<1x4x16x16xf32, #tpu.memory_space<vmem>>, vector<1x4x1x16xf32>,
    %c0_195 = arith.constant 0 : index
    %c0_196 = arith.constant 0 : index
    %c417 = arith.constant 417 : index
    %240 = vector.load %arg1[%c0_195, %c0_196, %c417] : memref<1x16x640xbf16, #tpu.memory_space<vmem>>, vector<1x16x16xbf16>
    %241 = vector.shape_cast %240 : vector<1x16x16xbf16> to vector<16x16xbf16>
    %242 = arith.extf %241 : vector<16x16xbf16> to vector<16x16xf32>
    %c0_197 = arith.constant 0 : index
    %c0_198 = arith.constant 0 : index
    %243 = vector.load %arg2[%c0_197, %c0_198] : memref<16x1xf32, #tpu.memory_space<vmem>>, vector<16x1xf32>
    %244 = vector.broadcast %243 : vector<16x1xf32> to vector<16x16xf32>
    %245 = arith.mulf %242, %244 : vector<16x16xf32>
    %c0_199 = arith.constant 0 : index
    %c0_200 = arith.constant 0 : index
    %246 = vector.load %arg3[%c0_199, %c0_200] : memref<16x1xf32, #tpu.memory_space<vmem>>, vector<16x1xf32>
    %247 = vector.broadcast %246 : vector<16x1xf32> to vector<16x16xf32>
    %248 = arith.addf %245, %247 : vector<16x16xf32>
    %c0_201 = arith.constant 0 : index
    %c0_202 = arith.constant 0 : index
    %c15 = arith.constant 15 : index
    %c0_203 = arith.constant 0 : index
    %249 = vector.load %arg4[%c0_201, %c0_202, %c15, %c0_203] : memref<1x4x16x16xf32, #tpu.memory_space<vmem>>, vector<1x4x1x16xf32>
    %250 = vector.shape_cast %249 : vector<1x4x1x16xf32> to vector<4x16xf32>
    %251 = vector.extract_strided_slice %248 {offsets = [0, 0], sizes = [4, 16], strides = [1, 1]} : vector<16x16xf32> to vector<4x16xf32>
    %252 = arith.addf %250, %251 : vector<4x16xf32>
    %c0_204 = arith.constant 0 : index
    %c0_205 = arith.constant 0 : index
    %c15_206 = arith.constant 15 : index
    %c0_207 = arith.constant 0 : index
    %253 = vector.load %arg5[%c0_204, %c0_205, %c15_206, %c0_207] : memref<1x4x16x16xf32, #tpu.memory_space<vmem>>, vector<1x4x1x16xf32>
    %254 = vector.shape_cast %253 : vector<1x4x1x16xf32> to vector<4x16xf32>
    %255 = vector.shape_cast %252 : vector<4x16xf32> to vector<1x4x1x16xf32>
    tpu.vector_store %arg5[%c0_204, %c0_205, %c15_206, %c0_207], %255 {strides = array<i32>} : memref<1x4x16x16xf32, #tpu.memory_space<vmem>>, vector<1x4x1x16xf32>,
    return
  }
  func.func @transform_0(%arg0: i32) -> (i32, i32, i32) {
    %c0_i32 = arith.constant 0 : i32
    %c0_i32_0 = arith.constant 0 : i32
    %c0_i32_1 = arith.constant 0 : i32
    return %arg0, %c0_i32, %c0_i32_0 : i32, i32, i32
  }
  func.func @transform_1(%arg0: i32) -> (i32, i32) {
    %c0_i32 = arith.constant 0 : i32
    %c0_i32_0 = arith.constant 0 : i32
    %c0_i32_1 = arith.constant 0 : i32
    return %c0_i32, %c0_i32_0 : i32, i32
  }
  func.func @transform_2(%arg0: i32) -> (i32, i32) {
    %c0_i32 = arith.constant 0 : i32
    %c0_i32_0 = arith.constant 0 : i32
    %c0_i32_1 = arith.constant 0 : i32
    return %c0_i32, %c0_i32_0 : i32, i32
  }
  func.func @transform_3(%arg0: i32) -> (i32, i32, i32, i32) {
    %c0_i32 = arith.constant 0 : i32
    %c0_i32_0 = arith.constant 0 : i32
    %c0_i32_1 = arith.constant 0 : i32
    %c0_i32_2 = arith.constant 0 : i32
    return %arg0, %c0_i32, %c0_i32_0, %c0_i32_1 : i32, i32, i32, i32
  }
  func.func @transform_4(%arg0: i32) -> (i32, i32, i32, i32) {
    %c0_i32 = arith.constant 0 : i32
    %c0_i32_0 = arith.constant 0 : i32
    %c0_i32_1 = arith.constant 0 : i32
    %c0_i32_2 = arith.constant 0 : i32
    return %arg0, %c0_i32, %c0_i32_0, %c0_i32_1 : i32, i32, i32, i32
  }
}

</mosaic_0001>

<llo_original>
// kernel: residual_block_forward.5
$region0: #{residual_block_forward.5}
  #allocation0 [shape = 'u32[]', space=smem, size = 0x4, offset = 0x4, fixed_abs, tag = 'smem constant byte address 0x4 - core index']
  #allocation1 [shape = 'u32[144,128]{1,0:T(1,128)}', space=vmem, size = 0x12000, scoped, tag = 'internal scratch']
  %s0 = inlined_call_operand.vmem [shape: bf16[2,16,640], index: 0, kind: input, shape index: {}]
  %s1 = inlined_call_operand.vmem [shape: f32[16,1], index: 1, kind: input, shape index: {}]
  %s2 = inlined_call_operand.vmem [shape: f32[16,1], index: 2, kind: input, shape index: {}]
  %s3 = inlined_call_operand.vmem [shape: f32[2,4,16,16], index: 3, kind: input, shape index: {}]
  %s4 = inlined_call_operand.hbm [shape: f32[2,4,16,16], index: 4, kind: output, shape index: {}]
  %s5 = sld [smem:[#allocation0]]
  $region49: #{residual_block_forward.5} parent=0
    _
  %s7 = ssub.s32 1, %s5
  %s8 = scalar_select 0, %s7, %s5
  $region1: #{residual_block_forward.5} parent=0
    #allocation2 [shape = 'u8[65536]{0}', space=vmem, size = 0x10000, scoped, tag = 'output window, operand 0']
    #allocation3 [shape = 's32[2]{0}', space=sflag, size = 0x8, scoped, tag = 'scoped memory for residual_block_forward.5']
    %9 = vsyncpa [#allocation3], 0
    %s10 = scalar_lea.sflag [#allocation3], 1
    %11 = vsyncpa %s10, 0
    loop: start=0, step=1, limit=4
    $region2: #{residual_block_forward.5} parent=1 // loop_pre_header
      _
    $region3: #{residual_block_forward.5} parent=1 // loop_header
      %s13 = sphi 0, %s17
      %p14 = scmp.ge.s32.totalorder %s13, 4
      %s23 = sphi 0, %s25
      %s26 = sphi 0, %s23
      %s27 = sphi 0, %s26
      %s43 = sphi 0, %s27
      %s47 = sphi 0, %s47
      %s49 = sphi 0, %s47
      %s50 = sphi 0, %s49
      %s64 = sphi 0, %s50
      %s68 = sphi 0, %s68
      %s70 = sphi 0, %s68
      %s71 = sphi 0, %s70
      %s85 = sphi 0, %s71
      %s91 = sphi 0, %s93
      %s94 = sphi 0, %s91
      %s95 = sphi 0, %s94
      %s111 = sphi 0, %s95
      %s117 = sphi 0, %s119
      %s120 = sphi 0, %s117
      %s121 = sphi 0, %s120
      %s137 = sphi 0, %s121
    $region4: #{residual_block_forward.5} parent=1 // loop_header_branch
      %16 = sbr.rel (%p14) target = $region8
    $region5: #{residual_block_forward.5} parent=1 // loop_body
      %s18 = ssub.s32 %s13, 1
      %s19 = ssub.s32 %s13, 2
      %s20 = sadd.s32 %s13, 1
      %s21 = ssub.s32 %s13, %s20
      %p22 = scmp.eq.s32.totalorder %s21, 0
      %s24 = sadd.s32 %s23, 1
      %s25 = scalar_select %p22, %s23, %s24
      %p28 = pneg %p22
      %p29 = scmp.eq.s32.totalorder %s13, 1
      %p30 = por %p28, %p29
      %p31 = scmp.ne.s32.totalorder %s23, %s26
      %p32 = scmp.eq.s32.totalorder %s13, 0
      %p33 = por %p31, %p32
      %p34 = scmp.ne.s32.totalorder %s23, %s26
      %p35 = scmp.eq.s32.totalorder %s18, 1
      %p36 = por %p34, %p35
      %p37 = scmp.ne.s32.totalorder %s26, %s27
      %p38 = scmp.eq.s32.totalorder %s18, 0
      %p39 = por %p37, %p38
      %p40 = scmp.ne.s32.totalorder %s26, %s27
      %p41 = scmp.eq.s32.totalorder %s19, 1
      %p42 = por %p40, %p41
      %p44 = scmp.ne.s32.totalorder %s27, %s43
      %p45 = scmp.eq.s32.totalorder %s19, 0
      %p46 = por %p44, %p45
      %s48 = sadd.s32 %s47, 1
      %p51 = scmp.eq.s32.totalorder %s13, 1
      %p52 = scmp.ne.s32.totalorder %s47, %s49
      %p53 = scmp.eq.s32.totalorder %s13, 0
      %p54 = por %p52, %p53
      %p55 = scmp.ne.s32.totalorder %s47, %s49
      %p56 = scmp.eq.s32.totalorder %s18, 1
      %p57 = por %p55, %p56
      %p58 = scmp.ne.s32.totalorder %s49, %s50
      %p59 = scmp.eq.s32.totalorder %s18, 0
      %p60 = por %p58, %p59
      %p61 = scmp.ne.s32.totalorder %s49, %s50
      %p62 = scmp.eq.s32.totalorder %s19, 1
      %p63 = por %p61, %p62
      %p65 = scmp.ne.s32.totalorder %s50, %s64
      %p66 = scmp.eq.s32.totalorder %s19, 0
      %p67 = por %p65, %p66
      %s69 = sadd.s32 %s68, 1
      %p72 = scmp.eq.s32.totalorder %s13, 1
      %p73 = scmp.ne.s32.totalorder %s68, %s70
      %p74 = scmp.eq.s32.totalorder %s13, 0
      %p75 = por %p73, %p74
      %p76 = scmp.ne.s32.totalorder %s68, %s70
      %p77 = scmp.eq.s32.totalorder %s18, 1
      %p78 = por %p76, %p77
      %p79 = scmp.ne.s32.totalorder %s70, %s71
      %p80 = scmp.eq.s32.totalorder %s18, 0
      %p81 = por %p79, %p80
      %p82 = scmp.ne.s32.totalorder %s70, %s71
      %p83 = scmp.eq.s32.totalorder %s19, 1
      %p84 = por %p82, %p83
      %p86 = scmp.ne.s32.totalorder %s71, %s85
      %p87 = scmp.eq.s32.totalorder %s19, 0
      %p88 = por %p86, %p87
      %s89 = ssub.s32 %s13, %s20
      %p90 = scmp.eq.s32.totalorder %s89, 0
      %s92 = sadd.s32 %s91, 1
      %s93 = scalar_select %p90, %s91, %s92
      %p96 = pneg %p90
      %p97 = scmp.eq.s32.totalorder %s13, 1
      %p98 = por %p96, %p97
      %p99 = scmp.ne.s32.totalorder %s91, %s94
      %p100 = scmp.eq.s32.totalorder %s13, 0
      %p101 = por %p99, %p100
      %p102 = scmp.ne.s32.totalorder %s91, %s94
      %p103 = scmp.eq.s32.totalorder %s18, 1
      %p104 = por %p102, %p103
      %p105 = scmp.ne.s32.totalorder %s94, %s95
      %p106 = scmp.eq.s32.totalorder %s18, 0
      %p107 = por %p105, %p106
      %p108 = scmp.ne.s32.totalorder %s94, %s95
      %p109 = scmp.eq.s32.totalorder %s19, 1
      %p110 = por %p108, %p109
      %p112 = scmp.ne.s32.totalorder %s95, %s111
      %p113 = scmp.eq.s32.totalorder %s19, 0
      %p114 = por %p112, %p113
      %s115 = ssub.s32 %s13, %s20
      %p116 = scmp.eq.s32.totalorder %s115, 0
      %s118 = sadd.s32 %s117, 1
      %s119 = scalar_select %p116, %s117, %s118
      %p122 = pneg %p116
      %p123 = scmp.eq.s32.totalorder %s13, 1
      %p124 = por %p122, %p123
      %p125 = scmp.ne.s32.totalorder %s117, %s120
      %p126 = scmp.eq.s32.totalorder %s13, 0
      %p127 = por %p125, %p126
      %p128 = scmp.ne.s32.totalorder %s117, %s120
      %p129 = scmp.eq.s32.totalorder %s18, 1
      %p130 = por %p128, %p129
      %p131 = scmp.ne.s32.totalorder %s120, %s121
      %p132 = scmp.eq.s32.totalorder %s18, 0
      %p133 = por %p131, %p132
      %p134 = scmp.ne.s32.totalorder %s120, %s121
      %p135 = scmp.eq.s32.totalorder %s19, 1
      %p136 = por %p134, %p135
      %p138 = scmp.ne.s32.totalorder %s121, %s137
      %p139 = scmp.eq.s32.totalorder %s19, 0
      %p140 = por %p138, %p139
      %p141 = scmp.le.s32.totalorder 1, %s13
      %p142 = scmp.lt.s32.totalorder %s13, 3
      %p143 = pnand %p141, %p142
      %p144 = pneg %p143
      // Predicated region
      $region9: #{residual_block_forward.5} parent=5 // pred_check
        _
      $region10: #{residual_block_forward.5} parent=5 // pred_check_branch
        %146 = sbr.rel (%p143) target = $region12
      $region11: #{residual_block_forward.5} parent=5 // pred_region
        %s147 = ssub.s32 %s13, 1
        // Predicated region
        $region13: #{residual_block_forward.5} parent=11 // pred_check
          %p148 = pneg %p60
        $region14: #{residual_block_forward.5} parent=11 // pred_check_branch
          %150 = sbr.rel (%p148) target = $region16
        $region15: #{residual_block_forward.5} parent=11 // pred_region
          _
        $region16: #{residual_block_forward.5} parent=11 // pred_fallthru
          _
        // Predicated region
        $region17: #{residual_block_forward.5} parent=11 // pred_check
          %p151 = pneg %p81
        $region18: #{residual_block_forward.5} parent=11 // pred_check_branch
          %153 = sbr.rel (%p151) target = $region20
        $region19: #{residual_block_forward.5} parent=11 // pred_region
          _
        $region20: #{residual_block_forward.5} parent=11 // pred_fallthru
          _
      $region12: #{residual_block_forward.5} parent=5 // pred_fallthru
        _
      %p154 = scmp.lt.s32.totalorder %s13, 2
      // Predicated region
      $region21: #{residual_block_forward.5} parent=5 // pred_check
        %p155 = pneg %p154
      $region22: #{residual_block_forward.5} parent=5 // pred_check_branch
        %157 = sbr.rel (%p155) target = $region24
      $region23: #{residual_block_forward.5} parent=5 // pred_region
        // Predicated region
        $region25: #{residual_block_forward.5} parent=23 // pred_check
          %p158 = pneg %p33
        $region26: #{residual_block_forward.5} parent=23 // pred_check_branch
          %160 = sbr.rel (%p158) target = $region28
        $region27: #{residual_block_forward.5} parent=23 // pred_region
          %p161 = scmp.lt.s32.totalorder %s13, 1
          %s162 = scalar_select %p161, %s13, 1
          %s163 = smul.addr %s162, 10
          %s164 = smul.addr %s163, 4
          %s165 = scalar_lea.vmem %s0, %s164
        $region28: #{residual_block_forward.5} parent=23 // pred_fallthru
          _
        // Predicated region
        $region29: #{residual_block_forward.5} parent=23 // pred_check
          %p166 = pneg %p101
        $region30: #{residual_block_forward.5} parent=23 // pred_check_branch
          %168 = sbr.rel (%p166) target = $region32
        $region31: #{residual_block_forward.5} parent=23 // pred_region
          %p169 = scmp.lt.s32.totalorder %s13, 1
          %s170 = scalar_select %p169, %s13, 1
          %s171 = smul.addr %s170, 8
          %s172 = smul.addr %s171, 8
          %s173 = scalar_lea.vmem %s3, %s172
        $region32: #{residual_block_forward.5} parent=23 // pred_fallthru
          _
      $region24: #{residual_block_forward.5} parent=5 // pred_fallthru
        _
      %p174 = scmp.le.s32.totalorder 1, %s13
      %p175 = scmp.lt.s32.totalorder %s13, 3
      %p176 = pnand %p174, %p175
      %p177 = pneg %p176
      // Predicated region
      $region33: #{residual_block_forward.5} parent=5 // pred_check
        _
      $region34: #{residual_block_forward.5} parent=5 // pred_check_branch
        %179 = sbr.rel (%p176) target = $region36
      $region35: #{residual_block_forward.5} parent=5 // pred_region
        %s180 = ssub.s32 %s13, 1
        %p181 = scmp.lt.s32.totalorder %s18, 1
        %s182 = scalar_select %p181, %s18, 1
        %s183 = smul.addr %s182, 10
        %s184 = smul.addr %s183, 4
        %s185 = scalar_lea.vmem %s0, %s184
        %p186 = pneg %p39
        %p187 = pneg %p36
        %p188 = pneg %p60
        %p189 = pneg %p57
        %p190 = pneg %p81
        %p191 = pneg %p78
        %p192 = scmp.lt.s32.totalorder %s18, 1
        %s193 = scalar_select %p192, %s18, 1
        %s194 = smul.addr %s193, 8
        %s195 = smul.addr %s194, 8
        %s196 = scalar_lea.vmem %s3, %s195
        %p197 = pneg %p107
        %p198 = pneg %p104
        %p199 = pneg %p133
        %p200 = pneg %p130
        %s201 = sand.u32 %s120, 1
        %s202 = scalar_lea.sflag [#allocation3], %s201
        %s203 = sand.u32 %s120, 1
        %s204 = smul.addr %s203, 64
        %s205 = scalar_lea.vmem [#allocation2], %s204
        %p206 = scmp.lt.s32.totalorder %s18, 1
        %s207 = scalar_select %p206, %s18, 1
        %s208 = smul.addr %s207, 10
        %s209 = smul.addr %s208, 4
        %s210 = scalar_lea.vmem %s0, %s209
        %p211 = scmp.lt.s32.totalorder %s18, 1
        %s212 = scalar_select %p211, %s18, 1
        %s213 = smul.addr %s212, 8
        %s214 = smul.addr %s213, 8
        %s215 = scalar_lea.vmem %s3, %s214
        %v216 = vld [vmem:[%s210 + $0x4] sm:$0xf]
        %v217 = vunpack.c.l.bf16 %v216
        %v218 = vld [vmem:[%s1] sm:$0xff]
        %220 = vset.pattern.permute.xlu0 0
        %221 = vperm.xlu0 %220, %v218
        %v222 = vpop.permute.xlu0 %221
        %v224 = vmul.f32 %v217, %v222
        %v225 = vld [vmem:[%s2] sm:$0xff]
        %227 = vset.pattern.permute.xlu0 0
        %228 = vperm.xlu0 %227, %v225
        %v229 = vpop.permute.xlu0 %228
        %v231 = vadd.f32 %v224, %v229
        %v232 = vld [vmem:[%s215] sm:$0x1]
        %v233 = vld [vmem:[%s215 + $0x10] sm:$0x1]
        %v234 = vld [vmem:[%s215 + $0x20] sm:$0x1]
        %v235 = vld [vmem:[%s215 + $0x30] sm:$0x1]
        %v237 = vrot.slane %v231, 1
        %v238 = vrot.slane %v231, 2
        %v239 = vrot.slane %v231, 3
        %240 = vrot.lane.b32.xlu0 %v231, 109
        %v241 = vpop.permute.xlu0 %240
        %242 = vrot.lane.b32.xlu0 %v237, 109
        %v243 = vpop.permute.xlu0 %242
        %244 = vrot.lane.b32.xlu0 %v238, 109
        %v245 = vpop.permute.xlu0 %244
        %246 = vrot.lane.b32.xlu0 %v239, 109
        %v247 = vpop.permute.xlu0 %246
        %v252 = vadd.f32 %v232, %v241
        %v253 = vadd.f32 %v233, %v243
        %v254 = vadd.f32 %v234, %v245
        %v255 = vadd.f32 %v235, %v247
        %vm256 = vcmask 122880
        %257 = vst.msk [vmem:[%s205] sm:$0x1] %vm256, %v252
        %258 = vst.msk [vmem:[%s205 + $0x10] sm:$0x1] %vm256, %v253
        %259 = vst.msk [vmem:[%s205 + $0x20] sm:$0x1] %vm256, %v254
        %260 = vst.msk [vmem:[%s205 + $0x30] sm:$0x1] %vm256, %v255
        %v261 = vld [vmem:[%s210 + $0x4] sm:$0xf]
        %v262 = vunpack.c.l.bf16 %v261
        %v263 = vld [vmem:[%s1] sm:$0xff]
        %265 = vset.pattern.permute.xlu0 0
        %266 = vperm.xlu0 %265, %v263
        %v267 = vpop.permute.xlu0 %266
        %v269 = vmul.f32 %v262, %v267
        %v270 = vld [vmem:[%s2] sm:$0xff]
        %272 = vset.pattern.permute.xlu0 0
        %273 = vperm.xlu0 %272, %v270
        %v274 = vpop.permute.xlu0 %273
        %v276 = vadd.f32 %v269, %v274
        %v277 = vld [vmem:[%s215 + $0x1] sm:$0x1]
        %v278 = vld [vmem:[%s215 + $0x11] sm:$0x1]
        %v279 = vld [vmem:[%s215 + $0x21] sm:$0x1]
        %v280 = vld [vmem:[%s215 + $0x31] sm:$0x1]
        %v282 = vrot.slane %v276, 1
        %v283 = vrot.slane %v276, 2
        %v284 = vrot.slane %v276, 3
        %285 = vrot.lane.b32.xlu0 %v276, 91
        %v286 = vpop.permute.xlu0 %285
        %287 = vrot.lane.b32.xlu0 %v282, 91
        %v288 = vpop.permute.xlu0 %287
        %289 = vrot.lane.b32.xlu0 %v283, 91
        %v290 = vpop.permute.xlu0 %289
        %291 = vrot.lane.b32.xlu0 %v284, 91
        %v292 = vpop.permute.xlu0 %291
        %v297 = vadd.f32 %v277, %v286
        %v298 = vadd.f32 %v278, %v288
        %v299 = vadd.f32 %v279, %v290
        %v300 = vadd.f32 %v280, %v292
        %301 = vst.msk [vmem:[%s205 + $0x1] sm:$0x1] %vm256, %v297
        %302 = vst.msk [vmem:[%s205 + $0x11] sm:$0x1] %vm256, %v298
        %303 = vst.msk [vmem:[%s205 + $0x21] sm:$0x1] %vm256, %v299
        %304 = vst.msk [vmem:[%s205 + $0x31] sm:$0x1] %vm256, %v300
        %v305 = vld [vmem:[%s210 + $0x4] sm:$0xf]
        %v306 = vunpack.c.l.bf16 %v305
        %v307 = vld [vmem:[%s1] sm:$0xff]
        %309 = vset.pattern.permute.xlu0 0
        %310 = vperm.xlu0 %309, %v307
        %v311 = vpop.permute.xlu0 %310
        %v313 = vmul.f32 %v306, %v311
        %v314 = vld [vmem:[%s2] sm:$0xff]
        %316 = vset.pattern.permute.xlu0 0
        %317 = vperm.xlu0 %316, %v314
        %v318 = vpop.permute.xlu0 %317
        %v320 = vadd.f32 %v313, %v318
        %v321 = vld [vmem:[%s215 + $0x2] sm:$0x1]
        %v322 = vld [vmem:[%s215 + $0x12] sm:$0x1]
        %v323 = vld [vmem:[%s215 + $0x22] sm:$0x1]
        %v324 = vld [vmem:[%s215 + $0x32] sm:$0x1]
        %v326 = vrot.slane %v320, 1
        %v327 = vrot.slane %v320, 2
        %v328 = vrot.slane %v320, 3
        %329 = vrot.lane.b32.xlu0 %v320, 73
        %v330 = vpop.permute.xlu0 %329
        %331 = vrot.lane.b32.xlu0 %v326, 73
        %v332 = vpop.permute.xlu0 %331
        %333 = vrot.lane.b32.xlu0 %v327, 73
        %v334 = vpop.permute.xlu0 %333
        %335 = vrot.lane.b32.xlu0 %v328, 73
        %v336 = vpop.permute.xlu0 %335
        %v341 = vadd.f32 %v321, %v330
        %v342 = vadd.f32 %v322, %v332
        %v343 = vadd.f32 %v323, %v334
        %v344 = vadd.f32 %v324, %v336
        %345 = vst.msk [vmem:[%s205 + $0x2] sm:$0x1] %vm256, %v341
        %346 = vst.msk [vmem:[%s205 + $0x12] sm:$0x1] %vm256, %v342
        %347 = vst.msk [vmem:[%s205 + $0x22] sm:$0x1] %vm256, %v343
        %348 = vst.msk [vmem:[%s205 + $0x32] sm:$0x1] %vm256, %v344
        %v349 = vld [vmem:[%s210 + $0x4] sm:$0xf]
        %v350 = vunpack.c.l.bf16 %v349
        %v351 = vld [vmem:[%s1] sm:$0xff]
        %353 = vset.pattern.permute.xlu0 0
        %354 = vperm.xlu0 %353, %v351
        %v355 = vpop.permute.xlu0 %354
        %v357 = vmul.f32 %v350, %v355
        %v358 = vld [vmem:[%s2] sm:$0xff]
        %360 = vset.pattern.permute.xlu0 0
        %361 = vperm.xlu0 %360, %v358
        %v362 = vpop.permute.xlu0 %361
        %v364 = vadd.f32 %v357, %v362
        %v365 = vld [vmem:[%s215 + $0x3] sm:$0x1]
        %v366 = vld [vmem:[%s215 + $0x13] sm:$0x1]
        %v367 = vld [vmem:[%s215 + $0x23] sm:$0x1]
        %v368 = vld [vmem:[%s215 + $0x33] sm:$0x1]
        %v370 = vrot.slane %v364, 1
        %v371 = vrot.slane %v364, 2
        %v372 = vrot.slane %v364, 3
        %373 = vrot.lane.b32.xlu0 %v364, 55
        %v374 = vpop.permute.xlu0 %373
        %375 = vrot.lane.b32.xlu0 %v370, 55
        %v376 = vpop.permute.xlu0 %375
        %377 = vrot.lane.b32.xlu0 %v371, 55
        %v378 = vpop.permute.xlu0 %377
        %379 = vrot.lane.b32.xlu0 %v372, 55
        %v380 = vpop.permute.xlu0 %379
        %v385 = vadd.f32 %v365, %v374
        %v386 = vadd.f32 %v366, %v376
        %v387 = vadd.f32 %v367, %v378
        %v388 = vadd.f32 %v368, %v380
        %389 = vst.msk [vmem:[%s205 + $0x3] sm:$0x1] %vm256, %v385
        %390 = vst.msk [vmem:[%s205 + $0x13] sm:$0x1] %vm256, %v386
        %391 = vst.msk [vmem:[%s205 + $0x23] sm:$0x1] %vm256, %v387
        %392 = vst.msk [vmem:[%s205 + $0x33] sm:$0x1] %vm256, %v388
        %v393 = vld [vmem:[%s210 + $0x4] sm:$0xf]
        %v394 = vunpack.c.l.bf16 %v393
        %v395 = vld [vmem:[%s1] sm:$0xff]
        %397 = vset.pattern.permute.xlu0 0
        %398 = vperm.xlu0 %397, %v395
        %v399 = vpop.permute.xlu0 %398
        %v401 = vmul.f32 %v394, %v399
        %v402 = vld [vmem:[%s2] sm:$0xff]
        %404 = vset.pattern.permute.xlu0 0
        %405 = vperm.xlu0 %404, %v402
        %v406 = vpop.permute.xlu0 %405
        %v408 = vadd.f32 %v401, %v406
        %v409 = vld [vmem:[%s215 + $0x4] sm:$0x1]
        %v410 = vld [vmem:[%s215 + $0x14] sm:$0x1]
        %v411 = vld [vmem:[%s215 + $0x24] sm:$0x1]
        %v412 = vld [vmem:[%s215 + $0x34] sm:$0x1]
        %v414 = vrot.slane %v408, 1
        %v415 = vrot.slane %v408, 2
        %v416 = vrot.slane %v408, 3
        %417 = vrot.lane.b32.xlu0 %v408, 37
        %v418 = vpop.permute.xlu0 %417
        %419 = vrot.lane.b32.xlu0 %v414, 37
        %v420 = vpop.permute.xlu0 %419
        %421 = vrot.lane.b32.xlu0 %v415, 37
        %v422 = vpop.permute.xlu0 %421
        %423 = vrot.lane.b32.xlu0 %v416, 37
        %v424 = vpop.permute.xlu0 %423
        %v429 = vadd.f32 %v409, %v418
        %v430 = vadd.f32 %v410, %v420
        %v431 = vadd.f32 %v411, %v422
        %v432 = vadd.f32 %v412, %v424
        %433 = vst.msk [vmem:[%s205 + $0x4] sm:$0x1] %vm256, %v429
        %434 = vst.msk [vmem:[%s205 + $0x14] sm:$0x1] %vm256, %v430
        %435 = vst.msk [vmem:[%s205 + $0x24] sm:$0x1] %vm256, %v431
        %436 = vst.msk [vmem:[%s205 + $0x34] sm:$0x1] %vm256, %v432
        %v437 = vld [vmem:[%s210 + $0x4] sm:$0xf]
        %v438 = vunpack.c.l.bf16 %v437
        %v439 = vld [vmem:[%s1] sm:$0xff]
        %441 = vset.pattern.permute.xlu0 0
        %442 = vperm.xlu0 %441, %v439
        %v443 = vpop.permute.xlu0 %442
        %v445 = vmul.f32 %v438, %v443
        %v446 = vld [vmem:[%s2] sm:$0xff]
        %448 = vset.pattern.permute.xlu0 0
        %449 = vperm.xlu0 %448, %v446
        %v450 = vpop.permute.xlu0 %449
        %v452 = vadd.f32 %v445, %v450
        %v453 = vld [vmem:[%s215 + $0x5] sm:$0x1]
        %v454 = vld [vmem:[%s215 + $0x15] sm:$0x1]
        %v455 = vld [vmem:[%s215 + $0x25] sm:$0x1]
        %v456 = vld [vmem:[%s215 + $0x35] sm:$0x1]
        %v458 = vrot.slane %v452, 1
        %v459 = vrot.slane %v452, 2
        %v460 = vrot.slane %v452, 3
        %461 = vrot.lane.b32.xlu0 %v452, 19
        %v462 = vpop.permute.xlu0 %461
        %463 = vrot.lane.b32.xlu0 %v458, 19
        %v464 = vpop.permute.xlu0 %463
        %465 = vrot.lane.b32.xlu0 %v459, 19
        %v466 = vpop.permute.xlu0 %465
        %467 = vrot.lane.b32.xlu0 %v460, 19
        %v468 = vpop.permute.xlu0 %467
        %v473 = vadd.f32 %v453, %v462
        %v474 = vadd.f32 %v454, %v464
        %v475 = vadd.f32 %v455, %v466
        %v476 = vadd.f32 %v456, %v468
        %477 = vst.msk [vmem:[%s205 + $0x5] sm:$0x1] %vm256, %v473
        %478 = vst.msk [vmem:[%s205 + $0x15] sm:$0x1] %vm256, %v474
        %479 = vst.msk [vmem:[%s205 + $0x25] sm:$0x1] %vm256, %v475
        %480 = vst.msk [vmem:[%s205 + $0x35] sm:$0x1] %vm256, %v476
        %v481 = vld [vmem:[%s210 + $0x4] sm:$0xff]
        %v482 = vunpack.c.l.bf16 %v481
        %v483 = vunpack.c.h.bf16 %v481
        %v484 = vld [vmem:[%s1] sm:$0xff]
        %486 = vset.pattern.permute.xlu0 0
        %487 = vperm.xlu0 %486, %v484
        %v488 = vpop.permute.xlu0 %487
        %v490 = vmul.f32 %v482, %v488
        %v491 = vmul.f32 %v483, %v488
        %v492 = vld [vmem:[%s2] sm:$0xff]
        %494 = vset.pattern.permute.xlu0 0
        %495 = vperm.xlu0 %494, %v492
        %v496 = vpop.permute.xlu0 %495
        %v498 = vadd.f32 %v490, %v496
        %v499 = vadd.f32 %v491, %v496
        %v500 = vld [vmem:[%s215 + $0x6] sm:$0x1]
        %v501 = vld [vmem:[%s215 + $0x16] sm:$0x1]
        %v502 = vld [vmem:[%s215 + $0x26] sm:$0x1]
        %v503 = vld [vmem:[%s215 + $0x36] sm:$0x1]
        %v506 = vrot.slane %v498, 1
        %v507 = vrot.slane %v499, 1
        %v508 = vrot.slane %v498, 2
        %v509 = vrot.slane %v499, 2
        %v510 = vrot.slane %v498, 3
        %v511 = vrot.slane %v499, 3
        %512 = vrot.lane.b32.xlu0 %v498, 1
        %v513 = vpop.permute.xlu0 %512
        %514 = vrot.lane.b32.xlu0 %v499, 1
        %v515 = vpop.permute.xlu0 %514
        %516 = vrot.lane.b32.xlu0 %v506, 1
        %v517 = vpop.permute.xlu0 %516
        %518 = vrot.lane.b32.xlu0 %v507, 1
        %v519 = vpop.permute.xlu0 %518
        %520 = vrot.lane.b32.xlu0 %v508, 1
        %v521 = vpop.permute.xlu0 %520
        %522 = vrot.lane.b32.xlu0 %v509, 1
        %v523 = vpop.permute.xlu0 %522
        %524 = vrot.lane.b32.xlu0 %v510, 1
        %v525 = vpop.permute.xlu0 %524
        %526 = vrot.lane.b32.xlu0 %v511, 1
        %v527 = vpop.permute.xlu0 %526
        %vm528 = vcmask 7168
        %v529 = vsel %vm528, %v513, %v515
        %v530 = vsel %vm528, %v517, %v519
        %v531 = vsel %vm528, %v521, %v523
        %v532 = vsel %vm528, %v525, %v527
        %v537 = vadd.f32 %v500, %v529
        %v538 = vadd.f32 %v501, %v530
        %v539 = vadd.f32 %v502, %v531
        %v540 = vadd.f32 %v503, %v532
        %541 = vst.msk [vmem:[%s205 + $0x6] sm:$0x1] %vm256, %v537
        %542 = vst.msk [vmem:[%s205 + $0x16] sm:$0x1] %vm256, %v538
        %543 = vst.msk [vmem:[%s205 + $0x26] sm:$0x1] %vm256, %v539
        %544 = vst.msk [vmem:[%s205 + $0x36] sm:$0x1] %vm256, %v540
        %v545 = vld [vmem:[%s210 + $0x8] sm:$0xf]
        %v546 = vunpack.c.l.bf16 %v545
        %v547 = vld [vmem:[%s1] sm:$0xff]
        %549 = vset.pattern.permute.xlu0 0
        %550 = vperm.xlu0 %549, %v547
        %v551 = vpop.permute.xlu0 %550
        %v553 = vmul.f32 %v546, %v551
        %v554 = vld [vmem:[%s2] sm:$0xff]
        %556 = vset.pattern.permute.xlu0 0
        %557 = vperm.xlu0 %556, %v554
        %v558 = vpop.permute.xlu0 %557
        %v560 = vadd.f32 %v553, %v558
        %v561 = vld [vmem:[%s215 + $0x7] sm:$0x1]
        %v562 = vld [vmem:[%s215 + $0x17] sm:$0x1]
        %v563 = vld [vmem:[%s215 + $0x27] sm:$0x1]
        %v564 = vld [vmem:[%s215 + $0x37] sm:$0x1]
        %v566 = vrot.slane %v560, 1
        %v567 = vrot.slane %v560, 2
        %v568 = vrot.slane %v560, 3
        %569 = vrot.lane.b32.xlu0 %v560, 111
        %v570 = vpop.permute.xlu0 %569
        %571 = vrot.lane.b32.xlu0 %v566, 111
        %v572 = vpop.permute.xlu0 %571
        %573 = vrot.lane.b32.xlu0 %v567, 111
        %v574 = vpop.permute.xlu0 %573
        %575 = vrot.lane.b32.xlu0 %v568, 111
        %v576 = vpop.permute.xlu0 %575
        %v581 = vadd.f32 %v561, %v570
        %v582 = vadd.f32 %v562, %v572
        %v583 = vadd.f32 %v563, %v574
        %v584 = vadd.f32 %v564, %v576
        %585 = vst.msk [vmem:[%s205 + $0x7] sm:$0x1] %vm256, %v581
        %586 = vst.msk [vmem:[%s205 + $0x17] sm:$0x1] %vm256, %v582
        %587 = vst.msk [vmem:[%s205 + $0x27] sm:$0x1] %vm256, %v583
        %588 = vst.msk [vmem:[%s205 + $0x37] sm:$0x1] %vm256, %v584
        %v589 = vld [vmem:[%s210 + $0x8] sm:$0xf]
        %v590 = vunpack.c.l.bf16 %v589
        %v591 = vld [vmem:[%s1] sm:$0xff]
        %593 = vset.pattern.permute.xlu0 0
        %594 = vperm.xlu0 %593, %v591
        %v595 = vpop.permute.xlu0 %594
        %v597 = vmul.f32 %v590, %v595
        %v598 = vld [vmem:[%s2] sm:$0xff]
        %600 = vset.pattern.permute.xlu0 0
        %601 = vperm.xlu0 %600, %v598
        %v602 = vpop.permute.xlu0 %601
        %v604 = vadd.f32 %v597, %v602
        %v605 = vld [vmem:[%s215 + $0x8] sm:$0x1]
        %v606 = vld [vmem:[%s215 + $0x18] sm:$0x1]
        %v607 = vld [vmem:[%s215 + $0x28] sm:$0x1]
        %v608 = vld [vmem:[%s215 + $0x38] sm:$0x1]
        %v610 = vrot.slane %v604, 1
        %v611 = vrot.slane %v604, 2
        %v612 = vrot.slane %v604, 3
        %613 = vrot.lane.b32.xlu0 %v604, 93
        %v614 = vpop.permute.xlu0 %613
        %615 = vrot.lane.b32.xlu0 %v610, 93
        %v616 = vpop.permute.xlu0 %615
        %617 = vrot.lane.b32.xlu0 %v611, 93
        %v618 = vpop.permute.xlu0 %617
        %619 = vrot.lane.b32.xlu0 %v612, 93
        %v620 = vpop.permute.xlu0 %619
        %v625 = vadd.f32 %v605, %v614
        %v626 = vadd.f32 %v606, %v616
        %v627 = vadd.f32 %v607, %v618
        %v628 = vadd.f32 %v608, %v620
        %629 = vst.msk [vmem:[%s205 + $0x8] sm:$0x1] %vm256, %v625
        %630 = vst.msk [vmem:[%s205 + $0x18] sm:$0x1] %vm256, %v626
        %631 = vst.msk [vmem:[%s205 + $0x28] sm:$0x1] %vm256, %v627
        %632 = vst.msk [vmem:[%s205 + $0x38] sm:$0x1] %vm256, %v628
        %v633 = vld [vmem:[%s210 + $0x8] sm:$0xf]
        %v634 = vunpack.c.l.bf16 %v633
        %v635 = vld [vmem:[%s1] sm:$0xff]
        %637 = vset.pattern.permute.xlu0 0
        %638 = vperm.xlu0 %637, %v635
        %v639 = vpop.permute.xlu0 %638
        %v641 = vmul.f32 %v634, %v639
        %v642 = vld [vmem:[%s2] sm:$0xff]
        %644 = vset.pattern.permute.xlu0 0
        %645 = vperm.xlu0 %644, %v642
        %v646 = vpop.permute.xlu0 %645
        %v648 = vadd.f32 %v641, %v646
        %v649 = vld [vmem:[%s215 + $0x9] sm:$0x1]
        %v650 = vld [vmem:[%s215 + $0x19] sm:$0x1]
        %v651 = vld [vmem:[%s215 + $0x29] sm:$0x1]
        %v652 = vld [vmem:[%s215 + $0x39] sm:$0x1]
        %v654 = vrot.slane %v648, 1
        %v655 = vrot.slane %v648, 2
        %v656 = vrot.slane %v648, 3
        %657 = vrot.lane.b32.xlu0 %v648, 75
        %v658 = vpop.permute.xlu0 %657
        %659 = vrot.lane.b32.xlu0 %v654, 75
        %v660 = vpop.permute.xlu0 %659
        %661 = vrot.lane.b32.xlu0 %v655, 75
        %v662 = vpop.permute.xlu0 %661
        %663 = vrot.lane.b32.xlu0 %v656, 75
        %v664 = vpop.permute.xlu0 %663
        %v669 = vadd.f32 %v649, %v658
        %v670 = vadd.f32 %v650, %v660
        %v671 = vadd.f32 %v651, %v662
        %v672 = vadd.f32 %v652, %v664
        %673 = vst.msk [vmem:[%s205 + $0x9] sm:$0x1] %vm256, %v669
        %674 = vst.msk [vmem:[%s205 + $0x19] sm:$0x1] %vm256, %v670
        %675 = vst.msk [vmem:[%s205 + $0x29] sm:$0x1] %vm256, %v671
        %676 = vst.msk [vmem:[%s205 + $0x39] sm:$0x1] %vm256, %v672
        %v677 = vld [vmem:[%s210 + $0x8] sm:$0xf]
        %v678 = vunpack.c.l.bf16 %v677
        %v679 = vld [vmem:[%s1] sm:$0xff]
        %681 = vset.pattern.permute.xlu0 0
        %682 = vperm.xlu0 %681, %v679
        %v683 = vpop.permute.xlu0 %682
        %v685 = vmul.f32 %v678, %v683
        %v686 = vld [vmem:[%s2] sm:$0xff]
        %688 = vset.pattern.permute.xlu0 0
        %689 = vperm.xlu0 %688, %v686
        %v690 = vpop.permute.xlu0 %689
        %v692 = vadd.f32 %v685, %v690
        %v693 = vld [vmem:[%s215 + $0xa] sm:$0x1]
        %v694 = vld [vmem:[%s215 + $0x1a] sm:$0x1]
        %v695 = vld [vmem:[%s215 + $0x2a] sm:$0x1]
        %v696 = vld [vmem:[%s215 + $0x3a] sm:$0x1]
        %v698 = vrot.slane %v692, 1
        %v699 = vrot.slane %v692, 2
        %v700 = vrot.slane %v692, 3
        %701 = vrot.lane.b32.xlu0 %v692, 57
        %v702 = vpop.permute.xlu0 %701
        %703 = vrot.lane.b32.xlu0 %v698, 57
        %v704 = vpop.permute.xlu0 %703
        %705 = vrot.lane.b32.xlu0 %v699, 57
        %v706 = vpop.permute.xlu0 %705
        %707 = vrot.lane.b32.xlu0 %v700, 57
        %v708 = vpop.permute.xlu0 %707
        %v713 = vadd.f32 %v693, %v702
        %v714 = vadd.f32 %v694, %v704
        %v715 = vadd.f32 %v695, %v706
        %v716 = vadd.f32 %v696, %v708
        %717 = vst.msk [vmem:[%s205 + $0xa] sm:$0x1] %vm256, %v713
        %718 = vst.msk [vmem:[%s205 + $0x1a] sm:$0x1] %vm256, %v714
        %719 = vst.msk [vmem:[%s205 + $0x2a] sm:$0x1] %vm256, %v715
        %720 = vst.msk [vmem:[%s205 + $0x3a] sm:$0x1] %vm256, %v716
        %v721 = vld [vmem:[%s210 + $0x8] sm:$0xf]
        %v722 = vunpack.c.l.bf16 %v721
        %v723 = vld [vmem:[%s1] sm:$0xff]
        %725 = vset.pattern.permute.xlu0 0
        %726 = vperm.xlu0 %725, %v723
        %v727 = vpop.permute.xlu0 %726
        %v729 = vmul.f32 %v722, %v727
        %v730 = vld [vmem:[%s2] sm:$0xff]
        %732 = vset.pattern.permute.xlu0 0
        %733 = vperm.xlu0 %732, %v730
        %v734 = vpop.permute.xlu0 %733
        %v736 = vadd.f32 %v729, %v734
        %v737 = vld [vmem:[%s215 + $0xb] sm:$0x1]
        %v738 = vld [vmem:[%s215 + $0x1b] sm:$0x1]
        %v739 = vld [vmem:[%s215 + $0x2b] sm:$0x1]
        %v740 = vld [vmem:[%s215 + $0x3b] sm:$0x1]
        %v742 = vrot.slane %v736, 1
        %v743 = vrot.slane %v736, 2
        %v744 = vrot.slane %v736, 3
        %745 = vrot.lane.b32.xlu0 %v736, 39
        %v746 = vpop.permute.xlu0 %745
        %747 = vrot.lane.b32.xlu0 %v742, 39
        %v748 = vpop.permute.xlu0 %747
        %749 = vrot.lane.b32.xlu0 %v743, 39
        %v750 = vpop.permute.xlu0 %749
        %751 = vrot.lane.b32.xlu0 %v744, 39
        %v752 = vpop.permute.xlu0 %751
        %v757 = vadd.f32 %v737, %v746
        %v758 = vadd.f32 %v738, %v748
        %v759 = vadd.f32 %v739, %v750
        %v760 = vadd.f32 %v740, %v752
        %761 = vst.msk [vmem:[%s205 + $0xb] sm:$0x1] %vm256, %v757
        %762 = vst.msk [vmem:[%s205 + $0x1b] sm:$0x1] %vm256, %v758
        %763 = vst.msk [vmem:[%s205 + $0x2b] sm:$0x1] %vm256, %v759
        %764 = vst.msk [vmem:[%s205 + $0x3b] sm:$0x1] %vm256, %v760
        %v765 = vld [vmem:[%s210 + $0x8] sm:$0xf]
        %v766 = vunpack.c.l.bf16 %v765
        %v767 = vld [vmem:[%s1] sm:$0xff]
        %769 = vset.pattern.permute.xlu0 0
        %770 = vperm.xlu0 %769, %v767
        %v771 = vpop.permute.xlu0 %770
        %v773 = vmul.f32 %v766, %v771
        %v774 = vld [vmem:[%s2] sm:$0xff]
        %776 = vset.pattern.permute.xlu0 0
        %777 = vperm.xlu0 %776, %v774
        %v778 = vpop.permute.xlu0 %777
        %v780 = vadd.f32 %v773, %v778
        %v781 = vld [vmem:[%s215 + $0xc] sm:$0x1]
        %v782 = vld [vmem:[%s215 + $0x1c] sm:$0x1]
        %v783 = vld [vmem:[%s215 + $0x2c] sm:$0x1]
        %v784 = vld [vmem:[%s215 + $0x3c] sm:$0x1]
        %v786 = vrot.slane %v780, 1
        %v787 = vrot.slane %v780, 2
        %v788 = vrot.slane %v780, 3
        %789 = vrot.lane.b32.xlu0 %v780, 21
        %v790 = vpop.permute.xlu0 %789
        %791 = vrot.lane.b32.xlu0 %v786, 21
        %v792 = vpop.permute.xlu0 %791
        %793 = vrot.lane.b32.xlu0 %v787, 21
        %v794 = vpop.permute.xlu0 %793
        %795 = vrot.lane.b32.xlu0 %v788, 21
        %v796 = vpop.permute.xlu0 %795
        %v801 = vadd.f32 %v781, %v790
        %v802 = vadd.f32 %v782, %v792
        %v803 = vadd.f32 %v783, %v794
        %v804 = vadd.f32 %v784, %v796
        %805 = vst.msk [vmem:[%s205 + $0xc] sm:$0x1] %vm256, %v801
        %806 = vst.msk [vmem:[%s205 + $0x1c] sm:$0x1] %vm256, %v802
        %807 = vst.msk [vmem:[%s205 + $0x2c] sm:$0x1] %vm256, %v803
        %808 = vst.msk [vmem:[%s205 + $0x3c] sm:$0x1] %vm256, %v804
        %v809 = vld [vmem:[%s210 + $0x8] sm:$0xff]
        %v810 = vunpack.c.l.bf16 %v809
        %v811 = vunpack.c.h.bf16 %v809
        %v812 = vld [vmem:[%s1] sm:$0xff]
        %814 = vset.pattern.permute.xlu0 0
        %815 = vperm.xlu0 %814, %v812
        %v816 = vpop.permute.xlu0 %815
        %v818 = vmul.f32 %v810, %v816
        %v819 = vmul.f32 %v811, %v816
        %v820 = vld [vmem:[%s2] sm:$0xff]
        %822 = vset.pattern.permute.xlu0 0
        %823 = vperm.xlu0 %822, %v820
        %v824 = vpop.permute.xlu0 %823
        %v826 = vadd.f32 %v818, %v824
        %v827 = vadd.f32 %v819, %v824
        %v828 = vld [vmem:[%s215 + $0xd] sm:$0x1]
        %v829 = vld [vmem:[%s215 + $0x1d] sm:$0x1]
        %v830 = vld [vmem:[%s215 + $0x2d] sm:$0x1]
        %v831 = vld [vmem:[%s215 + $0x3d] sm:$0x1]
        %v834 = vrot.slane %v826, 1
        %v835 = vrot.slane %v827, 1
        %v836 = vrot.slane %v826, 2
        %v837 = vrot.slane %v827, 2
        %v838 = vrot.slane %v826, 3
        %v839 = vrot.slane %v827, 3
        %840 = vrot.lane.b32.xlu0 %v826, 3
        %v841 = vpop.permute.xlu0 %840
        %842 = vrot.lane.b32.xlu0 %v827, 3
        %v843 = vpop.permute.xlu0 %842
        %844 = vrot.lane.b32.xlu0 %v834, 3
        %v845 = vpop.permute.xlu0 %844
        %846 = vrot.lane.b32.xlu0 %v835, 3
        %v847 = vpop.permute.xlu0 %846
        %848 = vrot.lane.b32.xlu0 %v836, 3
        %v849 = vpop.permute.xlu0 %848
        %850 = vrot.lane.b32.xlu0 %v837, 3
        %v851 = vpop.permute.xlu0 %850
        %852 = vrot.lane.b32.xlu0 %v838, 3
        %v853 = vpop.permute.xlu0 %852
        %854 = vrot.lane.b32.xlu0 %v839, 3
        %v855 = vpop.permute.xlu0 %854
        %vm856 = vcmask 23552
        %v857 = vsel %vm856, %v841, %v843
        %v858 = vsel %vm856, %v845, %v847
        %v859 = vsel %vm856, %v849, %v851
        %v860 = vsel %vm856, %v853, %v855
        %v865 = vadd.f32 %v828, %v857
        %v866 = vadd.f32 %v829, %v858
        %v867 = vadd.f32 %v830, %v859
        %v868 = vadd.f32 %v831, %v860
        %869 = vst.msk [vmem:[%s205 + $0xd] sm:$0x1] %vm256, %v865
        %870 = vst.msk [vmem:[%s205 + $0x1d] sm:$0x1] %vm256, %v866
        %871 = vst.msk [vmem:[%s205 + $0x2d] sm:$0x1] %vm256, %v867
        %872 = vst.msk [vmem:[%s205 + $0x3d] sm:$0x1] %vm256, %v868
        %v873 = vld [vmem:[%s210 + $0xc] sm:$0xf]
        %v874 = vunpack.c.l.bf16 %v873
        %v875 = vld [vmem:[%s1] sm:$0xff]
        %877 = vset.pattern.permute.xlu0 0
        %878 = vperm.xlu0 %877, %v875
        %v879 = vpop.permute.xlu0 %878
        %v881 = vmul.f32 %v874, %v879
        %v882 = vld [vmem:[%s2] sm:$0xff]
        %884 = vset.pattern.permute.xlu0 0
        %885 = vperm.xlu0 %884, %v882
        %v886 = vpop.permute.xlu0 %885
        %v888 = vadd.f32 %v881, %v886
        %v889 = vld [vmem:[%s215 + $0xe] sm:$0x1]
        %v890 = vld [vmem:[%s215 + $0x1e] sm:$0x1]
        %v891 = vld [vmem:[%s215 + $0x2e] sm:$0x1]
        %v892 = vld [vmem:[%s215 + $0x3e] sm:$0x1]
        %v894 = vrot.slane %v888, 1
        %v895 = vrot.slane %v888, 2
        %v896 = vrot.slane %v888, 3
        %897 = vrot.lane.b32.xlu0 %v888, 113
        %v898 = vpop.permute.xlu0 %897
        %899 = vrot.lane.b32.xlu0 %v894, 113
        %v900 = vpop.permute.xlu0 %899
        %901 = vrot.lane.b32.xlu0 %v895, 113
        %v902 = vpop.permute.xlu0 %901
        %903 = vrot.lane.b32.xlu0 %v896, 113
        %v904 = vpop.permute.xlu0 %903
        %v909 = vadd.f32 %v889, %v898
        %v910 = vadd.f32 %v890, %v900
        %v911 = vadd.f32 %v891, %v902
        %v912 = vadd.f32 %v892, %v904
        %913 = vst.msk [vmem:[%s205 + $0xe] sm:$0x1] %vm256, %v909
        %914 = vst.msk [vmem:[%s205 + $0x1e] sm:$0x1] %vm256, %v910
        %915 = vst.msk [vmem:[%s205 + $0x2e] sm:$0x1] %vm256, %v911
        %916 = vst.msk [vmem:[%s205 + $0x3e] sm:$0x1] %vm256, %v912
        %v917 = vld [vmem:[%s210 + $0xc] sm:$0xf]
        %v918 = vunpack.c.l.bf16 %v917
        %v919 = vld [vmem:[%s1] sm:$0xff]
        %921 = vset.pattern.permute.xlu0 0
        %922 = vperm.xlu0 %921, %v919
        %v923 = vpop.permute.xlu0 %922
        %v925 = vmul.f32 %v918, %v923
        %v926 = vld [vmem:[%s2] sm:$0xff]
        %928 = vset.pattern.permute.xlu0 0
        %929 = vperm.xlu0 %928, %v926
        %v930 = vpop.permute.xlu0 %929
        %v932 = vadd.f32 %v925, %v930
        %v933 = vld [vmem:[%s215 + $0xf] sm:$0x1]
        %v934 = vld [vmem:[%s215 + $0x1f] sm:$0x1]
        %v935 = vld [vmem:[%s215 + $0x2f] sm:$0x1]
        %v936 = vld [vmem:[%s215 + $0x3f] sm:$0x1]
        %v938 = vrot.slane %v932, 1
        %v939 = vrot.slane %v932, 2
        %v940 = vrot.slane %v932, 3
        %941 = vrot.lane.b32.xlu0 %v932, 95
        %v942 = vpop.permute.xlu0 %941
        %943 = vrot.lane.b32.xlu0 %v938, 95
        %v944 = vpop.permute.xlu0 %943
        %945 = vrot.lane.b32.xlu0 %v939, 95
        %v946 = vpop.permute.xlu0 %945
        %947 = vrot.lane.b32.xlu0 %v940, 95
        %v948 = vpop.permute.xlu0 %947
        %v953 = vadd.f32 %v933, %v942
        %v954 = vadd.f32 %v934, %v944
        %v955 = vadd.f32 %v935, %v946
        %v956 = vadd.f32 %v936, %v948
        %957 = vst.msk [vmem:[%s205 + $0xf] sm:$0x1] %vm256, %v953
        %958 = vst.msk [vmem:[%s205 + $0x1f] sm:$0x1] %vm256, %v954
        %959 = vst.msk [vmem:[%s205 + $0x2f] sm:$0x1] %vm256, %v955
        %960 = vst.msk [vmem:[%s205 + $0x3f] sm:$0x1] %vm256, %v956
        %s961 = sand.u32 %s120, 1
        %s962 = scalar_lea.sflag [#allocation3], %s961
        %s963 = sand.u32 %s120, 1
        %s964 = smul.addr %s963, 64
        %s965 = scalar_lea.vmem [#allocation2], %s964
        // Predicated region
        $region37: #{residual_block_forward.5} parent=35 // pred_check
          %p966 = pneg %p130
        $region38: #{residual_block_forward.5} parent=35 // pred_check_branch
          %968 = sbr.rel (%p966) target = $region40
        $region39: #{residual_block_forward.5} parent=35 // pred_region
          %s970 = ssub.s32 1024, 1024
          %971 = vsyncadd %s962, %s970
          %s972 = smul.addr %s18, 8
          %s973 = smul.addr %s972, 128
          %s974 = scalar_lea.hbm %s4, %s973
          %s975 = sshll.u32 %s965, 4
          %s976 = int_to_ptr.vmem [resolvable:$true] %s975
          %981 = dma.vmem_to_hbm [thread:$0]  %s976, 1024, %s974, %s962, 128, 128, 8
        $region40: #{residual_block_forward.5} parent=35 // pred_fallthru
          _
      $region36: #{residual_block_forward.5} parent=5 // pred_fallthru
        _
      %p982 = scmp.le.s32.totalorder 2, %s13
      // Predicated region
      $region41: #{residual_block_forward.5} parent=5 // pred_check
        %p983 = pneg %p982
      $region42: #{residual_block_forward.5} parent=5 // pred_check_branch
        %985 = sbr.rel (%p983) target = $region44
      $region43: #{residual_block_forward.5} parent=5 // pred_region
        %s986 = ssub.s32 %s13, 2
        // Predicated region
        $region45: #{residual_block_forward.5} parent=43 // pred_check
          %p987 = pneg %p136
        $region46: #{residual_block_forward.5} parent=43 // pred_check_branch
          %989 = sbr.rel (%p987) target = $region48
        $region47: #{residual_block_forward.5} parent=43 // pred_region
          %s990 = sand.u32 %s121, 1
          %s991 = scalar_lea.sflag [#allocation3], %s990
          %s992 = sand.u32 %s121, 1
          %s993 = smul.addr %s992, 64
          %s994 = scalar_lea.vmem [#allocation2], %s993
          %995 = dma.done %s991, 1024
        $region48: #{residual_block_forward.5} parent=43 // pred_fallthru
          _
      $region44: #{residual_block_forward.5} parent=5 // pred_fallthru
        _
    $region6: #{residual_block_forward.5} parent=1 // loop_footer
      %s17 = sadd.s32 1, %s13
    $region7: #{residual_block_forward.5} parent=1 // loop_footer_branch
      %12 = sbr.rel target = $region3
    $region8: #{residual_block_forward.5} parent=1 // loop_exit
      _
    %996 = vsyncpa [#allocation3], 1
    %s997 = scalar_lea.sflag [#allocation3], 1
    %998 = vsyncpa %s997, 1

// kernel: residual_block_forward.4
$region0: #{residual_block_forward.4}
  #allocation0 [shape = 'u32[]', space=smem, size = 0x4, offset = 0x4, fixed_abs, tag = 'smem constant byte address 0x4 - core index']
  #allocation1 [shape = 'u32[144,128]{1,0:T(1,128)}', space=vmem, size = 0x12000, scoped, tag = 'internal scratch']
  #allocation2 [shape = 'f32[1]{0:T(128)S(6)}', space=smem, size = 0x200, scoped, tag = 'scoped memory for residual_block_forward.4']
  %s0 = inlined_call_operand.vmem [shape: bf16[2,16,640], index: 0, kind: input, shape index: {}]
  %s1 = inlined_call_operand.vmem [shape: f32[16,1], index: 1, kind: input, shape index: {}]
  %s2 = inlined_call_operand.vmem [shape: f32[16,1], index: 2, kind: input, shape index: {}]
  %s3 = inlined_call_operand.<no memory space> [shape: f32[1], index: 3, kind: input, shape index: {}]
  %s4 = inlined_call_operand.vmem [shape: bf16[9,16,16], index: 4, kind: input, shape index: {}]
  %s5 = inlined_call_operand.vmem [shape: f32[16,1], index: 5, kind: input, shape index: {}]
  %s6 = inlined_call_operand.vmem [shape: f32[1,640], index: 6, kind: input, shape index: {}]
  %s7 = inlined_call_operand.vmem [shape: bf16[2,16,640], index: 7, kind: output, shape index: {0}]
  %s8 = inlined_call_operand.vmem [shape: f32[2,16,1], index: 8, kind: output, shape index: {1}]
  %s9 = inlined_call_operand.vmem [shape: f32[2,16,1], index: 9, kind: output, shape index: {2}]
  %10 = xla_tuple %s7, %s8, %s9
  %s11 = sld [smem:[#allocation0]]
  $region77: #{residual_block_forward.4} parent=0
    _
  %s13 = ssub.s32 1, %s11
  %s14 = scalar_select 0, %s13, %s11
  %15 = sst [smem:[#allocation2]] %s3
  loop: start=0, step=1, limit=4
  $region2: #{residual_block_forward.4} parent=0 // loop_pre_header
    _
  $region3: #{residual_block_forward.4} parent=0 // loop_header
    %s17 = sphi 0, %s21
    %p18 = scmp.ge.s32.totalorder %s17, 4
    %s27 = sphi 0, %s29
    %s30 = sphi 0, %s27
    %s31 = sphi 0, %s30
    %s47 = sphi 0, %s31
    %s51 = sphi 0, %s51
    %s53 = sphi 0, %s51
    %s54 = sphi 0, %s53
    %s68 = sphi 0, %s54
    %s72 = sphi 0, %s72
    %s74 = sphi 0, %s72
    %s75 = sphi 0, %s74
    %s89 = sphi 0, %s75
    %s93 = sphi 0, %s93
    %s95 = sphi 0, %s93
    %s96 = sphi 0, %s95
    %s110 = sphi 0, %s96
    %s114 = sphi 0, %s114
    %s116 = sphi 0, %s114
    %s117 = sphi 0, %s116
    %s131 = sphi 0, %s117
    %s135 = sphi 0, %s135
    %s137 = sphi 0, %s135
    %s138 = sphi 0, %s137
    %s152 = sphi 0, %s138
    %s156 = sphi 0, %s156
    %s158 = sphi 0, %s156
    %s159 = sphi 0, %s158
    %s173 = sphi 0, %s159
    %s179 = sphi 0, %s181
    %s182 = sphi 0, %s179
    %s183 = sphi 0, %s182
    %s199 = sphi 0, %s183
    %s205 = sphi 0, %s207
    %s208 = sphi 0, %s205
    %s209 = sphi 0, %s208
    %s225 = sphi 0, %s209
    %s231 = sphi 0, %s233
    %s234 = sphi 0, %s231
    %s235 = sphi 0, %s234
    %s251 = sphi 0, %s235
  $region4: #{residual_block_forward.4} parent=0 // loop_header_branch
    %20 = sbr.rel (%p18) target = $region8
  $region5: #{residual_block_forward.4} parent=0 // loop_body
    %s22 = ssub.s32 %s17, 1
    %s23 = ssub.s32 %s17, 2
    %s24 = sadd.s32 %s17, 1
    %s25 = ssub.s32 %s17, %s24
    %p26 = scmp.eq.s32.totalorder %s25, 0
    %s28 = sadd.s32 %s27, 1
    %s29 = scalar_select %p26, %s27, %s28
    %p32 = pneg %p26
    %p33 = scmp.eq.s32.totalorder %s17, 1
    %p34 = por %p32, %p33
    %p35 = scmp.ne.s32.totalorder %s27, %s30
    %p36 = scmp.eq.s32.totalorder %s17, 0
    %p37 = por %p35, %p36
    %p38 = scmp.ne.s32.totalorder %s27, %s30
    %p39 = scmp.eq.s32.totalorder %s22, 1
    %p40 = por %p38, %p39
    %p41 = scmp.ne.s32.totalorder %s30, %s31
    %p42 = scmp.eq.s32.totalorder %s22, 0
    %p43 = por %p41, %p42
    %p44 = scmp.ne.s32.totalorder %s30, %s31
    %p45 = scmp.eq.s32.totalorder %s23, 1
    %p46 = por %p44, %p45
    %p48 = scmp.ne.s32.totalorder %s31, %s47
    %p49 = scmp.eq.s32.totalorder %s23, 0
    %p50 = por %p48, %p49
    %s52 = sadd.s32 %s51, 1
    %p55 = scmp.eq.s32.totalorder %s17, 1
    %p56 = scmp.ne.s32.totalorder %s51, %s53
    %p57 = scmp.eq.s32.totalorder %s17, 0
    %p58 = por %p56, %p57
    %p59 = scmp.ne.s32.totalorder %s51, %s53
    %p60 = scmp.eq.s32.totalorder %s22, 1
    %p61 = por %p59, %p60
    %p62 = scmp.ne.s32.totalorder %s53, %s54
    %p63 = scmp.eq.s32.totalorder %s22, 0
    %p64 = por %p62, %p63
    %p65 = scmp.ne.s32.totalorder %s53, %s54
    %p66 = scmp.eq.s32.totalorder %s23, 1
    %p67 = por %p65, %p66
    %p69 = scmp.ne.s32.totalorder %s54, %s68
    %p70 = scmp.eq.s32.totalorder %s23, 0
    %p71 = por %p69, %p70
    %s73 = sadd.s32 %s72, 1
    %p76 = scmp.eq.s32.totalorder %s17, 1
    %p77 = scmp.ne.s32.totalorder %s72, %s74
    %p78 = scmp.eq.s32.totalorder %s17, 0
    %p79 = por %p77, %p78
    %p80 = scmp.ne.s32.totalorder %s72, %s74
    %p81 = scmp.eq.s32.totalorder %s22, 1
    %p82 = por %p80, %p81
    %p83 = scmp.ne.s32.totalorder %s74, %s75
    %p84 = scmp.eq.s32.totalorder %s22, 0
    %p85 = por %p83, %p84
    %p86 = scmp.ne.s32.totalorder %s74, %s75
    %p87 = scmp.eq.s32.totalorder %s23, 1
    %p88 = por %p86, %p87
    %p90 = scmp.ne.s32.totalorder %s75, %s89
    %p91 = scmp.eq.s32.totalorder %s23, 0
    %p92 = por %p90, %p91
    %s94 = sadd.s32 %s93, 1
    %p97 = scmp.eq.s32.totalorder %s17, 1
    %p98 = scmp.ne.s32.totalorder %s93, %s95
    %p99 = scmp.eq.s32.totalorder %s17, 0
    %p100 = por %p98, %p99
    %p101 = scmp.ne.s32.totalorder %s93, %s95
    %p102 = scmp.eq.s32.totalorder %s22, 1
    %p103 = por %p101, %p102
    %p104 = scmp.ne.s32.totalorder %s95, %s96
    %p105 = scmp.eq.s32.totalorder %s22, 0
    %p106 = por %p104, %p105
    %p107 = scmp.ne.s32.totalorder %s95, %s96
    %p108 = scmp.eq.s32.totalorder %s23, 1
    %p109 = por %p107, %p108
    %p111 = scmp.ne.s32.totalorder %s96, %s110
    %p112 = scmp.eq.s32.totalorder %s23, 0
    %p113 = por %p111, %p112
    %s115 = sadd.s32 %s114, 1
    %p118 = scmp.eq.s32.totalorder %s17, 1
    %p119 = scmp.ne.s32.totalorder %s114, %s116
    %p120 = scmp.eq.s32.totalorder %s17, 0
    %p121 = por %p119, %p120
    %p122 = scmp.ne.s32.totalorder %s114, %s116
    %p123 = scmp.eq.s32.totalorder %s22, 1
    %p124 = por %p122, %p123
    %p125 = scmp.ne.s32.totalorder %s116, %s117
    %p126 = scmp.eq.s32.totalorder %s22, 0
    %p127 = por %p125, %p126
    %p128 = scmp.ne.s32.totalorder %s116, %s117
    %p129 = scmp.eq.s32.totalorder %s23, 1
    %p130 = por %p128, %p129
    %p132 = scmp.ne.s32.totalorder %s117, %s131
    %p133 = scmp.eq.s32.totalorder %s23, 0
    %p134 = por %p132, %p133
    %s136 = sadd.s32 %s135, 1
    %p139 = scmp.eq.s32.totalorder %s17, 1
    %p140 = scmp.ne.s32.totalorder %s135, %s137
    %p141 = scmp.eq.s32.totalorder %s17, 0
    %p142 = por %p140, %p141
    %p143 = scmp.ne.s32.totalorder %s135, %s137
    %p144 = scmp.eq.s32.totalorder %s22, 1
    %p145 = por %p143, %p144
    %p146 = scmp.ne.s32.totalorder %s137, %s138
    %p147 = scmp.eq.s32.totalorder %s22, 0
    %p148 = por %p146, %p147
    %p149 = scmp.ne.s32.totalorder %s137, %s138
    %p150 = scmp.eq.s32.totalorder %s23, 1
    %p151 = por %p149, %p150
    %p153 = scmp.ne.s32.totalorder %s138, %s152
    %p154 = scmp.eq.s32.totalorder %s23, 0
    %p155 = por %p153, %p154
    %s157 = sadd.s32 %s156, 1
    %p160 = scmp.eq.s32.totalorder %s17, 1
    %p161 = scmp.ne.s32.totalorder %s156, %s158
    %p162 = scmp.eq.s32.totalorder %s17, 0
    %p163 = por %p161, %p162
    %p164 = scmp.ne.s32.totalorder %s156, %s158
    %p165 = scmp.eq.s32.totalorder %s22, 1
    %p166 = por %p164, %p165
    %p167 = scmp.ne.s32.totalorder %s158, %s159
    %p168 = scmp.eq.s32.totalorder %s22, 0
    %p169 = por %p167, %p168
    %p170 = scmp.ne.s32.totalorder %s158, %s159
    %p171 = scmp.eq.s32.totalorder %s23, 1
    %p172 = por %p170, %p171
    %p174 = scmp.ne.s32.totalorder %s159, %s173
    %p175 = scmp.eq.s32.totalorder %s23, 0
    %p176 = por %p174, %p175
    %s177 = ssub.s32 %s17, %s24
    %p178 = scmp.eq.s32.totalorder %s177, 0
    %s180 = sadd.s32 %s179, 1
    %s181 = scalar_select %p178, %s179, %s180
    %p184 = pneg %p178
    %p185 = scmp.eq.s32.totalorder %s17, 1
    %p186 = por %p184, %p185
    %p187 = scmp.ne.s32.totalorder %s179, %s182
    %p188 = scmp.eq.s32.totalorder %s17, 0
    %p189 = por %p187, %p188
    %p190 = scmp.ne.s32.totalorder %s179, %s182
    %p191 = scmp.eq.s32.totalorder %s22, 1
    %p192 = por %p190, %p191
    %p193 = scmp.ne.s32.totalorder %s182, %s183
    %p194 = scmp.eq.s32.totalorder %s22, 0
    %p195 = por %p193, %p194
    %p196 = scmp.ne.s32.totalorder %s182, %s183
    %p197 = scmp.eq.s32.totalorder %s23, 1
    %p198 = por %p196, %p197
    %p200 = scmp.ne.s32.totalorder %s183, %s199
    %p201 = scmp.eq.s32.totalorder %s23, 0
    %p202 = por %p200, %p201
    %s203 = ssub.s32 %s17, %s24
    %p204 = scmp.eq.s32.totalorder %s203, 0
    %s206 = sadd.s32 %s205, 1
    %s207 = scalar_select %p204, %s205, %s206
    %p210 = pneg %p204
    %p211 = scmp.eq.s32.totalorder %s17, 1
    %p212 = por %p210, %p211
    %p213 = scmp.ne.s32.totalorder %s205, %s208
    %p214 = scmp.eq.s32.totalorder %s17, 0
    %p215 = por %p213, %p214
    %p216 = scmp.ne.s32.totalorder %s205, %s208
    %p217 = scmp.eq.s32.totalorder %s22, 1
    %p218 = por %p216, %p217
    %p219 = scmp.ne.s32.totalorder %s208, %s209
    %p220 = scmp.eq.s32.totalorder %s22, 0
    %p221 = por %p219, %p220
    %p222 = scmp.ne.s32.totalorder %s208, %s209
    %p223 = scmp.eq.s32.totalorder %s23, 1
    %p224 = por %p222, %p223
    %p226 = scmp.ne.s32.totalorder %s209, %s225
    %p227 = scmp.eq.s32.totalorder %s23, 0
    %p228 = por %p226, %p227
    %s229 = ssub.s32 %s17, %s24
    %p230 = scmp.eq.s32.totalorder %s229, 0
    %s232 = sadd.s32 %s231, 1
    %s233 = scalar_select %p230, %s231, %s232
    %p236 = pneg %p230
    %p237 = scmp.eq.s32.totalorder %s17, 1
    %p238 = por %p236, %p237
    %p239 = scmp.ne.s32.totalorder %s231, %s234
    %p240 = scmp.eq.s32.totalorder %s17, 0
    %p241 = por %p239, %p240
    %p242 = scmp.ne.s32.totalorder %s231, %s234
    %p243 = scmp.eq.s32.totalorder %s22, 1
    %p244 = por %p242, %p243
    %p245 = scmp.ne.s32.totalorder %s234, %s235
    %p246 = scmp.eq.s32.totalorder %s22, 0
    %p247 = por %p245, %p246
    %p248 = scmp.ne.s32.totalorder %s234, %s235
    %p249 = scmp.eq.s32.totalorder %s23, 1
    %p250 = por %p248, %p249
    %p252 = scmp.ne.s32.totalorder %s235, %s251
    %p253 = scmp.eq.s32.totalorder %s23, 0
    %p254 = por %p252, %p253
    %p255 = scmp.le.s32.totalorder 1, %s17
    %p256 = scmp.lt.s32.totalorder %s17, 3
    %p257 = pnand %p255, %p256
    %p258 = pneg %p257
    // Predicated region
    $region9: #{residual_block_forward.4} parent=5 // pred_check
      _
    $region10: #{residual_block_forward.4} parent=5 // pred_check_branch
      %260 = sbr.rel (%p257) target = $region12
    $region11: #{residual_block_forward.4} parent=5 // pred_region
      %s261 = ssub.s32 %s17, 1
      // Predicated region
      $region13: #{residual_block_forward.4} parent=11 // pred_check
        %p262 = pneg %p64
      $region14: #{residual_block_forward.4} parent=11 // pred_check_branch
        %264 = sbr.rel (%p262) target = $region16
      $region15: #{residual_block_forward.4} parent=11 // pred_region
        _
      $region16: #{residual_block_forward.4} parent=11 // pred_fallthru
        _
      // Predicated region
      $region17: #{residual_block_forward.4} parent=11 // pred_check
        %p265 = pneg %p85
      $region18: #{residual_block_forward.4} parent=11 // pred_check_branch
        %267 = sbr.rel (%p265) target = $region20
      $region19: #{residual_block_forward.4} parent=11 // pred_region
        _
      $region20: #{residual_block_forward.4} parent=11 // pred_fallthru
        _
      // Predicated region
      $region21: #{residual_block_forward.4} parent=11 // pred_check
        %p268 = pneg %p106
      $region22: #{residual_block_forward.4} parent=11 // pred_check_branch
        %270 = sbr.rel (%p268) target = $region24
      $region23: #{residual_block_forward.4} parent=11 // pred_region
        _
      $region24: #{residual_block_forward.4} parent=11 // pred_fallthru
        _
      // Predicated region
      $region25: #{residual_block_forward.4} parent=11 // pred_check
        %p271 = pneg %p127
      $region26: #{residual_block_forward.4} parent=11 // pred_check_branch
        %273 = sbr.rel (%p271) target = $region28
      $region27: #{residual_block_forward.4} parent=11 // pred_region
        _
      $region28: #{residual_block_forward.4} parent=11 // pred_fallthru
        _
      // Predicated region
      $region29: #{residual_block_forward.4} parent=11 // pred_check
        %p274 = pneg %p148
      $region30: #{residual_block_forward.4} parent=11 // pred_check_branch
        %276 = sbr.rel (%p274) target = $region32
      $region31: #{residual_block_forward.4} parent=11 // pred_region
        _
      $region32: #{residual_block_forward.4} parent=11 // pred_fallthru
        _
      // Predicated region
      $region33: #{residual_block_forward.4} parent=11 // pred_check
        %p277 = pneg %p169
      $region34: #{residual_block_forward.4} parent=11 // pred_check_branch
        %279 = sbr.rel (%p277) target = $region36
      $region35: #{residual_block_forward.4} parent=11 // pred_region
        _
      $region36: #{residual_block_forward.4} parent=11 // pred_fallthru
        _
    $region12: #{residual_block_forward.4} parent=5 // pred_fallthru
      _
    %p280 = scmp.lt.s32.totalorder %s17, 2
    // Predicated region
    $region37: #{residual_block_forward.4} parent=5 // pred_check
      %p281 = pneg %p280
    $region38: #{residual_block_forward.4} parent=5 // pred_check_branch
      %283 = sbr.rel (%p281) target = $region40
    $region39: #{residual_block_forward.4} parent=5 // pred_region
      // Predicated region
      $region41: #{residual_block_forward.4} parent=39 // pred_check
        %p284 = pneg %p37
      $region42: #{residual_block_forward.4} parent=39 // pred_check_branch
        %286 = sbr.rel (%p284) target = $region44
      $region43: #{residual_block_forward.4} parent=39 // pred_region
        %p287 = scmp.lt.s32.totalorder %s17, 1
        %s288 = scalar_select %p287, %s17, 1
        %s289 = smul.addr %s288, 10
        %s290 = smul.addr %s289, 4
        %s291 = scalar_lea.vmem %s0, %s290
      $region44: #{residual_block_forward.4} parent=39 // pred_fallthru
        _
    $region40: #{residual_block_forward.4} parent=5 // pred_fallthru
      _
    %p292 = scmp.le.s32.totalorder 1, %s17
    %p293 = scmp.lt.s32.totalorder %s17, 3
    %p294 = pnand %p292, %p293
    %p295 = pneg %p294
    // Predicated region
    $region45: #{residual_block_forward.4} parent=5 // pred_check
      _
    $region46: #{residual_block_forward.4} parent=5 // pred_check_branch
      %297 = sbr.rel (%p294) target = $region48
    $region47: #{residual_block_forward.4} parent=5 // pred_region
      %s298 = ssub.s32 %s17, 1
      %p299 = scmp.lt.s32.totalorder %s22, 1
      %s300 = scalar_select %p299, %s22, 1
      %s301 = smul.addr %s300, 10
      %s302 = smul.addr %s301, 4
      %s303 = scalar_lea.vmem %s0, %s302
      %p304 = pneg %p43
      %p305 = pneg %p40
      %p306 = pneg %p64
      %p307 = pneg %p61
      %p308 = pneg %p85
      %p309 = pneg %p82
      %p310 = pneg %p106
      %p311 = pneg %p103
      %p312 = pneg %p127
      %p313 = pneg %p124
      %p314 = pneg %p148
      %p315 = pneg %p145
      %p316 = pneg %p169
      %p317 = pneg %p166
      %p318 = pneg %p195
      %p319 = pneg %p192
      %p320 = scmp.lt.s32.totalorder %s22, 1
      %s321 = scalar_select %p320, %s22, 1
      %s322 = smul.addr %s321, 10
      %s323 = smul.addr %s322, 4
      %s324 = scalar_lea.vmem %s7, %s323
      %p325 = pneg %p221
      %p326 = pneg %p218
      %p327 = scmp.lt.s32.totalorder %s22, 1
      %s328 = scalar_select %p327, %s22, 1
      %s329 = smul.addr %s328, 2
      %s330 = smul.addr %s329, 8
      %s331 = scalar_lea.vmem %s8, %s330
      %p332 = pneg %p247
      %p333 = pneg %p244
      %p334 = scmp.lt.s32.totalorder %s22, 1
      %s335 = scalar_select %p334, %s22, 1
      %s336 = smul.addr %s335, 2
      %s337 = smul.addr %s336, 8
      %s338 = scalar_lea.vmem %s9, %s337
      %p339 = scmp.lt.s32.totalorder %s22, 1
      %s340 = scalar_select %p339, %s22, 1
      %s341 = smul.addr %s340, 10
      %s342 = smul.addr %s341, 4
      %s343 = scalar_lea.vmem %s0, %s342
      %p344 = scmp.lt.s32.totalorder %s22, 1
      %s345 = scalar_select %p344, %s22, 1
      %s346 = smul.addr %s345, 10
      %s347 = smul.addr %s346, 4
      %s348 = scalar_lea.vmem %s7, %s347
      %p349 = scmp.lt.s32.totalorder %s22, 1
      %s350 = scalar_select %p349, %s22, 1
      %s351 = smul.addr %s350, 2
      %s352 = smul.addr %s351, 8
      %s353 = scalar_lea.vmem %s8, %s352
      %p354 = scmp.lt.s32.totalorder %s22, 1
      %s355 = scalar_select %p354, %s22, 1
      %s356 = smul.addr %s355, 2
      %s357 = smul.addr %s356, 8
      %s358 = scalar_lea.vmem %s9, %s357
      %v360 = vld [vmem:[%s6] sm:$0x1f]
      %vm361 = vcmp.ne.f32.partialorder %v360, 0.0
      %s362 = sld [smem:[#allocation2]]
      %v363 = vld [vmem:[%s343] sm:$0xff]
      %v364 = vld [vmem:[%s343 + $0x8] sm:$0xff]
      %v365 = vld [vmem:[%s343 + $0x10] sm:$0xf]
      %v366 = vld [vmem:[%s343 + $0x14] sm:$0xff]
      %v367 = vld [vmem:[%s343 + $0x1c] sm:$0xff]
      %v368 = vld [vmem:[%s343 + $0x24] sm:$0xf]
      %v369 = vunpack.c.l.bf16 %v363
      %v370 = vunpack.c.h.bf16 %v363
      %v371 = vunpack.c.l.bf16 %v364
      %v372 = vunpack.c.h.bf16 %v364
      %v373 = vunpack.c.l.bf16 %v365
      %v374 = vunpack.c.l.bf16 %v366
      %v375 = vunpack.c.h.bf16 %v366
      %v376 = vunpack.c.l.bf16 %v367
      %v377 = vunpack.c.h.bf16 %v367
      %v378 = vunpack.c.l.bf16 %v368
      %v379 = vld [vmem:[%s1] sm:$0xff]
      %v380 = vld [vmem:[%s1 + $0x8] sm:$0xff]
      %382 = vset.pattern.permute.xlu0 0
      %383 = vperm.xlu0 %382, %v379
      %v384 = vpop.permute.xlu0 %383
      %387 = vset.pattern.permute.xlu0 0
      %388 = vperm.xlu0 %387, %v380
      %v389 = vpop.permute.xlu0 %388
      %v391 = vmul.f32 %v369, %v384
      %v392 = vmul.f32 %v370, %v384
      %v393 = vmul.f32 %v371, %v384
      %v394 = vmul.f32 %v372, %v384
      %v395 = vmul.f32 %v373, %v384
      %v396 = vmul.f32 %v374, %v389
      %v397 = vmul.f32 %v375, %v389
      %v398 = vmul.f32 %v376, %v389
      %v399 = vmul.f32 %v377, %v389
      %v400 = vmul.f32 %v378, %v389
      %v401 = vld [vmem:[%s2] sm:$0xff]
      %v402 = vld [vmem:[%s2 + $0x8] sm:$0xff]
      %404 = vset.pattern.permute.xlu0 0
      %405 = vperm.xlu0 %404, %v401
      %v406 = vpop.permute.xlu0 %405
      %409 = vset.pattern.permute.xlu0 0
      %410 = vperm.xlu0 %409, %v402
      %v411 = vpop.permute.xlu0 %410
      %v413 = vadd.f32 %v391, %v406
      %v414 = vadd.f32 %v392, %v406
      %v415 = vadd.f32 %v393, %v406
      %v416 = vadd.f32 %v394, %v406
      %v417 = vadd.f32 %v395, %v406
      %v418 = vadd.f32 %v396, %v411
      %v419 = vadd.f32 %v397, %v411
      %v420 = vadd.f32 %v398, %v411
      %v421 = vadd.f32 %v399, %v411
      %v422 = vadd.f32 %v400, %v411
      %vm423 = vcmp.ge.f32.partialorder %v413, 0.0
      %vm424 = vcmp.ge.f32.partialorder %v414, 0.0
      %vm425 = vcmp.ge.f32.partialorder %v415, 0.0
      %vm426 = vcmp.ge.f32.partialorder %v416, 0.0
      %vm427 = vcmp.ge.f32.partialorder %v417, 0.0
      %vm428 = vcmp.ge.f32.partialorder %v418, 0.0
      %vm429 = vcmp.ge.f32.partialorder %v419, 0.0
      %vm430 = vcmp.ge.f32.partialorder %v420, 0.0
      %vm431 = vcmp.ge.f32.partialorder %v421, 0.0
      %vm432 = vcmp.ge.f32.partialorder %v422, 0.0
      %v433 = vstv %s362
      %v434 = vmul.f32 %v433, %v413
      %v435 = vmul.f32 %v433, %v414
      %v436 = vmul.f32 %v433, %v415
      %v437 = vmul.f32 %v433, %v416
      %v438 = vmul.f32 %v433, %v417
      %v439 = vmul.f32 %v433, %v418
      %v440 = vmul.f32 %v433, %v419
      %v441 = vmul.f32 %v433, %v420
      %v442 = vmul.f32 %v433, %v421
      %v443 = vmul.f32 %v433, %v422
      %v444 = vsel %vm423, %v413, %v434
      %v445 = vsel %vm424, %v414, %v435
      %v446 = vsel %vm425, %v415, %v436
      %v447 = vsel %vm426, %v416, %v437
      %v448 = vsel %vm427, %v417, %v438
      %v449 = vsel %vm428, %v418, %v439
      %v450 = vsel %vm429, %v419, %v440
      %v451 = vsel %vm430, %v420, %v441
      %v452 = vsel %vm431, %v421, %v442
      %v453 = vsel %vm432, %v422, %v443
      %v454 = vsel %vm361, 1, 0
      %v455 = vlaneseq
      %v456 = vshrl.u32 %v455, 7
      %v457 = vsub.s32 0, %v456
      %v458 = vrot.slane %v454, %v457
      %v459 = vlaneseq
      %v460 = vshrl.u32 %v459, 7
      %v461 = vsub.s32 1, %v460
      %v462 = vrot.slane %v454, %v461
      %v463 = vlaneseq
      %v464 = vshrl.u32 %v463, 7
      %v465 = vsub.s32 2, %v464
      %v466 = vrot.slane %v454, %v465
      %v467 = vlaneseq
      %v468 = vshrl.u32 %v467, 7
      %v469 = vsub.s32 3, %v468
      %v470 = vrot.slane %v454, %v469
      %v471 = vlaneseq
      %v472 = vshrl.u32 %v471, 7
      %v473 = vsub.s32 4, %v472
      %v474 = vrot.slane %v454, %v473
      %vm475 = vcmp.eq.s32.totalorder %v458, 1
      %vm476 = vcmp.eq.s32.totalorder %v462, 1
      %vm477 = vcmp.eq.s32.totalorder %v466, 1
      %vm478 = vcmp.eq.s32.totalorder %v470, 1
      %vm479 = vcmp.eq.s32.totalorder %v474, 1
      %v480 = vsel %vm475, %v444, 0.0
      %v481 = vsel %vm476, %v445, 0.0
      %v482 = vsel %vm477, %v446, 0.0
      %v483 = vsel %vm478, %v447, 0.0
      %v484 = vsel %vm479, %v448, 0.0
      %v485 = vsel %vm475, %v449, 0.0
      %v486 = vsel %vm476, %v450, 0.0
      %v487 = vsel %vm477, %v451, 0.0
      %v488 = vsel %vm478, %v452, 0.0
      %v489 = vsel %vm479, %v453, 0.0
      %v490 = vpack.c.bf16 %v485, %v480
      %v491 = vpack.c.bf16 %v486, %v481
      %v492 = vpack.c.bf16 %v487, %v482
      %v493 = vpack.c.bf16 %v488, %v483
      %v494 = vpack.c.bf16 %v489, %v484
      %v495 = vld [vmem:[%s4] sm:$0xf]
      %v496 = vld [vmem:[%s4 + $0x4] sm:$0xf]
      %s497 = scalar_lea.vmem %s4, 8
      %v498 = vld [vmem:[%s497] sm:$0xf]
      %v499 = vld [vmem:[%s497 + $0x4] sm:$0xf]
      %v502 = vunpack.c.l.b16 %v498
      %v503 = vunpack.c.l.b16 %v499
      %v504 = vpack.c.b16 %v503, %v502
      %509 = vrot.lane.b32.xlu0 %v490, 18
      %v510 = vpop.permute.xlu0 %509
      %511 = vrot.lane.b32.xlu0 %v491, 18
      %v512 = vpop.permute.xlu0 %511
      %513 = vrot.lane.b32.xlu0 %v492, 18
      %v514 = vpop.permute.xlu0 %513
      %515 = vrot.lane.b32.xlu0 %v493, 18
      %v516 = vpop.permute.xlu0 %515
      %vm517 = vcmask 146432
      %v518 = vsel %vm517, %v510, %v512
      %v519 = vsel %vm517, %v512, %v514
      %v520 = vsel %vm517, %v514, %v516
      %vm524 = vcmask 130048
      %v526 = vsel %vm524, %v504, 0
      %528 = vmatprep.subr.bf16.mxu0 %v519
      %529 = vmatpush1.bf16.msra.mxu0 %v518
      %530 = vmatprep.subr.bf16.mxu0 0
      %531 = vmatpush1.bf16.msra.mxu0 0
      %532 = vmatprep.subr.bf16.mxu0 0
      %533 = vmatpush1.bf16.msra.mxu0 0
      %534 = vmatprep.subr.bf16.mxu0 0
      %535 = vmatpush1.bf16.msra.mxu0 0
      %536 = vmatprep.subr.bf16.mxu0 0
      %537 = vmatpush1.bf16.msra.mxu0 0
      %538 = vmatprep.subr.bf16.mxu0 0
      %539 = vmatpush1.bf16.msra.mxu0 0
      %540 = vmatprep.subr.bf16.mxu0 0
      %541 = vmatpush1.bf16.msra.mxu0 0
      %542 = vmatprep.subr.bf16.mxu0 0
      %543 = vmatpush1.bf16.msra.mxu0 0
      %544 = vmatprep.subr.bf16.mxu0 0
      %545 = vmatpush1.bf16.msra.mxu0 0
      %546 = vmatprep.subr.bf16.mxu0 0
      %547 = vmatpush1.bf16.msra.mxu0 0
      %548 = vmatprep.subr.bf16.mxu0 0
      %549 = vmatpush1.bf16.msra.mxu0 0
      %550 = vmatprep.subr.bf16.mxu0 0
      %551 = vmatpush1.bf16.msra.mxu0 0
      %552 = vmatprep.subr.bf16.mxu0 0
      %553 = vmatpush1.bf16.msra.mxu0 0
      %554 = vmatprep.subr.bf16.mxu0 0
      %555 = vmatpush1.bf16.msra.mxu0 0
      %556 = vmatprep.subr.bf16.mxu0 0
      %557 = vmatpush1.bf16.msra.mxu0 0
      %558 = vmatprep.subr.bf16.mxu0 0
      %559 = vmatpush1.bf16.msra.mxu0 0
      %560 = vmatprep.mubr.bf16.mxu0 0
      %561 = vmatmul.mubr.bf16.gmra.mrb[0].mxu0 %v526
      %v562 = vpop.f32.mrb[0].mxu0
      %v563 = vadd.f32 0.0, %v562
      %v564 = vpop.f32.mrb[0].mxu0
      %v565 = vadd.f32 0.0, %v564
      %v566 = vpop.f32.mrb[0].mxu0
      %v567 = vadd.f32 0.0, %v566
      %v568 = vpop.f32.mrb[0].mxu0
      %v569 = vadd.f32 0.0, %v568
      %570 = vdwg.mxu0
      %571 = vmatprep.subr.bf16.mxu0 0
      %572 = vmatpush1.bf16.msra.mxu0 %v520
      %573 = vmatprep.subr.bf16.mxu0 0
      %574 = vmatpush1.bf16.msra.mxu0 0
      %575 = vmatprep.subr.bf16.mxu0 0
      %576 = vmatpush1.bf16.msra.mxu0 0
      %577 = vmatprep.subr.bf16.mxu0 0
      %578 = vmatpush1.bf16.msra.mxu0 0
      %579 = vmatprep.subr.bf16.mxu0 0
      %580 = vmatpush1.bf16.msra.mxu0 0
      %581 = vmatprep.subr.bf16.mxu0 0
      %582 = vmatpush1.bf16.msra.mxu0 0
      %583 = vmatprep.subr.bf16.mxu0 0
      %584 = vmatpush1.bf16.msra.mxu0 0
      %585 = vmatprep.subr.bf16.mxu0 0
      %586 = vmatpush1.bf16.msra.mxu0 0
      %587 = vmatprep.subr.bf16.mxu0 0
      %588 = vmatpush1.bf16.msra.mxu0 0
      %589 = vmatprep.subr.bf16.mxu0 0
      %590 = vmatpush1.bf16.msra.mxu0 0
      %591 = vmatprep.subr.bf16.mxu0 0
      %592 = vmatpush1.bf16.msra.mxu0 0
      %593 = vmatprep.subr.bf16.mxu0 0
      %594 = vmatpush1.bf16.msra.mxu0 0
      %595 = vmatprep.subr.bf16.mxu0 0
      %596 = vmatpush1.bf16.msra.mxu0 0
      %597 = vmatprep.subr.bf16.mxu0 0
      %598 = vmatpush1.bf16.msra.mxu0 0
      %599 = vmatprep.subr.bf16.mxu0 0
      %600 = vmatpush1.bf16.msra.mxu0 0
      %601 = vmatprep.subr.bf16.mxu0 0
      %602 = vmatpush1.bf16.msra.mxu0 0
      %603 = vmatprep.mubr.bf16.mxu0 0
      %604 = vmatmul.mubr.bf16.gmra.mrb[0].mxu0 %v526
      %v605 = vpop.f32.mrb[0].mxu0
      %v606 = vadd.f32 0.0, %v605
      %v607 = vpop.f32.mrb[0].mxu0
      %v608 = vpop.f32.mrb[0].mxu0
      %v609 = vadd.f32 0.0, %v608
      %v610 = vpop.f32.mrb[0].mxu0
      %611 = vdwg.mxu0
      %v614 = vunpack.c.l.b16 %v495
      %v615 = vunpack.c.l.b16 %v496
      %v616 = vpack.c.b16 %v615, %v614
      %617 = vrot.lane.b32.xlu0 %v490, 19
      %v618 = vpop.permute.xlu0 %617
      %619 = vrot.lane.b32.xlu0 %v491, 19
      %v620 = vpop.permute.xlu0 %619
      %621 = vrot.lane.b32.xlu0 %v492, 19
      %v622 = vpop.permute.xlu0 %621
      %623 = vrot.lane.b32.xlu0 %v493, 19
      %v624 = vpop.permute.xlu0 %623
      %vm625 = vcmask 154624
      %v626 = vsel %vm625, %v618, %v620
      %v627 = vsel %vm625, %v620, %v622
      %v628 = vsel %vm625, %v622, %v624
      %v633 = vsel %vm524, %v616, 0
      %635 = vmatprep.subr.bf16.mxu0 %v627
      %636 = vmatpush1.bf16.msra.mxu0 %v626
      %637 = vmatprep.subr.bf16.mxu0 0
      %638 = vmatpush1.bf16.msra.mxu0 0
      %639 = vmatprep.subr.bf16.mxu0 0
      %640 = vmatpush1.bf16.msra.mxu0 0
      %641 = vmatprep.subr.bf16.mxu0 0
      %642 = vmatpush1.bf16.msra.mxu0 0
      %643 = vmatprep.subr.bf16.mxu0 0
      %644 = vmatpush1.bf16.msra.mxu0 0
      %645 = vmatprep.subr.bf16.mxu0 0
      %646 = vmatpush1.bf16.msra.mxu0 0
      %647 = vmatprep.subr.bf16.mxu0 0
      %648 = vmatpush1.bf16.msra.mxu0 0
      %649 = vmatprep.subr.bf16.mxu0 0
      %650 = vmatpush1.bf16.msra.mxu0 0
      %651 = vmatprep.subr.bf16.mxu0 0
      %652 = vmatpush1.bf16.msra.mxu0 0
      %653 = vmatprep.subr.bf16.mxu0 0
      %654 = vmatpush1.bf16.msra.mxu0 0
      %655 = vmatprep.subr.bf16.mxu0 0
      %656 = vmatpush1.bf16.msra.mxu0 0
      %657 = vmatprep.subr.bf16.mxu0 0
      %658 = vmatpush1.bf16.msra.mxu0 0
      %659 = vmatprep.subr.bf16.mxu0 0
      %660 = vmatpush1.bf16.msra.mxu0 0
      %661 = vmatprep.subr.bf16.mxu0 0
      %662 = vmatpush1.bf16.msra.mxu0 0
      %663 = vmatprep.subr.bf16.mxu0 0
      %664 = vmatpush1.bf16.msra.mxu0 0
      %665 = vmatprep.subr.bf16.mxu0 0
      %666 = vmatpush1.bf16.msra.mxu0 0
      %667 = vmatprep.mubr.bf16.mxu0 0
      %668 = vmatmul.mubr.bf16.gmra.mrb[0].mxu0 %v633
      %v669 = vpop.f32.mrb[0].mxu0
      %v670 = vadd.f32 %v563, %v669
      %v671 = vpop.f32.mrb[0].mxu0
      %v672 = vadd.f32 %v565, %v671
      %v673 = vpop.f32.mrb[0].mxu0
      %v674 = vadd.f32 %v567, %v673
      %v675 = vpop.f32.mrb[0].mxu0
      %v676 = vadd.f32 %v569, %v675
      %677 = vdwg.mxu0
      %678 = vmatprep.subr.bf16.mxu0 0
      %679 = vmatpush1.bf16.msra.mxu0 %v628
      %680 = vmatprep.subr.bf16.mxu0 0
      %681 = vmatpush1.bf16.msra.mxu0 0
      %682 = vmatprep.subr.bf16.mxu0 0
      %683 = vmatpush1.bf16.msra.mxu0 0
      %684 = vmatprep.subr.bf16.mxu0 0
      %685 = vmatpush1.bf16.msra.mxu0 0
      %686 = vmatprep.subr.bf16.mxu0 0
      %687 = vmatpush1.bf16.msra.mxu0 0
      %688 = vmatprep.subr.bf16.mxu0 0
      %689 = vmatpush1.bf16.msra.mxu0 0
      %690 = vmatprep.subr.bf16.mxu0 0
      %691 = vmatpush1.bf16.msra.mxu0 0
      %692 = vmatprep.subr.bf16.mxu0 0
      %693 = vmatpush1.bf16.msra.mxu0 0
      %694 = vmatprep.subr.bf16.mxu0 0
      %695 = vmatpush1.bf16.msra.mxu0 0
      %696 = vmatprep.subr.bf16.mxu0 0
      %697 = vmatpush1.bf16.msra.mxu0 0
      %698 = vmatprep.subr.bf16.mxu0 0
      %699 = vmatpush1.bf16.msra.mxu0 0
      %700 = vmatprep.subr.bf16.mxu0 0
      %701 = vmatpush1.bf16.msra.mxu0 0
      %702 = vmatprep.subr.bf16.mxu0 0
      %703 = vmatpush1.bf16.msra.mxu0 0
      %704 = vmatprep.subr.bf16.mxu0 0
      %705 = vmatpush1.bf16.msra.mxu0 0
      %706 = vmatprep.subr.bf16.mxu0 0
      %707 = vmatpush1.bf16.msra.mxu0 0
      %708 = vmatprep.subr.bf16.mxu0 0
      %709 = vmatpush1.bf16.msra.mxu0 0
      %710 = vmatprep.mubr.bf16.mxu0 0
      %711 = vmatmul.mubr.bf16.gmra.mrb[0].mxu0 %v633
      %v712 = vpop.f32.mrb[0].mxu0
      %v713 = vadd.f32 %v606, %v712
      %v714 = vpop.f32.mrb[0].mxu0
      %v715 = vpop.f32.mrb[0].mxu0
      %v716 = vadd.f32 %v609, %v715
      %v717 = vpop.f32.mrb[0].mxu0
      %718 = vdwg.mxu0
      %s719 = scalar_lea.vmem %s4, 16
      %v720 = vld [vmem:[%s719] sm:$0xf]
      %v721 = vld [vmem:[%s719 + $0x4] sm:$0xf]
      %v724 = vunpack.c.l.b16 %v720
      %v725 = vunpack.c.l.b16 %v721
      %v726 = vpack.c.b16 %v725, %v724
      %727 = vrot.lane.b32.xlu0 %v490, 17
      %v728 = vpop.permute.xlu0 %727
      %729 = vrot.lane.b32.xlu0 %v491, 17
      %v730 = vpop.permute.xlu0 %729
      %731 = vrot.lane.b32.xlu0 %v492, 17
      %v732 = vpop.permute.xlu0 %731
      %733 = vrot.lane.b32.xlu0 %v493, 17
      %v734 = vpop.permute.xlu0 %733
      %vm735 = vcmask 138240
      %v736 = vsel %vm735, %v728, %v730
      %v737 = vsel %vm735, %v730, %v732
      %v738 = vsel %vm735, %v732, %v734
      %v743 = vsel %vm524, %v726, 0
      %745 = vmatprep.subr.bf16.mxu0 %v737
      %746 = vmatpush1.bf16.msra.mxu0 %v736
      %747 = vmatprep.subr.bf16.mxu0 0
      %748 = vmatpush1.bf16.msra.mxu0 0
      %749 = vmatprep.subr.bf16.mxu0 0
      %750 = vmatpush1.bf16.msra.mxu0 0
      %751 = vmatprep.subr.bf16.mxu0 0
      %752 = vmatpush1.bf16.msra.mxu0 0
      %753 = vmatprep.subr.bf16.mxu0 0
      %754 = vmatpush1.bf16.msra.mxu0 0
      %755 = vmatprep.subr.bf16.mxu0 0
      %756 = vmatpush1.bf16.msra.mxu0 0
      %757 = vmatprep.subr.bf16.mxu0 0
      %758 = vmatpush1.bf16.msra.mxu0 0
      %759 = vmatprep.subr.bf16.mxu0 0
      %760 = vmatpush1.bf16.msra.mxu0 0
      %761 = vmatprep.subr.bf16.mxu0 0
      %762 = vmatpush1.bf16.msra.mxu0 0
      %763 = vmatprep.subr.bf16.mxu0 0
      %764 = vmatpush1.bf16.msra.mxu0 0
      %765 = vmatprep.subr.bf16.mxu0 0
      %766 = vmatpush1.bf16.msra.mxu0 0
      %767 = vmatprep.subr.bf16.mxu0 0
      %768 = vmatpush1.bf16.msra.mxu0 0
      %769 = vmatprep.subr.bf16.mxu0 0
      %770 = vmatpush1.bf16.msra.mxu0 0
      %771 = vmatprep.subr.bf16.mxu0 0
      %772 = vmatpush1.bf16.msra.mxu0 0
      %773 = vmatprep.subr.bf16.mxu0 0
      %774 = vmatpush1.bf16.msra.mxu0 0
      %775 = vmatprep.subr.bf16.mxu0 0
      %776 = vmatpush1.bf16.msra.mxu0 0
      %777 = vmatprep.mubr.bf16.mxu0 0
      %778 = vmatmul.mubr.bf16.gmra.mrb[0].mxu0 %v743
      %v779 = vpop.f32.mrb[0].mxu0
      %v780 = vadd.f32 0.0, %v779
      %v781 = vpop.f32.mrb[0].mxu0
      %v782 = vadd.f32 0.0, %v781
      %v783 = vpop.f32.mrb[0].mxu0
      %v784 = vadd.f32 0.0, %v783
      %v785 = vpop.f32.mrb[0].mxu0
      %v786 = vadd.f32 0.0, %v785
      %787 = vdwg.mxu0
      %788 = vmatprep.subr.bf16.mxu0 0
      %789 = vmatpush1.bf16.msra.mxu0 %v738
      %790 = vmatprep.subr.bf16.mxu0 0
      %791 = vmatpush1.bf16.msra.mxu0 0
      %792 = vmatprep.subr.bf16.mxu0 0
      %793 = vmatpush1.bf16.msra.mxu0 0
      %794 = vmatprep.subr.bf16.mxu0 0
      %795 = vmatpush1.bf16.msra.mxu0 0
      %796 = vmatprep.subr.bf16.mxu0 0
      %797 = vmatpush1.bf16.msra.mxu0 0
      %798 = vmatprep.subr.bf16.mxu0 0
      %799 = vmatpush1.bf16.msra.mxu0 0
      %800 = vmatprep.subr.bf16.mxu0 0
      %801 = vmatpush1.bf16.msra.mxu0 0
      %802 = vmatprep.subr.bf16.mxu0 0
      %803 = vmatpush1.bf16.msra.mxu0 0
      %804 = vmatprep.subr.bf16.mxu0 0
      %805 = vmatpush1.bf16.msra.mxu0 0
      %806 = vmatprep.subr.bf16.mxu0 0
      %807 = vmatpush1.bf16.msra.mxu0 0
      %808 = vmatprep.subr.bf16.mxu0 0
      %809 = vmatpush1.bf16.msra.mxu0 0
      %810 = vmatprep.subr.bf16.mxu0 0
      %811 = vmatpush1.bf16.msra.mxu0 0
      %812 = vmatprep.subr.bf16.mxu0 0
      %813 = vmatpush1.bf16.msra.mxu0 0
      %814 = vmatprep.subr.bf16.mxu0 0
      %815 = vmatpush1.bf16.msra.mxu0 0
      %816 = vmatprep.subr.bf16.mxu0 0
      %817 = vmatpush1.bf16.msra.mxu0 0
      %818 = vmatprep.subr.bf16.mxu0 0
      %819 = vmatpush1.bf16.msra.mxu0 0
      %820 = vmatprep.mubr.bf16.mxu0 0
      %821 = vmatmul.mubr.bf16.gmra.mrb[0].mxu0 %v743
      %v822 = vpop.f32.mrb[0].mxu0
      %v823 = vadd.f32 0.0, %v822
      %v824 = vpop.f32.mrb[0].mxu0
      %v825 = vpop.f32.mrb[0].mxu0
      %v826 = vadd.f32 0.0, %v825
      %v827 = vpop.f32.mrb[0].mxu0
      %828 = vdwg.mxu0
      %v829 = vadd.f32 %v670, %v780
      %v830 = vadd.f32 %v672, %v782
      %v831 = vadd.f32 %v713, %v823
      %v832 = vadd.f32 %v674, %v784
      %v833 = vadd.f32 %v676, %v786
      %v834 = vadd.f32 %v716, %v826
      %s835 = scalar_lea.vmem %s4, 24
      %v836 = vld [vmem:[%s835] sm:$0xf]
      %v837 = vld [vmem:[%s835 + $0x4] sm:$0xf]
      %v840 = vunpack.c.l.b16 %v836
      %v841 = vunpack.c.l.b16 %v837
      %v842 = vpack.c.b16 %v841, %v840
      %843 = vrot.lane.b32.xlu0 %v490, 1
      %v844 = vpop.permute.xlu0 %843
      %845 = vrot.lane.b32.xlu0 %v491, 1
      %v846 = vpop.permute.xlu0 %845
      %847 = vrot.lane.b32.xlu0 %v492, 1
      %v848 = vpop.permute.xlu0 %847
      %849 = vrot.lane.b32.xlu0 %v493, 1
      %v850 = vpop.permute.xlu0 %849
      %vm851 = vcmask 7168
      %v852 = vsel %vm851, %v844, %v846
      %v853 = vsel %vm851, %v846, %v848
      %v854 = vsel %vm851, %v848, %v850
      %v859 = vsel %vm524, %v842, 0
      %861 = vmatprep.subr.bf16.mxu0 %v853
      %862 = vmatpush1.bf16.msra.mxu0 %v852
      %863 = vmatprep.subr.bf16.mxu0 0
      %864 = vmatpush1.bf16.msra.mxu0 0
      %865 = vmatprep.subr.bf16.mxu0 0
      %866 = vmatpush1.bf16.msra.mxu0 0
      %867 = vmatprep.subr.bf16.mxu0 0
      %868 = vmatpush1.bf16.msra.mxu0 0
      %869 = vmatprep.subr.bf16.mxu0 0
      %870 = vmatpush1.bf16.msra.mxu0 0
      %871 = vmatprep.subr.bf16.mxu0 0
      %872 = vmatpush1.bf16.msra.mxu0 0
      %873 = vmatprep.subr.bf16.mxu0 0
      %874 = vmatpush1.bf16.msra.mxu0 0
      %875 = vmatprep.subr.bf16.mxu0 0
      %876 = vmatpush1.bf16.msra.mxu0 0
      %877 = vmatprep.subr.bf16.mxu0 0
      %878 = vmatpush1.bf16.msra.mxu0 0
      %879 = vmatprep.subr.bf16.mxu0 0
      %880 = vmatpush1.bf16.msra.mxu0 0
      %881 = vmatprep.subr.bf16.mxu0 0
      %882 = vmatpush1.bf16.msra.mxu0 0
      %883 = vmatprep.subr.bf16.mxu0 0
      %884 = vmatpush1.bf16.msra.mxu0 0
      %885 = vmatprep.subr.bf16.mxu0 0
      %886 = vmatpush1.bf16.msra.mxu0 0
      %887 = vmatprep.subr.bf16.mxu0 0
      %888 = vmatpush1.bf16.msra.mxu0 0
      %889 = vmatprep.subr.bf16.mxu0 0
      %890 = vmatpush1.bf16.msra.mxu0 0
      %891 = vmatprep.subr.bf16.mxu0 0
      %892 = vmatpush1.bf16.msra.mxu0 0
      %893 = vmatprep.mubr.bf16.mxu0 0
      %894 = vmatmul.mubr.bf16.gmra.mrb[0].mxu0 %v859
      %v895 = vpop.f32.mrb[0].mxu0
      %v896 = vadd.f32 0.0, %v895
      %v897 = vpop.f32.mrb[0].mxu0
      %v898 = vadd.f32 0.0, %v897
      %v899 = vpop.f32.mrb[0].mxu0
      %v900 = vadd.f32 0.0, %v899
      %v901 = vpop.f32.mrb[0].mxu0
      %v902 = vadd.f32 0.0, %v901
      %903 = vdwg.mxu0
      %904 = vmatprep.subr.bf16.mxu0 0
      %905 = vmatpush1.bf16.msra.mxu0 %v854
      %906 = vmatprep.subr.bf16.mxu0 0
      %907 = vmatpush1.bf16.msra.mxu0 0
      %908 = vmatprep.subr.bf16.mxu0 0
      %909 = vmatpush1.bf16.msra.mxu0 0
      %910 = vmatprep.subr.bf16.mxu0 0
      %911 = vmatpush1.bf16.msra.mxu0 0
      %912 = vmatprep.subr.bf16.mxu0 0
      %913 = vmatpush1.bf16.msra.mxu0 0
      %914 = vmatprep.subr.bf16.mxu0 0
      %915 = vmatpush1.bf16.msra.mxu0 0
      %916 = vmatprep.subr.bf16.mxu0 0
      %917 = vmatpush1.bf16.msra.mxu0 0
      %918 = vmatprep.subr.bf16.mxu0 0
      %919 = vmatpush1.bf16.msra.mxu0 0
      %920 = vmatprep.subr.bf16.mxu0 0
      %921 = vmatpush1.bf16.msra.mxu0 0
      %922 = vmatprep.subr.bf16.mxu0 0
      %923 = vmatpush1.bf16.msra.mxu0 0
      %924 = vmatprep.subr.bf16.mxu0 0
      %925 = vmatpush1.bf16.msra.mxu0 0
      %926 = vmatprep.subr.bf16.mxu0 0
      %927 = vmatpush1.bf16.msra.mxu0 0
      %928 = vmatprep.subr.bf16.mxu0 0
      %929 = vmatpush1.bf16.msra.mxu0 0
      %930 = vmatprep.subr.bf16.mxu0 0
      %931 = vmatpush1.bf16.msra.mxu0 0
      %932 = vmatprep.subr.bf16.mxu0 0
      %933 = vmatpush1.bf16.msra.mxu0 0
      %934 = vmatprep.subr.bf16.mxu0 0
      %935 = vmatpush1.bf16.msra.mxu0 0
      %936 = vmatprep.mubr.bf16.mxu0 0
      %937 = vmatmul.mubr.bf16.gmra.mrb[0].mxu0 %v859
      %v938 = vpop.f32.mrb[0].mxu0
      %v939 = vadd.f32 0.0, %v938
      %v940 = vpop.f32.mrb[0].mxu0
      %v941 = vpop.f32.mrb[0].mxu0
      %v942 = vadd.f32 0.0, %v941
      %v943 = vpop.f32.mrb[0].mxu0
      %944 = vdwg.mxu0
      %v945 = vadd.f32 %v829, %v896
      %v946 = vadd.f32 %v830, %v898
      %v947 = vadd.f32 %v831, %v939
      %v948 = vadd.f32 %v832, %v900
      %v949 = vadd.f32 %v833, %v902
      %v950 = vadd.f32 %v834, %v942
      %s951 = scalar_lea.vmem %s4, 32
      %v952 = vld [vmem:[%s951] sm:$0xf]
      %v953 = vld [vmem:[%s951 + $0x4] sm:$0xf]
      %v956 = vunpack.c.l.b16 %v952
      %v957 = vunpack.c.l.b16 %v953
      %v958 = vpack.c.b16 %v957, %v956
      %v960 = vsel %vm524, %v958, 0
      %962 = vmatprep.subr.bf16.mxu0 %v492
      %963 = vmatpush1.bf16.msra.mxu0 %v491
      %964 = vmatprep.subr.bf16.mxu0 0
      %965 = vmatpush1.bf16.msra.mxu0 0
      %966 = vmatprep.subr.bf16.mxu0 0
      %967 = vmatpush1.bf16.msra.mxu0 0
      %968 = vmatprep.subr.bf16.mxu0 0
      %969 = vmatpush1.bf16.msra.mxu0 0
      %970 = vmatprep.subr.bf16.mxu0 0
      %971 = vmatpush1.bf16.msra.mxu0 0
      %972 = vmatprep.subr.bf16.mxu0 0
      %973 = vmatpush1.bf16.msra.mxu0 0
      %974 = vmatprep.subr.bf16.mxu0 0
      %975 = vmatpush1.bf16.msra.mxu0 0
      %976 = vmatprep.subr.bf16.mxu0 0
      %977 = vmatpush1.bf16.msra.mxu0 0
      %978 = vmatprep.subr.bf16.mxu0 0
      %979 = vmatpush1.bf16.msra.mxu0 0
      %980 = vmatprep.subr.bf16.mxu0 0
      %981 = vmatpush1.bf16.msra.mxu0 0
      %982 = vmatprep.subr.bf16.mxu0 0
      %983 = vmatpush1.bf16.msra.mxu0 0
      %984 = vmatprep.subr.bf16.mxu0 0
      %985 = vmatpush1.bf16.msra.mxu0 0
      %986 = vmatprep.subr.bf16.mxu0 0
      %987 = vmatpush1.bf16.msra.mxu0 0
      %988 = vmatprep.subr.bf16.mxu0 0
      %989 = vmatpush1.bf16.msra.mxu0 0
      %990 = vmatprep.subr.bf16.mxu0 0
      %991 = vmatpush1.bf16.msra.mxu0 0
      %992 = vmatprep.subr.bf16.mxu0 0
      %993 = vmatpush1.bf16.msra.mxu0 0
      %994 = vmatprep.mubr.bf16.mxu0 0
      %995 = vmatmul.mubr.bf16.gmra.mrb[0].mxu0 %v960
      %v996 = vpop.f32.mrb[0].mxu0
      %v997 = vadd.f32 0.0, %v996
      %v998 = vpop.f32.mrb[0].mxu0
      %v999 = vadd.f32 0.0, %v998
      %v1000 = vpop.f32.mrb[0].mxu0
      %v1001 = vadd.f32 0.0, %v1000
      %v1002 = vpop.f32.mrb[0].mxu0
      %v1003 = vadd.f32 0.0, %v1002
      %1004 = vdwg.mxu0
      %1005 = vmatprep.subr.bf16.mxu0 0
      %1006 = vmatpush1.bf16.msra.mxu0 %v493
      %1007 = vmatprep.subr.bf16.mxu0 0
      %1008 = vmatpush1.bf16.msra.mxu0 0
      %1009 = vmatprep.subr.bf16.mxu0 0
      %1010 = vmatpush1.bf16.msra.mxu0 0
      %1011 = vmatprep.subr.bf16.mxu0 0
      %1012 = vmatpush1.bf16.msra.mxu0 0
      %1013 = vmatprep.subr.bf16.mxu0 0
      %1014 = vmatpush1.bf16.msra.mxu0 0
      %1015 = vmatprep.subr.bf16.mxu0 0
      %1016 = vmatpush1.bf16.msra.mxu0 0
      %1017 = vmatprep.subr.bf16.mxu0 0
      %1018 = vmatpush1.bf16.msra.mxu0 0
      %1019 = vmatprep.subr.bf16.mxu0 0
      %1020 = vmatpush1.bf16.msra.mxu0 0
      %1021 = vmatprep.subr.bf16.mxu0 0
      %1022 = vmatpush1.bf16.msra.mxu0 0
      %1023 = vmatprep.subr.bf16.mxu0 0
      %1024 = vmatpush1.bf16.msra.mxu0 0
      %1025 = vmatprep.subr.bf16.mxu0 0
      %1026 = vmatpush1.bf16.msra.mxu0 0
      %1027 = vmatprep.subr.bf16.mxu0 0
      %1028 = vmatpush1.bf16.msra.mxu0 0
      %1029 = vmatprep.subr.bf16.mxu0 0
      %1030 = vmatpush1.bf16.msra.mxu0 0
      %1031 = vmatprep.subr.bf16.mxu0 0
      %1032 = vmatpush1.bf16.msra.mxu0 0
      %1033 = vmatprep.subr.bf16.mxu0 0
      %1034 = vmatpush1.bf16.msra.mxu0 0
      %1035 = vmatprep.subr.bf16.mxu0 0
      %1036 = vmatpush1.bf16.msra.mxu0 0
      %1037 = vmatprep.mubr.bf16.mxu0 0
      %1038 = vmatmul.mubr.bf16.gmra.mrb[0].mxu0 %v960
      %v1039 = vpop.f32.mrb[0].mxu0
      %v1040 = vadd.f32 0.0, %v1039
      %v1041 = vpop.f32.mrb[0].mxu0
      %v1042 = vpop.f32.mrb[0].mxu0
      %v1043 = vadd.f32 0.0, %v1042
      %v1044 = vpop.f32.mrb[0].mxu0
      %1045 = vdwg.mxu0
      %v1046 = vadd.f32 %v945, %v997
      %v1047 = vadd.f32 %v946, %v999
      %v1048 = vadd.f32 %v947, %v1040
      %v1049 = vadd.f32 %v948, %v1001
      %v1050 = vadd.f32 %v949, %v1003
      %v1051 = vadd.f32 %v950, %v1043
      %s1052 = scalar_lea.vmem %s4, 40
      %v1053 = vld [vmem:[%s1052] sm:$0xf]
      %v1054 = vld [vmem:[%s1052 + $0x4] sm:$0xf]
      %v1057 = vunpack.c.l.b16 %v1053
      %v1058 = vunpack.c.l.b16 %v1054
      %v1059 = vpack.c.b16 %v1058, %v1057
      %1061 = vrot.lane.b32.xlu0 %v491, 127
      %v1062 = vpop.permute.xlu0 %1061
      %1063 = vrot.lane.b32.xlu0 %v492, 127
      %v1064 = vpop.permute.xlu0 %1063
      %1065 = vrot.lane.b32.xlu0 %v493, 127
      %v1066 = vpop.permute.xlu0 %1065
      %1067 = vrot.lane.b32.xlu0 %v494, 127
      %v1068 = vpop.permute.xlu0 %1067
      %vm1069 = vcmask 1039360
      %v1070 = vsel %vm1069, %v1062, %v1064
      %v1071 = vsel %vm1069, %v1064, %v1066
      %v1072 = vsel %vm1069, %v1066, %v1068
      %v1077 = vsel %vm524, %v1059, 0
      %1079 = vmatprep.subr.bf16.mxu0 %v1071
      %1080 = vmatpush1.bf16.msra.mxu0 %v1070
      %1081 = vmatprep.subr.bf16.mxu0 0
      %1082 = vmatpush1.bf16.msra.mxu0 0
      %1083 = vmatprep.subr.bf16.mxu0 0
      %1084 = vmatpush1.bf16.msra.mxu0 0
      %1085 = vmatprep.subr.bf16.mxu0 0
      %1086 = vmatpush1.bf16.msra.mxu0 0
      %1087 = vmatprep.subr.bf16.mxu0 0
      %1088 = vmatpush1.bf16.msra.mxu0 0
      %1089 = vmatprep.subr.bf16.mxu0 0
      %1090 = vmatpush1.bf16.msra.mxu0 0
      %1091 = vmatprep.subr.bf16.mxu0 0
      %1092 = vmatpush1.bf16.msra.mxu0 0
      %1093 = vmatprep.subr.bf16.mxu0 0
      %1094 = vmatpush1.bf16.msra.mxu0 0
      %1095 = vmatprep.subr.bf16.mxu0 0
      %1096 = vmatpush1.bf16.msra.mxu0 0
      %1097 = vmatprep.subr.bf16.mxu0 0
      %1098 = vmatpush1.bf16.msra.mxu0 0
      %1099 = vmatprep.subr.bf16.mxu0 0
      %1100 = vmatpush1.bf16.msra.mxu0 0
      %1101 = vmatprep.subr.bf16.mxu0 0
      %1102 = vmatpush1.bf16.msra.mxu0 0
      %1103 = vmatprep.subr.bf16.mxu0 0
      %1104 = vmatpush1.bf16.msra.mxu0 0
      %1105 = vmatprep.subr.bf16.mxu0 0
      %1106 = vmatpush1.bf16.msra.mxu0 0
      %1107 = vmatprep.subr.bf16.mxu0 0
      %1108 = vmatpush1.bf16.msra.mxu0 0
      %1109 = vmatprep.subr.bf16.mxu0 0
      %1110 = vmatpush1.bf16.msra.mxu0 0
      %1111 = vmatprep.mubr.bf16.mxu0 0
      %1112 = vmatmul.mubr.bf16.gmra.mrb[0].mxu0 %v1077
      %v1113 = vpop.f32.mrb[0].mxu0
      %v1114 = vadd.f32 0.0, %v1113
      %v1115 = vpop.f32.mrb[0].mxu0
      %v1116 = vadd.f32 0.0, %v1115
      %v1117 = vpop.f32.mrb[0].mxu0
      %v1118 = vadd.f32 0.0, %v1117
      %v1119 = vpop.f32.mrb[0].mxu0
      %v1120 = vadd.f32 0.0, %v1119
      %1121 = vdwg.mxu0
      %1122 = vmatprep.subr.bf16.mxu0 0
      %1123 = vmatpush1.bf16.msra.mxu0 %v1072
      %1124 = vmatprep.subr.bf16.mxu0 0
      %1125 = vmatpush1.bf16.msra.mxu0 0
      %1126 = vmatprep.subr.bf16.mxu0 0
      %1127 = vmatpush1.bf16.msra.mxu0 0
      %1128 = vmatprep.subr.bf16.mxu0 0
      %1129 = vmatpush1.bf16.msra.mxu0 0
      %1130 = vmatprep.subr.bf16.mxu0 0
      %1131 = vmatpush1.bf16.msra.mxu0 0
      %1132 = vmatprep.subr.bf16.mxu0 0
      %1133 = vmatpush1.bf16.msra.mxu0 0
      %1134 = vmatprep.subr.bf16.mxu0 0
      %1135 = vmatpush1.bf16.msra.mxu0 0
      %1136 = vmatprep.subr.bf16.mxu0 0
      %1137 = vmatpush1.bf16.msra.mxu0 0
      %1138 = vmatprep.subr.bf16.mxu0 0
      %1139 = vmatpush1.bf16.msra.mxu0 0
      %1140 = vmatprep.subr.bf16.mxu0 0
      %1141 = vmatpush1.bf16.msra.mxu0 0
      %1142 = vmatprep.subr.bf16.mxu0 0
      %1143 = vmatpush1.bf16.msra.mxu0 0
      %1144 = vmatprep.subr.bf16.mxu0 0
      %1145 = vmatpush1.bf16.msra.mxu0 0
      %1146 = vmatprep.subr.bf16.mxu0 0
      %1147 = vmatpush1.bf16.msra.mxu0 0
      %1148 = vmatprep.subr.bf16.mxu0 0
      %1149 = vmatpush1.bf16.msra.mxu0 0
      %1150 = vmatprep.subr.bf16.mxu0 0
      %1151 = vmatpush1.bf16.msra.mxu0 0
      %1152 = vmatprep.subr.bf16.mxu0 0
      %1153 = vmatpush1.bf16.msra.mxu0 0
      %1154 = vmatprep.mubr.bf16.mxu0 0
      %1155 = vmatmul.mubr.bf16.gmra.mrb[0].mxu0 %v1077
      %v1156 = vpop.f32.mrb[0].mxu0
      %v1157 = vadd.f32 0.0, %v1156
      %v1158 = vpop.f32.mrb[0].mxu0
      %v1159 = vpop.f32.mrb[0].mxu0
      %v1160 = vadd.f32 0.0, %v1159
      %v1161 = vpop.f32.mrb[0].mxu0
      %1162 = vdwg.mxu0
      %v1163 = vadd.f32 %v1046, %v1114
      %v1164 = vadd.f32 %v1047, %v1116
      %v1165 = vadd.f32 %v1048, %v1157
      %v1166 = vadd.f32 %v1049, %v1118
      %v1167 = vadd.f32 %v1050, %v1120
      %v1168 = vadd.f32 %v1051, %v1160
      %s1169 = scalar_lea.vmem %s4, 48
      %v1170 = vld [vmem:[%s1169] sm:$0xf]
      %v1171 = vld [vmem:[%s1169 + $0x4] sm:$0xf]
      %v1174 = vunpack.c.l.b16 %v1170
      %v1175 = vunpack.c.l.b16 %v1171
      %v1176 = vpack.c.b16 %v1175, %v1174
      %1177 = vrot.lane.b32.xlu0 %v491, 111
      %v1178 = vpop.permute.xlu0 %1177
      %1179 = vrot.lane.b32.xlu0 %v492, 111
      %v1180 = vpop.permute.xlu0 %1179
      %1181 = vrot.lane.b32.xlu0 %v493, 111
      %v1182 = vpop.permute.xlu0 %1181
      %1183 = vrot.lane.b32.xlu0 %v494, 111
      %v1184 = vpop.permute.xlu0 %1183
      %vm1185 = vcmask 908288
      %v1186 = vsel %vm1185, %v1178, %v1180
      %v1187 = vsel %vm1185, %v1180, %v1182
      %v1188 = vsel %vm1185, %v1182, %v1184
      %v1193 = vsel %vm524, %v1176, 0
      %1195 = vmatprep.subr.bf16.mxu0 %v1187
      %1196 = vmatpush1.bf16.msra.mxu0 %v1186
      %1197 = vmatprep.subr.bf16.mxu0 0
      %1198 = vmatpush1.bf16.msra.mxu0 0
      %1199 = vmatprep.subr.bf16.mxu0 0
      %1200 = vmatpush1.bf16.msra.mxu0 0
      %1201 = vmatprep.subr.bf16.mxu0 0
      %1202 = vmatpush1.bf16.msra.mxu0 0
      %1203 = vmatprep.subr.bf16.mxu0 0
      %1204 = vmatpush1.bf16.msra.mxu0 0
      %1205 = vmatprep.subr.bf16.mxu0 0
      %1206 = vmatpush1.bf16.msra.mxu0 0
      %1207 = vmatprep.subr.bf16.mxu0 0
      %1208 = vmatpush1.bf16.msra.mxu0 0
      %1209 = vmatprep.subr.bf16.mxu0 0
      %1210 = vmatpush1.bf16.msra.mxu0 0
      %1211 = vmatprep.subr.bf16.mxu0 0
      %1212 = vmatpush1.bf16.msra.mxu0 0
      %1213 = vmatprep.subr.bf16.mxu0 0
      %1214 = vmatpush1.bf16.msra.mxu0 0
      %1215 = vmatprep.subr.bf16.mxu0 0
      %1216 = vmatpush1.bf16.msra.mxu0 0
      %1217 = vmatprep.subr.bf16.mxu0 0
      %1218 = vmatpush1.bf16.msra.mxu0 0
      %1219 = vmatprep.subr.bf16.mxu0 0
      %1220 = vmatpush1.bf16.msra.mxu0 0
      %1221 = vmatprep.subr.bf16.mxu0 0
      %1222 = vmatpush1.bf16.msra.mxu0 0
      %1223 = vmatprep.subr.bf16.mxu0 0
      %1224 = vmatpush1.bf16.msra.mxu0 0
      %1225 = vmatprep.subr.bf16.mxu0 0
      %1226 = vmatpush1.bf16.msra.mxu0 0
      %1227 = vmatprep.mubr.bf16.mxu0 0
      %1228 = vmatmul.mubr.bf16.gmra.mrb[0].mxu0 %v1193
      %v1229 = vpop.f32.mrb[0].mxu0
      %v1230 = vadd.f32 0.0, %v1229
      %v1231 = vpop.f32.mrb[0].mxu0
      %v1232 = vadd.f32 0.0, %v1231
      %v1233 = vpop.f32.mrb[0].mxu0
      %v1234 = vadd.f32 0.0, %v1233
      %v1235 = vpop.f32.mrb[0].mxu0
      %v1236 = vadd.f32 0.0, %v1235
      %1237 = vdwg.mxu0
      %1238 = vmatprep.subr.bf16.mxu0 0
      %1239 = vmatpush1.bf16.msra.mxu0 %v1188
      %1240 = vmatprep.subr.bf16.mxu0 0
      %1241 = vmatpush1.bf16.msra.mxu0 0
      %1242 = vmatprep.subr.bf16.mxu0 0
      %1243 = vmatpush1.bf16.msra.mxu0 0
      %1244 = vmatprep.subr.bf16.mxu0 0
      %1245 = vmatpush1.bf16.msra.mxu0 0
      %1246 = vmatprep.subr.bf16.mxu0 0
      %1247 = vmatpush1.bf16.msra.mxu0 0
      %1248 = vmatprep.subr.bf16.mxu0 0
      %1249 = vmatpush1.bf16.msra.mxu0 0
      %1250 = vmatprep.subr.bf16.mxu0 0
      %1251 = vmatpush1.bf16.msra.mxu0 0
      %1252 = vmatprep.subr.bf16.mxu0 0
      %1253 = vmatpush1.bf16.msra.mxu0 0
      %1254 = vmatprep.subr.bf16.mxu0 0
      %1255 = vmatpush1.bf16.msra.mxu0 0
      %1256 = vmatprep.subr.bf16.mxu0 0
      %1257 = vmatpush1.bf16.msra.mxu0 0
      %1258 = vmatprep.subr.bf16.mxu0 0
      %1259 = vmatpush1.bf16.msra.mxu0 0
      %1260 = vmatprep.subr.bf16.mxu0 0
      %1261 = vmatpush1.bf16.msra.mxu0 0
      %1262 = vmatprep.subr.bf16.mxu0 0
      %1263 = vmatpush1.bf16.msra.mxu0 0
      %1264 = vmatprep.subr.bf16.mxu0 0
      %1265 = vmatpush1.bf16.msra.mxu0 0
      %1266 = vmatprep.subr.bf16.mxu0 0
      %1267 = vmatpush1.bf16.msra.mxu0 0
      %1268 = vmatprep.subr.bf16.mxu0 0
      %1269 = vmatpush1.bf16.msra.mxu0 0
      %1270 = vmatprep.mubr.bf16.mxu0 0
      %1271 = vmatmul.mubr.bf16.gmra.mrb[0].mxu0 %v1193
      %v1272 = vpop.f32.mrb[0].mxu0
      %v1273 = vadd.f32 0.0, %v1272
      %v1274 = vpop.f32.mrb[0].mxu0
      %v1275 = vpop.f32.mrb[0].mxu0
      %v1276 = vadd.f32 0.0, %v1275
      %v1277 = vpop.f32.mrb[0].mxu0
      %1278 = vdwg.mxu0
      %v1279 = vadd.f32 %v1163, %v1230
      %v1280 = vadd.f32 %v1164, %v1232
      %v1281 = vadd.f32 %v1165, %v1273
      %v1282 = vadd.f32 %v1166, %v1234
      %v1283 = vadd.f32 %v1167, %v1236
      %v1284 = vadd.f32 %v1168, %v1276
      %s1285 = scalar_lea.vmem %s4, 56
      %v1286 = vld [vmem:[%s1285] sm:$0xf]
      %v1287 = vld [vmem:[%s1285 + $0x4] sm:$0xf]
      %v1290 = vunpack.c.l.b16 %v1286
      %v1291 = vunpack.c.l.b16 %v1287
      %v1292 = vpack.c.b16 %v1291, %v1290
      %1293 = vrot.lane.b32.xlu0 %v491, 110
      %v1294 = vpop.permute.xlu0 %1293
      %1295 = vrot.lane.b32.xlu0 %v492, 110
      %v1296 = vpop.permute.xlu0 %1295
      %1297 = vrot.lane.b32.xlu0 %v493, 110
      %v1298 = vpop.permute.xlu0 %1297
      %1299 = vrot.lane.b32.xlu0 %v494, 110
      %v1300 = vpop.permute.xlu0 %1299
      %vm1301 = vcmask 900096
      %v1302 = vsel %vm1301, %v1294, %v1296
      %v1303 = vsel %vm1301, %v1296, %v1298
      %v1304 = vsel %vm1301, %v1298, %v1300
      %v1309 = vsel %vm524, %v1292, 0
      %1311 = vmatprep.subr.bf16.mxu0 %v1303
      %1312 = vmatpush1.bf16.msra.mxu0 %v1302
      %1313 = vmatprep.subr.bf16.mxu0 0
      %1314 = vmatpush1.bf16.msra.mxu0 0
      %1315 = vmatprep.subr.bf16.mxu0 0
      %1316 = vmatpush1.bf16.msra.mxu0 0
      %1317 = vmatprep.subr.bf16.mxu0 0
      %1318 = vmatpush1.bf16.msra.mxu0 0
      %1319 = vmatprep.subr.bf16.mxu0 0
      %1320 = vmatpush1.bf16.msra.mxu0 0
      %1321 = vmatprep.subr.bf16.mxu0 0
      %1322 = vmatpush1.bf16.msra.mxu0 0
      %1323 = vmatprep.subr.bf16.mxu0 0
      %1324 = vmatpush1.bf16.msra.mxu0 0
      %1325 = vmatprep.subr.bf16.mxu0 0
      %1326 = vmatpush1.bf16.msra.mxu0 0
      %1327 = vmatprep.subr.bf16.mxu0 0
      %1328 = vmatpush1.bf16.msra.mxu0 0
      %1329 = vmatprep.subr.bf16.mxu0 0
      %1330 = vmatpush1.bf16.msra.mxu0 0
      %1331 = vmatprep.subr.bf16.mxu0 0
      %1332 = vmatpush1.bf16.msra.mxu0 0
      %1333 = vmatprep.subr.bf16.mxu0 0
      %1334 = vmatpush1.bf16.msra.mxu0 0
      %1335 = vmatprep.subr.bf16.mxu0 0
      %1336 = vmatpush1.bf16.msra.mxu0 0
      %1337 = vmatprep.subr.bf16.mxu0 0
      %1338 = vmatpush1.bf16.msra.mxu0 0
      %1339 = vmatprep.subr.bf16.mxu0 0
      %1340 = vmatpush1.bf16.msra.mxu0 0
      %1341 = vmatprep.subr.bf16.mxu0 0
      %1342 = vmatpush1.bf16.msra.mxu0 0
      %1343 = vmatprep.mubr.bf16.mxu0 0
      %1344 = vmatmul.mubr.bf16.gmra.mrb[0].mxu0 %v1309
      %v1345 = vpop.f32.mrb[0].mxu0
      %v1346 = vadd.f32 0.0, %v1345
      %v1347 = vpop.f32.mrb[0].mxu0
      %v1348 = vadd.f32 0.0, %v1347
      %v1349 = vpop.f32.mrb[0].mxu0
      %v1350 = vadd.f32 0.0, %v1349
      %v1351 = vpop.f32.mrb[0].mxu0
      %v1352 = vadd.f32 0.0, %v1351
      %1353 = vdwg.mxu0
      %1354 = vmatprep.subr.bf16.mxu0 0
      %1355 = vmatpush1.bf16.msra.mxu0 %v1304
      %1356 = vmatprep.subr.bf16.mxu0 0
      %1357 = vmatpush1.bf16.msra.mxu0 0
      %1358 = vmatprep.subr.bf16.mxu0 0
      %1359 = vmatpush1.bf16.msra.mxu0 0
      %1360 = vmatprep.subr.bf16.mxu0 0
      %1361 = vmatpush1.bf16.msra.mxu0 0
      %1362 = vmatprep.subr.bf16.mxu0 0
      %1363 = vmatpush1.bf16.msra.mxu0 0
      %1364 = vmatprep.subr.bf16.mxu0 0
      %1365 = vmatpush1.bf16.msra.mxu0 0
      %1366 = vmatprep.subr.bf16.mxu0 0
      %1367 = vmatpush1.bf16.msra.mxu0 0
      %1368 = vmatprep.subr.bf16.mxu0 0
      %1369 = vmatpush1.bf16.msra.mxu0 0
      %1370 = vmatprep.subr.bf16.mxu0 0
      %1371 = vmatpush1.bf16.msra.mxu0 0
      %1372 = vmatprep.subr.bf16.mxu0 0
      %1373 = vmatpush1.bf16.msra.mxu0 0
      %1374 = vmatprep.subr.bf16.mxu0 0
      %1375 = vmatpush1.bf16.msra.mxu0 0
      %1376 = vmatprep.subr.bf16.mxu0 0
      %1377 = vmatpush1.bf16.msra.mxu0 0
      %1378 = vmatprep.subr.bf16.mxu0 0
      %1379 = vmatpush1.bf16.msra.mxu0 0
      %1380 = vmatprep.subr.bf16.mxu0 0
      %1381 = vmatpush1.bf16.msra.mxu0 0
      %1382 = vmatprep.subr.bf16.mxu0 0
      %1383 = vmatpush1.bf16.msra.mxu0 0
      %1384 = vmatprep.subr.bf16.mxu0 0
      %1385 = vmatpush1.bf16.msra.mxu0 0
      %1386 = vmatprep.mubr.bf16.mxu0 0
      %1387 = vmatmul.mubr.bf16.gmra.mrb[0].mxu0 %v1309
      %v1388 = vpop.f32.mrb[0].mxu0
      %v1389 = vadd.f32 0.0, %v1388
      %v1390 = vpop.f32.mrb[0].mxu0
      %v1391 = vpop.f32.mrb[0].mxu0
      %v1392 = vadd.f32 0.0, %v1391
      %v1393 = vpop.f32.mrb[0].mxu0
      %1394 = vdwg.mxu0
      %v1395 = vadd.f32 %v1279, %v1346
      %v1396 = vadd.f32 %v1280, %v1348
      %v1397 = vadd.f32 %v1281, %v1389
      %v1398 = vadd.f32 %v1282, %v1350
      %v1399 = vadd.f32 %v1283, %v1352
      %v1400 = vadd.f32 %v1284, %v1392
      %s1401 = scalar_lea.vmem %s4, 64
      %v1402 = vld [vmem:[%s1401] sm:$0xf]
      %v1403 = vld [vmem:[%s1401 + $0x4] sm:$0xf]
      %v1406 = vunpack.c.l.b16 %v1402
      %v1407 = vunpack.c.l.b16 %v1403
      %v1408 = vpack.c.b16 %v1407, %v1406
      %1409 = vrot.lane.b32.xlu0 %v491, 109
      %v1410 = vpop.permute.xlu0 %1409
      %1411 = vrot.lane.b32.xlu0 %v492, 109
      %v1412 = vpop.permute.xlu0 %1411
      %1413 = vrot.lane.b32.xlu0 %v493, 109
      %v1414 = vpop.permute.xlu0 %1413
      %1415 = vrot.lane.b32.xlu0 %v494, 109
      %v1416 = vpop.permute.xlu0 %1415
      %vm1417 = vcmask 891904
      %v1418 = vsel %vm1417, %v1410, %v1412
      %v1419 = vsel %vm1417, %v1412, %v1414
      %v1420 = vsel %vm1417, %v1414, %v1416
      %v1425 = vsel %vm524, %v1408, 0
      %1427 = vmatprep.subr.bf16.mxu0 %v1419
      %1428 = vmatpush1.bf16.msra.mxu0 %v1418
      %1429 = vmatprep.subr.bf16.mxu0 0
      %1430 = vmatpush1.bf16.msra.mxu0 0
      %1431 = vmatprep.subr.bf16.mxu0 0
      %1432 = vmatpush1.bf16.msra.mxu0 0
      %1433 = vmatprep.subr.bf16.mxu0 0
      %1434 = vmatpush1.bf16.msra.mxu0 0
      %1435 = vmatprep.subr.bf16.mxu0 0
      %1436 = vmatpush1.bf16.msra.mxu0 0
      %1437 = vmatprep.subr.bf16.mxu0 0
      %1438 = vmatpush1.bf16.msra.mxu0 0
      %1439 = vmatprep.subr.bf16.mxu0 0
      %1440 = vmatpush1.bf16.msra.mxu0 0
      %1441 = vmatprep.subr.bf16.mxu0 0
      %1442 = vmatpush1.bf16.msra.mxu0 0
      %1443 = vmatprep.subr.bf16.mxu0 0
      %1444 = vmatpush1.bf16.msra.mxu0 0
      %1445 = vmatprep.subr.bf16.mxu0 0
      %1446 = vmatpush1.bf16.msra.mxu0 0
      %1447 = vmatprep.subr.bf16.mxu0 0
      %1448 = vmatpush1.bf16.msra.mxu0 0
      %1449 = vmatprep.subr.bf16.mxu0 0
      %1450 = vmatpush1.bf16.msra.mxu0 0
      %1451 = vmatprep.subr.bf16.mxu0 0
      %1452 = vmatpush1.bf16.msra.mxu0 0
      %1453 = vmatprep.subr.bf16.mxu0 0
      %1454 = vmatpush1.bf16.msra.mxu0 0
      %1455 = vmatprep.subr.bf16.mxu0 0
      %1456 = vmatpush1.bf16.msra.mxu0 0
      %1457 = vmatprep.subr.bf16.mxu0 0
      %1458 = vmatpush1.bf16.msra.mxu0 0
      %1459 = vmatprep.mubr.bf16.mxu0 0
      %1460 = vmatmul.mubr.bf16.gmra.mrb[0].mxu0 %v1425
      %v1461 = vpop.f32.mrb[0].mxu0
      %v1462 = vadd.f32 0.0, %v1461
      %v1463 = vpop.f32.mrb[0].mxu0
      %v1464 = vadd.f32 0.0, %v1463
      %v1465 = vpop.f32.mrb[0].mxu0
      %v1466 = vadd.f32 0.0, %v1465
      %v1467 = vpop.f32.mrb[0].mxu0
      %v1468 = vadd.f32 0.0, %v1467
      %1469 = vdwg.mxu0
      %1470 = vmatprep.subr.bf16.mxu0 0
      %1471 = vmatpush1.bf16.msra.mxu0 %v1420
      %1472 = vmatprep.subr.bf16.mxu0 0
      %1473 = vmatpush1.bf16.msra.mxu0 0
      %1474 = vmatprep.subr.bf16.mxu0 0
      %1475 = vmatpush1.bf16.msra.mxu0 0
      %1476 = vmatprep.subr.bf16.mxu0 0
      %1477 = vmatpush1.bf16.msra.mxu0 0
      %1478 = vmatprep.subr.bf16.mxu0 0
      %1479 = vmatpush1.bf16.msra.mxu0 0
      %1480 = vmatprep.subr.bf16.mxu0 0
      %1481 = vmatpush1.bf16.msra.mxu0 0
      %1482 = vmatprep.subr.bf16.mxu0 0
      %1483 = vmatpush1.bf16.msra.mxu0 0
      %1484 = vmatprep.subr.bf16.mxu0 0
      %1485 = vmatpush1.bf16.msra.mxu0 0
      %1486 = vmatprep.subr.bf16.mxu0 0
      %1487 = vmatpush1.bf16.msra.mxu0 0
      %1488 = vmatprep.subr.bf16.mxu0 0
      %1489 = vmatpush1.bf16.msra.mxu0 0
      %1490 = vmatprep.subr.bf16.mxu0 0
      %1491 = vmatpush1.bf16.msra.mxu0 0
      %1492 = vmatprep.subr.bf16.mxu0 0
      %1493 = vmatpush1.bf16.msra.mxu0 0
      %1494 = vmatprep.subr.bf16.mxu0 0
      %1495 = vmatpush1.bf16.msra.mxu0 0
      %1496 = vmatprep.subr.bf16.mxu0 0
      %1497 = vmatpush1.bf16.msra.mxu0 0
      %1498 = vmatprep.subr.bf16.mxu0 0
      %1499 = vmatpush1.bf16.msra.mxu0 0
      %1500 = vmatprep.subr.bf16.mxu0 0
      %1501 = vmatpush1.bf16.msra.mxu0 0
      %1502 = vmatprep.mubr.bf16.mxu0 0
      %1503 = vmatmul.mubr.bf16.gmra.mrb[0].mxu0 %v1425
      %v1504 = vpop.f32.mrb[0].mxu0
      %v1505 = vadd.f32 0.0, %v1504
      %v1506 = vpop.f32.mrb[0].mxu0
      %v1507 = vpop.f32.mrb[0].mxu0
      %v1508 = vadd.f32 0.0, %v1507
      %v1509 = vpop.f32.mrb[0].mxu0
      %1510 = vdwg.mxu0
      %v1511 = vadd.f32 %v1395, %v1462
      %v1512 = vadd.f32 %v1396, %v1464
      %v1513 = vadd.f32 %v1397, %v1505
      %v1514 = vadd.f32 %v1398, %v1466
      %v1515 = vadd.f32 %v1399, %v1468
      %v1516 = vadd.f32 %v1400, %v1508
      %v1517 = vld [vmem:[%s5] sm:$0xff]
      %v1518 = vld [vmem:[%s5 + $0x8] sm:$0xff]
      %1520 = vset.pattern.permute.xlu0 0
      %1521 = vperm.xlu0 %1520, %v1517
      %v1522 = vpop.permute.xlu0 %1521
      %1525 = vset.pattern.permute.xlu0 0
      %1526 = vperm.xlu0 %1525, %v1518
      %v1527 = vpop.permute.xlu0 %1526
      %v1529 = vadd.f32 %v1511, %v1522
      %v1530 = vadd.f32 %v1512, %v1522
      %v1531 = vadd.f32 %v1513, %v1522
      %v1532 = vadd.f32 %v1514, %v1527
      %v1533 = vadd.f32 %v1515, %v1527
      %v1534 = vadd.f32 %v1516, %v1527
      %v1535 = vrot.slane %v454, 1
      %vm1536 = vcmp.ne.s32.totalorder %v1535, 0
      %v1537 = vsel %vm1536, 1, 0
      %v1538 = vlaneseq
      %v1539 = vshrl.u32 %v1538, 7
      %v1540 = vsub.s32 0, %v1539
      %v1541 = vrot.slane %v1537, %v1540
      %v1542 = vlaneseq
      %v1543 = vshrl.u32 %v1542, 7
      %v1544 = vsub.s32 1, %v1543
      %v1545 = vrot.slane %v1537, %v1544
      %v1546 = vlaneseq
      %v1547 = vshrl.u32 %v1546, 7
      %v1548 = vsub.s32 2, %v1547
      %v1549 = vrot.slane %v1537, %v1548
      %vm1550 = vcmp.eq.s32.totalorder %v1541, 1
      %vm1551 = vcmp.eq.s32.totalorder %v1545, 1
      %vm1552 = vcmp.eq.s32.totalorder %v1549, 1
      %v1553 = vsel %vm1550, %v1529, 0.0
      %v1554 = vsel %vm1551, %v1530, 0.0
      %v1555 = vsel %vm1552, %v1531, 0.0
      %v1556 = vsel %vm1550, %v1532, 0.0
      %v1557 = vsel %vm1551, %v1533, 0.0
      %v1558 = vsel %vm1552, %v1534, 0.0
      %v1559 = vadd.f32 %v1553, %v1554
      %v1560 = vadd.f32 %v1559, %v1555
      %1561 = vadd.xlane.f32.xlu0 %v1560
      %v1562 = vpop.xlane.xlu0 %1561
      %v1563 = vadd.f32 %v1556, %v1557
      %v1564 = vadd.f32 %v1563, %v1558
      %1565 = vadd.xlane.f32.xlu0 %v1564
      %v1566 = vpop.xlane.xlu0 %1565
      %v1567 = vmul.f32 %v1562, 0.00390625
      %v1568 = vmul.f32 %v1566, 0.00390625
      %v1569 = vsub.f32 %v1553, %v1567
      %v1570 = vsub.f32 %v1554, %v1567
      %v1571 = vsub.f32 %v1555, %v1567
      %v1572 = vsub.f32 %v1556, %v1568
      %v1573 = vsub.f32 %v1557, %v1568
      %v1574 = vsub.f32 %v1558, %v1568
      %v1575 = vsel %vm1550, %v1569, 0.0
      %v1576 = vsel %vm1551, %v1570, 0.0
      %v1577 = vsel %vm1552, %v1571, 0.0
      %v1578 = vsel %vm1550, %v1572, 0.0
      %v1579 = vsel %vm1551, %v1573, 0.0
      %v1580 = vsel %vm1552, %v1574, 0.0
      %v1581 = vmul.f32 %v1575, %v1575
      %v1582 = vmul.f32 %v1576, %v1576
      %v1583 = vmul.f32 %v1577, %v1577
      %v1584 = vmul.f32 %v1578, %v1578
      %v1585 = vmul.f32 %v1579, %v1579
      %v1586 = vmul.f32 %v1580, %v1580
      %v1587 = vadd.f32 %v1581, %v1582
      %v1588 = vadd.f32 %v1587, %v1583
      %1589 = vadd.xlane.f32.xlu0 %v1588
      %v1590 = vpop.xlane.xlu0 %1589
      %v1591 = vadd.f32 %v1584, %v1585
      %v1592 = vadd.f32 %v1591, %v1586
      %1593 = vadd.xlane.f32.xlu0 %v1592
      %v1594 = vpop.xlane.xlu0 %1593
      %1595 = vst [vmem:[%s348] sm:$0xf] 0
      %1596 = vst [vmem:[%s348 + $0x14] sm:$0xf] 0
      %1597 = vst [vmem:[%s348 + $0x10] sm:$0xf] 0
      %1598 = vst [vmem:[%s348 + $0x24] sm:$0xf] 0
      %v1599 = vpack.c.bf16 %v1556, %v1553
      %v1600 = vpack.c.bf16 %v1557, %v1554
      %v1601 = vpack.c.bf16 %v1558, %v1555
      %v1605 = vunpack.c.l.b16 %v1599
      %v1606 = vunpack.c.l.b16 %v1600
      %v1607 = vunpack.c.l.b16 %v1601
      %v1608 = vunpack.c.h.b16 %v1599
      %v1609 = vunpack.c.h.b16 %v1600
      %v1610 = vunpack.c.h.b16 %v1601
      %v1611 = vpack.c.b16 %v1606, %v1605
      %v1612 = vpack.c.b16 %v1607, %v1607
      %v1613 = vpack.c.b16 %v1609, %v1608
      %v1614 = vpack.c.b16 %v1610, %v1610
      %1619 = vst [vmem:[%s348 + $0x4] sm:$0xff] %v1611
      %1620 = vst [vmem:[%s348 + $0xc] sm:$0xf] %v1612
      %1621 = vst [vmem:[%s348 + $0x18] sm:$0xff] %v1613
      %1622 = vst [vmem:[%s348 + $0x20] sm:$0xf] %v1614
      %vm1623 = vcmask 7168
      %1624 = vst.msk [vmem:[%s353] sm:$0xff] %vm1623, %v1562
      %1625 = vst.msk [vmem:[%s353 + $0x8] sm:$0xff] %vm1623, %v1566
      %1626 = vst.msk [vmem:[%s358] sm:$0xff] %vm1623, %v1590
      %1627 = vst.msk [vmem:[%s358 + $0x8] sm:$0xff] %vm1623, %v1594
      %p1628 = scmp.lt.s32.totalorder %s22, 1
      %s1629 = scalar_select %p1628, %s22, 1
      %s1630 = smul.addr %s1629, 10
      %s1631 = smul.addr %s1630, 4
      %s1632 = scalar_lea.vmem %s7, %s1631
      %p1633 = scmp.lt.s32.totalorder %s22, 1
      %s1634 = scalar_select %p1633, %s22, 1
      %s1635 = smul.addr %s1634, 2
      %s1636 = smul.addr %s1635, 8
      %s1637 = scalar_lea.vmem %s8, %s1636
      %p1638 = scmp.lt.s32.totalorder %s22, 1
      %s1639 = scalar_select %p1638, %s22, 1
      %s1640 = smul.addr %s1639, 2
      %s1641 = smul.addr %s1640, 8
      %s1642 = scalar_lea.vmem %s9, %s1641
      // Predicated region
      $region49: #{residual_block_forward.4} parent=47 // pred_check
        %p1643 = pneg %p192
      $region50: #{residual_block_forward.4} parent=47 // pred_check_branch
        %1645 = sbr.rel (%p1643) target = $region52
      $region51: #{residual_block_forward.4} parent=47 // pred_region
        _
      $region52: #{residual_block_forward.4} parent=47 // pred_fallthru
        _
      // Predicated region
      $region53: #{residual_block_forward.4} parent=47 // pred_check
        %p1646 = pneg %p218
      $region54: #{residual_block_forward.4} parent=47 // pred_check_branch
        %1648 = sbr.rel (%p1646) target = $region56
      $region55: #{residual_block_forward.4} parent=47 // pred_region
        _
      $region56: #{residual_block_forward.4} parent=47 // pred_fallthru
        _
      // Predicated region
      $region57: #{residual_block_forward.4} parent=47 // pred_check
        %p1649 = pneg %p244
      $region58: #{residual_block_forward.4} parent=47 // pred_check_branch
        %1651 = sbr.rel (%p1649) target = $region60
      $region59: #{residual_block_forward.4} parent=47 // pred_region
        _
      $region60: #{residual_block_forward.4} parent=47 // pred_fallthru
        _
    $region48: #{residual_block_forward.4} parent=5 // pred_fallthru
      _
    %p1652 = scmp.le.s32.totalorder 2, %s17
    // Predicated region
    $region61: #{residual_block_forward.4} parent=5 // pred_check
      %p1653 = pneg %p1652
    $region62: #{residual_block_forward.4} parent=5 // pred_check_branch
      %1655 = sbr.rel (%p1653) target = $region64
    $region63: #{residual_block_forward.4} parent=5 // pred_region
      %s1656 = ssub.s32 %s17, 2
      // Predicated region
      $region65: #{residual_block_forward.4} parent=63 // pred_check
        %p1657 = pneg %p198
      $region66: #{residual_block_forward.4} parent=63 // pred_check_branch
        %1659 = sbr.rel (%p1657) target = $region68
      $region67: #{residual_block_forward.4} parent=63 // pred_region
        %p1660 = scmp.lt.s32.totalorder %s23, 1
        %s1661 = scalar_select %p1660, %s23, 1
        %s1662 = smul.addr %s1661, 10
        %s1663 = smul.addr %s1662, 4
        %s1664 = scalar_lea.vmem %s7, %s1663
      $region68: #{residual_block_forward.4} parent=63 // pred_fallthru
        _
      // Predicated region
      $region69: #{residual_block_forward.4} parent=63 // pred_check
        %p1665 = pneg %p224
      $region70: #{residual_block_forward.4} parent=63 // pred_check_branch
        %1667 = sbr.rel (%p1665) target = $region72
      $region71: #{residual_block_forward.4} parent=63 // pred_region
        %p1668 = scmp.lt.s32.totalorder %s23, 1
        %s1669 = scalar_select %p1668, %s23, 1
        %s1670 = smul.addr %s1669, 2
        %s1671 = smul.addr %s1670, 8
        %s1672 = scalar_lea.vmem %s8, %s1671
      $region72: #{residual_block_forward.4} parent=63 // pred_fallthru
        _
      // Predicated region
      $region73: #{residual_block_forward.4} parent=63 // pred_check
        %p1673 = pneg %p250
      $region74: #{residual_block_forward.4} parent=63 // pred_check_branch
        %1675 = sbr.rel (%p1673) target = $region76
      $region75: #{residual_block_forward.4} parent=63 // pred_region
        %p1676 = scmp.lt.s32.totalorder %s23, 1
        %s1677 = scalar_select %p1676, %s23, 1
        %s1678 = smul.addr %s1677, 2
        %s1679 = smul.addr %s1678, 8
        %s1680 = scalar_lea.vmem %s9, %s1679
      $region76: #{residual_block_forward.4} parent=63 // pred_fallthru
        _
    $region64: #{residual_block_forward.4} parent=5 // pred_fallthru
      _
  $region6: #{residual_block_forward.4} parent=0 // loop_footer
    %s21 = sadd.s32 1, %s17
  $region7: #{residual_block_forward.4} parent=0 // loop_footer_branch
    %16 = sbr.rel target = $region3
  $region8: #{residual_block_forward.4} parent=0 // loop_exit
    _

// kernel: residual_block_forward.3
$region0: #{residual_block_forward.3}
  #allocation0 [shape = 'u32[]', space=smem, size = 0x4, offset = 0x4, fixed_abs, tag = 'smem constant byte address 0x4 - core index']
  #allocation1 [shape = 'u32[144,128]{1,0:T(1,128)}', space=vmem, size = 0x12000, scoped, tag = 'internal scratch']
  %s0 = inlined_call_operand.vmem [shape: bf16[2,16,640], index: 0, kind: input, shape index: {}]
  %s1 = inlined_call_operand.vmem [shape: bf16[9,16,16], index: 1, kind: input, shape index: {}]
  %s2 = inlined_call_operand.vmem [shape: f32[16,1], index: 2, kind: input, shape index: {}]
  %s3 = inlined_call_operand.vmem [shape: f32[1,640], index: 3, kind: input, shape index: {}]
  %s4 = inlined_call_operand.vmem [shape: bf16[2,16,640], index: 4, kind: output, shape index: {0}]
  %s5 = inlined_call_operand.vmem [shape: f32[2,16,1], index: 5, kind: output, shape index: {1}]
  %s6 = inlined_call_operand.vmem [shape: f32[2,16,1], index: 6, kind: output, shape index: {2}]
  %7 = xla_tuple %s4, %s5, %s6
  %s8 = sld [smem:[#allocation0]]
  $region65: #{residual_block_forward.3} parent=0
    _
  %s10 = ssub.s32 1, %s8
  %s11 = scalar_select 0, %s10, %s8
  loop: start=0, step=1, limit=4
  $region2: #{residual_block_forward.3} parent=0 // loop_pre_header
    _
  $region3: #{residual_block_forward.3} parent=0 // loop_header
    %s13 = sphi 0, %s17
    %p14 = scmp.ge.s32.totalorder %s13, 4
    %s23 = sphi 0, %s25
    %s26 = sphi 0, %s23
    %s27 = sphi 0, %s26
    %s43 = sphi 0, %s27
    %s47 = sphi 0, %s47
    %s49 = sphi 0, %s47
    %s50 = sphi 0, %s49
    %s64 = sphi 0, %s50
    %s68 = sphi 0, %s68
    %s70 = sphi 0, %s68
    %s71 = sphi 0, %s70
    %s85 = sphi 0, %s71
    %s89 = sphi 0, %s89
    %s91 = sphi 0, %s89
    %s92 = sphi 0, %s91
    %s106 = sphi 0, %s92
    %s112 = sphi 0, %s114
    %s115 = sphi 0, %s112
    %s116 = sphi 0, %s115
    %s132 = sphi 0, %s116
    %s138 = sphi 0, %s140
    %s141 = sphi 0, %s138
    %s142 = sphi 0, %s141
    %s158 = sphi 0, %s142
    %s164 = sphi 0, %s166
    %s167 = sphi 0, %s164
    %s168 = sphi 0, %s167
    %s184 = sphi 0, %s168
  $region4: #{residual_block_forward.3} parent=0 // loop_header_branch
    %16 = sbr.rel (%p14) target = $region8
  $region5: #{residual_block_forward.3} parent=0 // loop_body
    %s18 = ssub.s32 %s13, 1
    %s19 = ssub.s32 %s13, 2
    %s20 = sadd.s32 %s13, 1
    %s21 = ssub.s32 %s13, %s20
    %p22 = scmp.eq.s32.totalorder %s21, 0
    %s24 = sadd.s32 %s23, 1
    %s25 = scalar_select %p22, %s23, %s24
    %p28 = pneg %p22
    %p29 = scmp.eq.s32.totalorder %s13, 1
    %p30 = por %p28, %p29
    %p31 = scmp.ne.s32.totalorder %s23, %s26
    %p32 = scmp.eq.s32.totalorder %s13, 0
    %p33 = por %p31, %p32
    %p34 = scmp.ne.s32.totalorder %s23, %s26
    %p35 = scmp.eq.s32.totalorder %s18, 1
    %p36 = por %p34, %p35
    %p37 = scmp.ne.s32.totalorder %s26, %s27
    %p38 = scmp.eq.s32.totalorder %s18, 0
    %p39 = por %p37, %p38
    %p40 = scmp.ne.s32.totalorder %s26, %s27
    %p41 = scmp.eq.s32.totalorder %s19, 1
    %p42 = por %p40, %p41
    %p44 = scmp.ne.s32.totalorder %s27, %s43
    %p45 = scmp.eq.s32.totalorder %s19, 0
    %p46 = por %p44, %p45
    %s48 = sadd.s32 %s47, 1
    %p51 = scmp.eq.s32.totalorder %s13, 1
    %p52 = scmp.ne.s32.totalorder %s47, %s49
    %p53 = scmp.eq.s32.totalorder %s13, 0
    %p54 = por %p52, %p53
    %p55 = scmp.ne.s32.totalorder %s47, %s49
    %p56 = scmp.eq.s32.totalorder %s18, 1
    %p57 = por %p55, %p56
    %p58 = scmp.ne.s32.totalorder %s49, %s50
    %p59 = scmp.eq.s32.totalorder %s18, 0
    %p60 = por %p58, %p59
    %p61 = scmp.ne.s32.totalorder %s49, %s50
    %p62 = scmp.eq.s32.totalorder %s19, 1
    %p63 = por %p61, %p62
    %p65 = scmp.ne.s32.totalorder %s50, %s64
    %p66 = scmp.eq.s32.totalorder %s19, 0
    %p67 = por %p65, %p66
    %s69 = sadd.s32 %s68, 1
    %p72 = scmp.eq.s32.totalorder %s13, 1
    %p73 = scmp.ne.s32.totalorder %s68, %s70
    %p74 = scmp.eq.s32.totalorder %s13, 0
    %p75 = por %p73, %p74
    %p76 = scmp.ne.s32.totalorder %s68, %s70
    %p77 = scmp.eq.s32.totalorder %s18, 1
    %p78 = por %p76, %p77
    %p79 = scmp.ne.s32.totalorder %s70, %s71
    %p80 = scmp.eq.s32.totalorder %s18, 0
    %p81 = por %p79, %p80
    %p82 = scmp.ne.s32.totalorder %s70, %s71
    %p83 = scmp.eq.s32.totalorder %s19, 1
    %p84 = por %p82, %p83
    %p86 = scmp.ne.s32.totalorder %s71, %s85
    %p87 = scmp.eq.s32.totalorder %s19, 0
    %p88 = por %p86, %p87
    %s90 = sadd.s32 %s89, 1
    %p93 = scmp.eq.s32.totalorder %s13, 1
    %p94 = scmp.ne.s32.totalorder %s89, %s91
    %p95 = scmp.eq.s32.totalorder %s13, 0
    %p96 = por %p94, %p95
    %p97 = scmp.ne.s32.totalorder %s89, %s91
    %p98 = scmp.eq.s32.totalorder %s18, 1
    %p99 = por %p97, %p98
    %p100 = scmp.ne.s32.totalorder %s91, %s92
    %p101 = scmp.eq.s32.totalorder %s18, 0
    %p102 = por %p100, %p101
    %p103 = scmp.ne.s32.totalorder %s91, %s92
    %p104 = scmp.eq.s32.totalorder %s19, 1
    %p105 = por %p103, %p104
    %p107 = scmp.ne.s32.totalorder %s92, %s106
    %p108 = scmp.eq.s32.totalorder %s19, 0
    %p109 = por %p107, %p108
    %s110 = ssub.s32 %s13, %s20
    %p111 = scmp.eq.s32.totalorder %s110, 0
    %s113 = sadd.s32 %s112, 1
    %s114 = scalar_select %p111, %s112, %s113
    %p117 = pneg %p111
    %p118 = scmp.eq.s32.totalorder %s13, 1
    %p119 = por %p117, %p118
    %p120 = scmp.ne.s32.totalorder %s112, %s115
    %p121 = scmp.eq.s32.totalorder %s13, 0
    %p122 = por %p120, %p121
    %p123 = scmp.ne.s32.totalorder %s112, %s115
    %p124 = scmp.eq.s32.totalorder %s18, 1
    %p125 = por %p123, %p124
    %p126 = scmp.ne.s32.totalorder %s115, %s116
    %p127 = scmp.eq.s32.totalorder %s18, 0
    %p128 = por %p126, %p127
    %p129 = scmp.ne.s32.totalorder %s115, %s116
    %p130 = scmp.eq.s32.totalorder %s19, 1
    %p131 = por %p129, %p130
    %p133 = scmp.ne.s32.totalorder %s116, %s132
    %p134 = scmp.eq.s32.totalorder %s19, 0
    %p135 = por %p133, %p134
    %s136 = ssub.s32 %s13, %s20
    %p137 = scmp.eq.s32.totalorder %s136, 0
    %s139 = sadd.s32 %s138, 1
    %s140 = scalar_select %p137, %s138, %s139
    %p143 = pneg %p137
    %p144 = scmp.eq.s32.totalorder %s13, 1
    %p145 = por %p143, %p144
    %p146 = scmp.ne.s32.totalorder %s138, %s141
    %p147 = scmp.eq.s32.totalorder %s13, 0
    %p148 = por %p146, %p147
    %p149 = scmp.ne.s32.totalorder %s138, %s141
    %p150 = scmp.eq.s32.totalorder %s18, 1
    %p151 = por %p149, %p150
    %p152 = scmp.ne.s32.totalorder %s141, %s142
    %p153 = scmp.eq.s32.totalorder %s18, 0
    %p154 = por %p152, %p153
    %p155 = scmp.ne.s32.totalorder %s141, %s142
    %p156 = scmp.eq.s32.totalorder %s19, 1
    %p157 = por %p155, %p156
    %p159 = scmp.ne.s32.totalorder %s142, %s158
    %p160 = scmp.eq.s32.totalorder %s19, 0
    %p161 = por %p159, %p160
    %s162 = ssub.s32 %s13, %s20
    %p163 = scmp.eq.s32.totalorder %s162, 0
    %s165 = sadd.s32 %s164, 1
    %s166 = scalar_select %p163, %s164, %s165
    %p169 = pneg %p163
    %p170 = scmp.eq.s32.totalorder %s13, 1
    %p171 = por %p169, %p170
    %p172 = scmp.ne.s32.totalorder %s164, %s167
    %p173 = scmp.eq.s32.totalorder %s13, 0
    %p174 = por %p172, %p173
    %p175 = scmp.ne.s32.totalorder %s164, %s167
    %p176 = scmp.eq.s32.totalorder %s18, 1
    %p177 = por %p175, %p176
    %p178 = scmp.ne.s32.totalorder %s167, %s168
    %p179 = scmp.eq.s32.totalorder %s18, 0
    %p180 = por %p178, %p179
    %p181 = scmp.ne.s32.totalorder %s167, %s168
    %p182 = scmp.eq.s32.totalorder %s19, 1
    %p183 = por %p181, %p182
    %p185 = scmp.ne.s32.totalorder %s168, %s184
    %p186 = scmp.eq.s32.totalorder %s19, 0
    %p187 = por %p185, %p186
    %p188 = scmp.le.s32.totalorder 1, %s13
    %p189 = scmp.lt.s32.totalorder %s13, 3
    %p190 = pnand %p188, %p189
    %p191 = pneg %p190
    // Predicated region
    $region9: #{residual_block_forward.3} parent=5 // pred_check
      _
    $region10: #{residual_block_forward.3} parent=5 // pred_check_branch
      %193 = sbr.rel (%p190) target = $region12
    $region11: #{residual_block_forward.3} parent=5 // pred_region
      %s194 = ssub.s32 %s13, 1
      // Predicated region
      $region13: #{residual_block_forward.3} parent=11 // pred_check
        %p195 = pneg %p60
      $region14: #{residual_block_forward.3} parent=11 // pred_check_branch
        %197 = sbr.rel (%p195) target = $region16
      $region15: #{residual_block_forward.3} parent=11 // pred_region
        _
      $region16: #{residual_block_forward.3} parent=11 // pred_fallthru
        _
      // Predicated region
      $region17: #{residual_block_forward.3} parent=11 // pred_check
        %p198 = pneg %p81
      $region18: #{residual_block_forward.3} parent=11 // pred_check_branch
        %200 = sbr.rel (%p198) target = $region20
      $region19: #{residual_block_forward.3} parent=11 // pred_region
        _
      $region20: #{residual_block_forward.3} parent=11 // pred_fallthru
        _
      // Predicated region
      $region21: #{residual_block_forward.3} parent=11 // pred_check
        %p201 = pneg %p102
      $region22: #{residual_block_forward.3} parent=11 // pred_check_branch
        %203 = sbr.rel (%p201) target = $region24
      $region23: #{residual_block_forward.3} parent=11 // pred_region
        _
      $region24: #{residual_block_forward.3} parent=11 // pred_fallthru
        _
    $region12: #{residual_block_forward.3} parent=5 // pred_fallthru
      _
    %p204 = scmp.lt.s32.totalorder %s13, 2
    // Predicated region
    $region25: #{residual_block_forward.3} parent=5 // pred_check
      %p205 = pneg %p204
    $region26: #{residual_block_forward.3} parent=5 // pred_check_branch
      %207 = sbr.rel (%p205) target = $region28
    $region27: #{residual_block_forward.3} parent=5 // pred_region
      // Predicated region
      $region29: #{residual_block_forward.3} parent=27 // pred_check
        %p208 = pneg %p33
      $region30: #{residual_block_forward.3} parent=27 // pred_check_branch
        %210 = sbr.rel (%p208) target = $region32
      $region31: #{residual_block_forward.3} parent=27 // pred_region
        %p211 = scmp.lt.s32.totalorder %s13, 1
        %s212 = scalar_select %p211, %s13, 1
        %s213 = smul.addr %s212, 10
        %s214 = smul.addr %s213, 4
        %s215 = scalar_lea.vmem %s0, %s214
      $region32: #{residual_block_forward.3} parent=27 // pred_fallthru
        _
    $region28: #{residual_block_forward.3} parent=5 // pred_fallthru
      _
    %p216 = scmp.le.s32.totalorder 1, %s13
    %p217 = scmp.lt.s32.totalorder %s13, 3
    %p218 = pnand %p216, %p217
    %p219 = pneg %p218
    // Predicated region
    $region33: #{residual_block_forward.3} parent=5 // pred_check
      _
    $region34: #{residual_block_forward.3} parent=5 // pred_check_branch
      %221 = sbr.rel (%p218) target = $region36
    $region35: #{residual_block_forward.3} parent=5 // pred_region
      %s222 = ssub.s32 %s13, 1
      %p223 = scmp.lt.s32.totalorder %s18, 1
      %s224 = scalar_select %p223, %s18, 1
      %s225 = smul.addr %s224, 10
      %s226 = smul.addr %s225, 4
      %s227 = scalar_lea.vmem %s0, %s226
      %p228 = pneg %p39
      %p229 = pneg %p36
      %p230 = pneg %p60
      %p231 = pneg %p57
      %p232 = pneg %p81
      %p233 = pneg %p78
      %p234 = pneg %p102
      %p235 = pneg %p99
      %p236 = pneg %p128
      %p237 = pneg %p125
      %p238 = scmp.lt.s32.totalorder %s18, 1
      %s239 = scalar_select %p238, %s18, 1
      %s240 = smul.addr %s239, 10
      %s241 = smul.addr %s240, 4
      %s242 = scalar_lea.vmem %s4, %s241
      %p243 = pneg %p154
      %p244 = pneg %p151
      %p245 = scmp.lt.s32.totalorder %s18, 1
      %s246 = scalar_select %p245, %s18, 1
      %s247 = smul.addr %s246, 2
      %s248 = smul.addr %s247, 8
      %s249 = scalar_lea.vmem %s5, %s248
      %p250 = pneg %p180
      %p251 = pneg %p177
      %p252 = scmp.lt.s32.totalorder %s18, 1
      %s253 = scalar_select %p252, %s18, 1
      %s254 = smul.addr %s253, 2
      %s255 = smul.addr %s254, 8
      %s256 = scalar_lea.vmem %s6, %s255
      %p257 = scmp.lt.s32.totalorder %s18, 1
      %s258 = scalar_select %p257, %s18, 1
      %s259 = smul.addr %s258, 10
      %s260 = smul.addr %s259, 4
      %s261 = scalar_lea.vmem %s0, %s260
      %p262 = scmp.lt.s32.totalorder %s18, 1
      %s263 = scalar_select %p262, %s18, 1
      %s264 = smul.addr %s263, 10
      %s265 = smul.addr %s264, 4
      %s266 = scalar_lea.vmem %s4, %s265
      %p267 = scmp.lt.s32.totalorder %s18, 1
      %s268 = scalar_select %p267, %s18, 1
      %s269 = smul.addr %s268, 2
      %s270 = smul.addr %s269, 8
      %s271 = scalar_lea.vmem %s5, %s270
      %p272 = scmp.lt.s32.totalorder %s18, 1
      %s273 = scalar_select %p272, %s18, 1
      %s274 = smul.addr %s273, 2
      %s275 = smul.addr %s274, 8
      %s276 = scalar_lea.vmem %s6, %s275
      %v278 = vld [vmem:[%s3] sm:$0x1f]
      %vm279 = vcmp.ne.f32.partialorder %v278, 0.0
      %v280 = vld [vmem:[%s261] sm:$0xff]
      %v281 = vld [vmem:[%s261 + $0x8] sm:$0xff]
      %v282 = vld [vmem:[%s261 + $0x10] sm:$0xf]
      %v283 = vld [vmem:[%s261 + $0x14] sm:$0xff]
      %v284 = vld [vmem:[%s261 + $0x1c] sm:$0xff]
      %v285 = vld [vmem:[%s261 + $0x24] sm:$0xf]
      %v286 = vld [vmem:[%s1] sm:$0xf]
      %v287 = vld [vmem:[%s1 + $0x4] sm:$0xf]
      %s288 = scalar_lea.vmem %s1, 8
      %v289 = vld [vmem:[%s288] sm:$0xf]
      %v290 = vld [vmem:[%s288 + $0x4] sm:$0xf]
      %v293 = vunpack.c.l.b16 %v289
      %v294 = vunpack.c.l.b16 %v290
      %v295 = vpack.c.b16 %v294, %v293
      %v300 = vunpack.c.l.b16 %v280
      %v301 = vunpack.c.h.b16 %v280
      %v302 = vunpack.c.l.b16 %v281
      %v303 = vunpack.c.h.b16 %v281
      %v304 = vunpack.c.l.b16 %v283
      %v305 = vunpack.c.h.b16 %v283
      %v306 = vunpack.c.l.b16 %v284
      %v307 = vunpack.c.h.b16 %v284
      %v308 = vpack.c.b16 %v304, %v300
      %v309 = vpack.c.b16 %v305, %v301
      %v310 = vpack.c.b16 %v306, %v302
      %v311 = vpack.c.b16 %v307, %v303
      %312 = vrot.lane.b32.xlu0 %v308, 18
      %v313 = vpop.permute.xlu0 %312
      %314 = vrot.lane.b32.xlu0 %v309, 18
      %v315 = vpop.permute.xlu0 %314
      %316 = vrot.lane.b32.xlu0 %v310, 18
      %v317 = vpop.permute.xlu0 %316
      %318 = vrot.lane.b32.xlu0 %v311, 18
      %v319 = vpop.permute.xlu0 %318
      %vm320 = vcmask 146432
      %v321 = vsel %vm320, %v313, %v315
      %v322 = vsel %vm320, %v315, %v317
      %v323 = vsel %vm320, %v317, %v319
      %vm327 = vcmask 130048
      %v329 = vsel %vm327, %v295, 0
      %331 = vmatprep.subr.bf16.mxu0 %v322
      %332 = vmatpush1.bf16.msra.mxu0 %v321
      %333 = vmatprep.subr.bf16.mxu0 0
      %334 = vmatpush1.bf16.msra.mxu0 0
      %335 = vmatprep.subr.bf16.mxu0 0
      %336 = vmatpush1.bf16.msra.mxu0 0
      %337 = vmatprep.subr.bf16.mxu0 0
      %338 = vmatpush1.bf16.msra.mxu0 0
      %339 = vmatprep.subr.bf16.mxu0 0
      %340 = vmatpush1.bf16.msra.mxu0 0
      %341 = vmatprep.subr.bf16.mxu0 0
      %342 = vmatpush1.bf16.msra.mxu0 0
      %343 = vmatprep.subr.bf16.mxu0 0
      %344 = vmatpush1.bf16.msra.mxu0 0
      %345 = vmatprep.subr.bf16.mxu0 0
      %346 = vmatpush1.bf16.msra.mxu0 0
      %347 = vmatprep.subr.bf16.mxu0 0
      %348 = vmatpush1.bf16.msra.mxu0 0
      %349 = vmatprep.subr.bf16.mxu0 0
      %350 = vmatpush1.bf16.msra.mxu0 0
      %351 = vmatprep.subr.bf16.mxu0 0
      %352 = vmatpush1.bf16.msra.mxu0 0
      %353 = vmatprep.subr.bf16.mxu0 0
      %354 = vmatpush1.bf16.msra.mxu0 0
      %355 = vmatprep.subr.bf16.mxu0 0
      %356 = vmatpush1.bf16.msra.mxu0 0
      %357 = vmatprep.subr.bf16.mxu0 0
      %358 = vmatpush1.bf16.msra.mxu0 0
      %359 = vmatprep.subr.bf16.mxu0 0
      %360 = vmatpush1.bf16.msra.mxu0 0
      %361 = vmatprep.subr.bf16.mxu0 0
      %362 = vmatpush1.bf16.msra.mxu0 0
      %363 = vmatprep.mubr.bf16.mxu0 0
      %364 = vmatmul.mubr.bf16.gmra.mrb[0].mxu0 %v329
      %v365 = vpop.f32.mrb[0].mxu0
      %v366 = vadd.f32 0.0, %v365
      %v367 = vpop.f32.mrb[0].mxu0
      %v368 = vadd.f32 0.0, %v367
      %v369 = vpop.f32.mrb[0].mxu0
      %v370 = vadd.f32 0.0, %v369
      %v371 = vpop.f32.mrb[0].mxu0
      %v372 = vadd.f32 0.0, %v371
      %373 = vdwg.mxu0
      %374 = vmatprep.subr.bf16.mxu0 0
      %375 = vmatpush1.bf16.msra.mxu0 %v323
      %376 = vmatprep.subr.bf16.mxu0 0
      %377 = vmatpush1.bf16.msra.mxu0 0
      %378 = vmatprep.subr.bf16.mxu0 0
      %379 = vmatpush1.bf16.msra.mxu0 0
      %380 = vmatprep.subr.bf16.mxu0 0
      %381 = vmatpush1.bf16.msra.mxu0 0
      %382 = vmatprep.subr.bf16.mxu0 0
      %383 = vmatpush1.bf16.msra.mxu0 0
      %384 = vmatprep.subr.bf16.mxu0 0
      %385 = vmatpush1.bf16.msra.mxu0 0
      %386 = vmatprep.subr.bf16.mxu0 0
      %387 = vmatpush1.bf16.msra.mxu0 0
      %388 = vmatprep.subr.bf16.mxu0 0
      %389 = vmatpush1.bf16.msra.mxu0 0
      %390 = vmatprep.subr.bf16.mxu0 0
      %391 = vmatpush1.bf16.msra.mxu0 0
      %392 = vmatprep.subr.bf16.mxu0 0
      %393 = vmatpush1.bf16.msra.mxu0 0
      %394 = vmatprep.subr.bf16.mxu0 0
      %395 = vmatpush1.bf16.msra.mxu0 0
      %396 = vmatprep.subr.bf16.mxu0 0
      %397 = vmatpush1.bf16.msra.mxu0 0
      %398 = vmatprep.subr.bf16.mxu0 0
      %399 = vmatpush1.bf16.msra.mxu0 0
      %400 = vmatprep.subr.bf16.mxu0 0
      %401 = vmatpush1.bf16.msra.mxu0 0
      %402 = vmatprep.subr.bf16.mxu0 0
      %403 = vmatpush1.bf16.msra.mxu0 0
      %404 = vmatprep.subr.bf16.mxu0 0
      %405 = vmatpush1.bf16.msra.mxu0 0
      %406 = vmatprep.mubr.bf16.mxu0 0
      %407 = vmatmul.mubr.bf16.gmra.mrb[0].mxu0 %v329
      %v408 = vpop.f32.mrb[0].mxu0
      %v409 = vadd.f32 0.0, %v408
      %v410 = vpop.f32.mrb[0].mxu0
      %v411 = vpop.f32.mrb[0].mxu0
      %v412 = vadd.f32 0.0, %v411
      %v413 = vpop.f32.mrb[0].mxu0
      %414 = vdwg.mxu0
      %v417 = vunpack.c.l.b16 %v286
      %v418 = vunpack.c.l.b16 %v287
      %v419 = vpack.c.b16 %v418, %v417
      %420 = vrot.lane.b32.xlu0 %v308, 19
      %v421 = vpop.permute.xlu0 %420
      %422 = vrot.lane.b32.xlu0 %v309, 19
      %v423 = vpop.permute.xlu0 %422
      %424 = vrot.lane.b32.xlu0 %v310, 19
      %v425 = vpop.permute.xlu0 %424
      %426 = vrot.lane.b32.xlu0 %v311, 19
      %v427 = vpop.permute.xlu0 %426
      %vm428 = vcmask 154624
      %v429 = vsel %vm428, %v421, %v423
      %v430 = vsel %vm428, %v423, %v425
      %v431 = vsel %vm428, %v425, %v427
      %v436 = vsel %vm327, %v419, 0
      %438 = vmatprep.subr.bf16.mxu0 %v430
      %439 = vmatpush1.bf16.msra.mxu0 %v429
      %440 = vmatprep.subr.bf16.mxu0 0
      %441 = vmatpush1.bf16.msra.mxu0 0
      %442 = vmatprep.subr.bf16.mxu0 0
      %443 = vmatpush1.bf16.msra.mxu0 0
      %444 = vmatprep.subr.bf16.mxu0 0
      %445 = vmatpush1.bf16.msra.mxu0 0
      %446 = vmatprep.subr.bf16.mxu0 0
      %447 = vmatpush1.bf16.msra.mxu0 0
      %448 = vmatprep.subr.bf16.mxu0 0
      %449 = vmatpush1.bf16.msra.mxu0 0
      %450 = vmatprep.subr.bf16.mxu0 0
      %451 = vmatpush1.bf16.msra.mxu0 0
      %452 = vmatprep.subr.bf16.mxu0 0
      %453 = vmatpush1.bf16.msra.mxu0 0
      %454 = vmatprep.subr.bf16.mxu0 0
      %455 = vmatpush1.bf16.msra.mxu0 0
      %456 = vmatprep.subr.bf16.mxu0 0
      %457 = vmatpush1.bf16.msra.mxu0 0
      %458 = vmatprep.subr.bf16.mxu0 0
      %459 = vmatpush1.bf16.msra.mxu0 0
      %460 = vmatprep.subr.bf16.mxu0 0
      %461 = vmatpush1.bf16.msra.mxu0 0
      %462 = vmatprep.subr.bf16.mxu0 0
      %463 = vmatpush1.bf16.msra.mxu0 0
      %464 = vmatprep.subr.bf16.mxu0 0
      %465 = vmatpush1.bf16.msra.mxu0 0
      %466 = vmatprep.subr.bf16.mxu0 0
      %467 = vmatpush1.bf16.msra.mxu0 0
      %468 = vmatprep.subr.bf16.mxu0 0
      %469 = vmatpush1.bf16.msra.mxu0 0
      %470 = vmatprep.mubr.bf16.mxu0 0
      %471 = vmatmul.mubr.bf16.gmra.mrb[0].mxu0 %v436
      %v472 = vpop.f32.mrb[0].mxu0
      %v473 = vadd.f32 %v366, %v472
      %v474 = vpop.f32.mrb[0].mxu0
      %v475 = vadd.f32 %v368, %v474
      %v476 = vpop.f32.mrb[0].mxu0
      %v477 = vadd.f32 %v370, %v476
      %v478 = vpop.f32.mrb[0].mxu0
      %v479 = vadd.f32 %v372, %v478
      %480 = vdwg.mxu0
      %481 = vmatprep.subr.bf16.mxu0 0
      %482 = vmatpush1.bf16.msra.mxu0 %v431
      %483 = vmatprep.subr.bf16.mxu0 0
      %484 = vmatpush1.bf16.msra.mxu0 0
      %485 = vmatprep.subr.bf16.mxu0 0
      %486 = vmatpush1.bf16.msra.mxu0 0
      %487 = vmatprep.subr.bf16.mxu0 0
      %488 = vmatpush1.bf16.msra.mxu0 0
      %489 = vmatprep.subr.bf16.mxu0 0
      %490 = vmatpush1.bf16.msra.mxu0 0
      %491 = vmatprep.subr.bf16.mxu0 0
      %492 = vmatpush1.bf16.msra.mxu0 0
      %493 = vmatprep.subr.bf16.mxu0 0
      %494 = vmatpush1.bf16.msra.mxu0 0
      %495 = vmatprep.subr.bf16.mxu0 0
      %496 = vmatpush1.bf16.msra.mxu0 0
      %497 = vmatprep.subr.bf16.mxu0 0
      %498 = vmatpush1.bf16.msra.mxu0 0
      %499 = vmatprep.subr.bf16.mxu0 0
      %500 = vmatpush1.bf16.msra.mxu0 0
      %501 = vmatprep.subr.bf16.mxu0 0
      %502 = vmatpush1.bf16.msra.mxu0 0
      %503 = vmatprep.subr.bf16.mxu0 0
      %504 = vmatpush1.bf16.msra.mxu0 0
      %505 = vmatprep.subr.bf16.mxu0 0
      %506 = vmatpush1.bf16.msra.mxu0 0
      %507 = vmatprep.subr.bf16.mxu0 0
      %508 = vmatpush1.bf16.msra.mxu0 0
      %509 = vmatprep.subr.bf16.mxu0 0
      %510 = vmatpush1.bf16.msra.mxu0 0
      %511 = vmatprep.subr.bf16.mxu0 0
      %512 = vmatpush1.bf16.msra.mxu0 0
      %513 = vmatprep.mubr.bf16.mxu0 0
      %514 = vmatmul.mubr.bf16.gmra.mrb[0].mxu0 %v436
      %v515 = vpop.f32.mrb[0].mxu0
      %v516 = vadd.f32 %v409, %v515
      %v517 = vpop.f32.mrb[0].mxu0
      %v518 = vpop.f32.mrb[0].mxu0
      %v519 = vadd.f32 %v412, %v518
      %v520 = vpop.f32.mrb[0].mxu0
      %521 = vdwg.mxu0
      %s522 = scalar_lea.vmem %s1, 16
      %v523 = vld [vmem:[%s522] sm:$0xf]
      %v524 = vld [vmem:[%s522 + $0x4] sm:$0xf]
      %v527 = vunpack.c.l.b16 %v523
      %v528 = vunpack.c.l.b16 %v524
      %v529 = vpack.c.b16 %v528, %v527
      %530 = vrot.lane.b32.xlu0 %v308, 17
      %v531 = vpop.permute.xlu0 %530
      %532 = vrot.lane.b32.xlu0 %v309, 17
      %v533 = vpop.permute.xlu0 %532
      %534 = vrot.lane.b32.xlu0 %v310, 17
      %v535 = vpop.permute.xlu0 %534
      %536 = vrot.lane.b32.xlu0 %v311, 17
      %v537 = vpop.permute.xlu0 %536
      %vm538 = vcmask 138240
      %v539 = vsel %vm538, %v531, %v533
      %v540 = vsel %vm538, %v533, %v535
      %v541 = vsel %vm538, %v535, %v537
      %v546 = vsel %vm327, %v529, 0
      %548 = vmatprep.subr.bf16.mxu0 %v540
      %549 = vmatpush1.bf16.msra.mxu0 %v539
      %550 = vmatprep.subr.bf16.mxu0 0
      %551 = vmatpush1.bf16.msra.mxu0 0
      %552 = vmatprep.subr.bf16.mxu0 0
      %553 = vmatpush1.bf16.msra.mxu0 0
      %554 = vmatprep.subr.bf16.mxu0 0
      %555 = vmatpush1.bf16.msra.mxu0 0
      %556 = vmatprep.subr.bf16.mxu0 0
      %557 = vmatpush1.bf16.msra.mxu0 0
      %558 = vmatprep.subr.bf16.mxu0 0
      %559 = vmatpush1.bf16.msra.mxu0 0
      %560 = vmatprep.subr.bf16.mxu0 0
      %561 = vmatpush1.bf16.msra.mxu0 0
      %562 = vmatprep.subr.bf16.mxu0 0
      %563 = vmatpush1.bf16.msra.mxu0 0
      %564 = vmatprep.subr.bf16.mxu0 0
      %565 = vmatpush1.bf16.msra.mxu0 0
      %566 = vmatprep.subr.bf16.mxu0 0
      %567 = vmatpush1.bf16.msra.mxu0 0
      %568 = vmatprep.subr.bf16.mxu0 0
      %569 = vmatpush1.bf16.msra.mxu0 0
      %570 = vmatprep.subr.bf16.mxu0 0
      %571 = vmatpush1.bf16.msra.mxu0 0
      %572 = vmatprep.subr.bf16.mxu0 0
      %573 = vmatpush1.bf16.msra.mxu0 0
      %574 = vmatprep.subr.bf16.mxu0 0
      %575 = vmatpush1.bf16.msra.mxu0 0
      %576 = vmatprep.subr.bf16.mxu0 0
      %577 = vmatpush1.bf16.msra.mxu0 0
      %578 = vmatprep.subr.bf16.mxu0 0
      %579 = vmatpush1.bf16.msra.mxu0 0
      %580 = vmatprep.mubr.bf16.mxu0 0
      %581 = vmatmul.mubr.bf16.gmra.mrb[0].mxu0 %v546
      %v582 = vpop.f32.mrb[0].mxu0
      %v583 = vadd.f32 0.0, %v582
      %v584 = vpop.f32.mrb[0].mxu0
      %v585 = vadd.f32 0.0, %v584
      %v586 = vpop.f32.mrb[0].mxu0
      %v587 = vadd.f32 0.0, %v586
      %v588 = vpop.f32.mrb[0].mxu0
      %v589 = vadd.f32 0.0, %v588
      %590 = vdwg.mxu0
      %591 = vmatprep.subr.bf16.mxu0 0
      %592 = vmatpush1.bf16.msra.mxu0 %v541
      %593 = vmatprep.subr.bf16.mxu0 0
      %594 = vmatpush1.bf16.msra.mxu0 0
      %595 = vmatprep.subr.bf16.mxu0 0
      %596 = vmatpush1.bf16.msra.mxu0 0
      %597 = vmatprep.subr.bf16.mxu0 0
      %598 = vmatpush1.bf16.msra.mxu0 0
      %599 = vmatprep.subr.bf16.mxu0 0
      %600 = vmatpush1.bf16.msra.mxu0 0
      %601 = vmatprep.subr.bf16.mxu0 0
      %602 = vmatpush1.bf16.msra.mxu0 0
      %603 = vmatprep.subr.bf16.mxu0 0
      %604 = vmatpush1.bf16.msra.mxu0 0
      %605 = vmatprep.subr.bf16.mxu0 0
      %606 = vmatpush1.bf16.msra.mxu0 0
      %607 = vmatprep.subr.bf16.mxu0 0
      %608 = vmatpush1.bf16.msra.mxu0 0
      %609 = vmatprep.subr.bf16.mxu0 0
      %610 = vmatpush1.bf16.msra.mxu0 0
      %611 = vmatprep.subr.bf16.mxu0 0
      %612 = vmatpush1.bf16.msra.mxu0 0
      %613 = vmatprep.subr.bf16.mxu0 0
      %614 = vmatpush1.bf16.msra.mxu0 0
      %615 = vmatprep.subr.bf16.mxu0 0
      %616 = vmatpush1.bf16.msra.mxu0 0
      %617 = vmatprep.subr.bf16.mxu0 0
      %618 = vmatpush1.bf16.msra.mxu0 0
      %619 = vmatprep.subr.bf16.mxu0 0
      %620 = vmatpush1.bf16.msra.mxu0 0
      %621 = vmatprep.subr.bf16.mxu0 0
      %622 = vmatpush1.bf16.msra.mxu0 0
      %623 = vmatprep.mubr.bf16.mxu0 0
      %624 = vmatmul.mubr.bf16.gmra.mrb[0].mxu0 %v546
      %v625 = vpop.f32.mrb[0].mxu0
      %v626 = vadd.f32 0.0, %v625
      %v627 = vpop.f32.mrb[0].mxu0
      %v628 = vpop.f32.mrb[0].mxu0
      %v629 = vadd.f32 0.0, %v628
      %v630 = vpop.f32.mrb[0].mxu0
      %631 = vdwg.mxu0
      %v632 = vadd.f32 %v473, %v583
      %v633 = vadd.f32 %v475, %v585
      %v634 = vadd.f32 %v516, %v626
      %v635 = vadd.f32 %v477, %v587
      %v636 = vadd.f32 %v479, %v589
      %v637 = vadd.f32 %v519, %v629
      %s638 = scalar_lea.vmem %s1, 24
      %v639 = vld [vmem:[%s638] sm:$0xf]
      %v640 = vld [vmem:[%s638 + $0x4] sm:$0xf]
      %v643 = vunpack.c.l.b16 %v639
      %v644 = vunpack.c.l.b16 %v640
      %v645 = vpack.c.b16 %v644, %v643
      %646 = vrot.lane.b32.xlu0 %v308, 1
      %v647 = vpop.permute.xlu0 %646
      %648 = vrot.lane.b32.xlu0 %v309, 1
      %v649 = vpop.permute.xlu0 %648
      %650 = vrot.lane.b32.xlu0 %v310, 1
      %v651 = vpop.permute.xlu0 %650
      %652 = vrot.lane.b32.xlu0 %v311, 1
      %v653 = vpop.permute.xlu0 %652
      %vm654 = vcmask 7168
      %v655 = vsel %vm654, %v647, %v649
      %v656 = vsel %vm654, %v649, %v651
      %v657 = vsel %vm654, %v651, %v653
      %v662 = vsel %vm327, %v645, 0
      %664 = vmatprep.subr.bf16.mxu0 %v656
      %665 = vmatpush1.bf16.msra.mxu0 %v655
      %666 = vmatprep.subr.bf16.mxu0 0
      %667 = vmatpush1.bf16.msra.mxu0 0
      %668 = vmatprep.subr.bf16.mxu0 0
      %669 = vmatpush1.bf16.msra.mxu0 0
      %670 = vmatprep.subr.bf16.mxu0 0
      %671 = vmatpush1.bf16.msra.mxu0 0
      %672 = vmatprep.subr.bf16.mxu0 0
      %673 = vmatpush1.bf16.msra.mxu0 0
      %674 = vmatprep.subr.bf16.mxu0 0
      %675 = vmatpush1.bf16.msra.mxu0 0
      %676 = vmatprep.subr.bf16.mxu0 0
      %677 = vmatpush1.bf16.msra.mxu0 0
      %678 = vmatprep.subr.bf16.mxu0 0
      %679 = vmatpush1.bf16.msra.mxu0 0
      %680 = vmatprep.subr.bf16.mxu0 0
      %681 = vmatpush1.bf16.msra.mxu0 0
      %682 = vmatprep.subr.bf16.mxu0 0
      %683 = vmatpush1.bf16.msra.mxu0 0
      %684 = vmatprep.subr.bf16.mxu0 0
      %685 = vmatpush1.bf16.msra.mxu0 0
      %686 = vmatprep.subr.bf16.mxu0 0
      %687 = vmatpush1.bf16.msra.mxu0 0
      %688 = vmatprep.subr.bf16.mxu0 0
      %689 = vmatpush1.bf16.msra.mxu0 0
      %690 = vmatprep.subr.bf16.mxu0 0
      %691 = vmatpush1.bf16.msra.mxu0 0
      %692 = vmatprep.subr.bf16.mxu0 0
      %693 = vmatpush1.bf16.msra.mxu0 0
      %694 = vmatprep.subr.bf16.mxu0 0
      %695 = vmatpush1.bf16.msra.mxu0 0
      %696 = vmatprep.mubr.bf16.mxu0 0
      %697 = vmatmul.mubr.bf16.gmra.mrb[0].mxu0 %v662
      %v698 = vpop.f32.mrb[0].mxu0
      %v699 = vadd.f32 0.0, %v698
      %v700 = vpop.f32.mrb[0].mxu0
      %v701 = vadd.f32 0.0, %v700
      %v702 = vpop.f32.mrb[0].mxu0
      %v703 = vadd.f32 0.0, %v702
      %v704 = vpop.f32.mrb[0].mxu0
      %v705 = vadd.f32 0.0, %v704
      %706 = vdwg.mxu0
      %707 = vmatprep.subr.bf16.mxu0 0
      %708 = vmatpush1.bf16.msra.mxu0 %v657
      %709 = vmatprep.subr.bf16.mxu0 0
      %710 = vmatpush1.bf16.msra.mxu0 0
      %711 = vmatprep.subr.bf16.mxu0 0
      %712 = vmatpush1.bf16.msra.mxu0 0
      %713 = vmatprep.subr.bf16.mxu0 0
      %714 = vmatpush1.bf16.msra.mxu0 0
      %715 = vmatprep.subr.bf16.mxu0 0
      %716 = vmatpush1.bf16.msra.mxu0 0
      %717 = vmatprep.subr.bf16.mxu0 0
      %718 = vmatpush1.bf16.msra.mxu0 0
      %719 = vmatprep.subr.bf16.mxu0 0
      %720 = vmatpush1.bf16.msra.mxu0 0
      %721 = vmatprep.subr.bf16.mxu0 0
      %722 = vmatpush1.bf16.msra.mxu0 0
      %723 = vmatprep.subr.bf16.mxu0 0
      %724 = vmatpush1.bf16.msra.mxu0 0
      %725 = vmatprep.subr.bf16.mxu0 0
      %726 = vmatpush1.bf16.msra.mxu0 0
      %727 = vmatprep.subr.bf16.mxu0 0
      %728 = vmatpush1.bf16.msra.mxu0 0
      %729 = vmatprep.subr.bf16.mxu0 0
      %730 = vmatpush1.bf16.msra.mxu0 0
      %731 = vmatprep.subr.bf16.mxu0 0
      %732 = vmatpush1.bf16.msra.mxu0 0
      %733 = vmatprep.subr.bf16.mxu0 0
      %734 = vmatpush1.bf16.msra.mxu0 0
      %735 = vmatprep.subr.bf16.mxu0 0
      %736 = vmatpush1.bf16.msra.mxu0 0
      %737 = vmatprep.subr.bf16.mxu0 0
      %738 = vmatpush1.bf16.msra.mxu0 0
      %739 = vmatprep.mubr.bf16.mxu0 0
      %740 = vmatmul.mubr.bf16.gmra.mrb[0].mxu0 %v662
      %v741 = vpop.f32.mrb[0].mxu0
      %v742 = vadd.f32 0.0, %v741
      %v743 = vpop.f32.mrb[0].mxu0
      %v744 = vpop.f32.mrb[0].mxu0
      %v745 = vadd.f32 0.0, %v744
      %v746 = vpop.f32.mrb[0].mxu0
      %747 = vdwg.mxu0
      %v748 = vadd.f32 %v632, %v699
      %v749 = vadd.f32 %v633, %v701
      %v750 = vadd.f32 %v634, %v742
      %v751 = vadd.f32 %v635, %v703
      %v752 = vadd.f32 %v636, %v705
      %v753 = vadd.f32 %v637, %v745
      %s754 = scalar_lea.vmem %s1, 32
      %v755 = vld [vmem:[%s754] sm:$0xf]
      %v756 = vld [vmem:[%s754 + $0x4] sm:$0xf]
      %v759 = vunpack.c.l.b16 %v755
      %v760 = vunpack.c.l.b16 %v756
      %v761 = vpack.c.b16 %v760, %v759
      %v766 = vsel %vm327, %v761, 0
      %768 = vmatprep.subr.bf16.mxu0 %v310
      %769 = vmatpush1.bf16.msra.mxu0 %v309
      %770 = vmatprep.subr.bf16.mxu0 0
      %771 = vmatpush1.bf16.msra.mxu0 0
      %772 = vmatprep.subr.bf16.mxu0 0
      %773 = vmatpush1.bf16.msra.mxu0 0
      %774 = vmatprep.subr.bf16.mxu0 0
      %775 = vmatpush1.bf16.msra.mxu0 0
      %776 = vmatprep.subr.bf16.mxu0 0
      %777 = vmatpush1.bf16.msra.mxu0 0
      %778 = vmatprep.subr.bf16.mxu0 0
      %779 = vmatpush1.bf16.msra.mxu0 0
      %780 = vmatprep.subr.bf16.mxu0 0
      %781 = vmatpush1.bf16.msra.mxu0 0
      %782 = vmatprep.subr.bf16.mxu0 0
      %783 = vmatpush1.bf16.msra.mxu0 0
      %784 = vmatprep.subr.bf16.mxu0 0
      %785 = vmatpush1.bf16.msra.mxu0 0
      %786 = vmatprep.subr.bf16.mxu0 0
      %787 = vmatpush1.bf16.msra.mxu0 0
      %788 = vmatprep.subr.bf16.mxu0 0
      %789 = vmatpush1.bf16.msra.mxu0 0
      %790 = vmatprep.subr.bf16.mxu0 0
      %791 = vmatpush1.bf16.msra.mxu0 0
      %792 = vmatprep.subr.bf16.mxu0 0
      %793 = vmatpush1.bf16.msra.mxu0 0
      %794 = vmatprep.subr.bf16.mxu0 0
      %795 = vmatpush1.bf16.msra.mxu0 0
      %796 = vmatprep.subr.bf16.mxu0 0
      %797 = vmatpush1.bf16.msra.mxu0 0
      %798 = vmatprep.subr.bf16.mxu0 0
      %799 = vmatpush1.bf16.msra.mxu0 0
      %800 = vmatprep.mubr.bf16.mxu0 0
      %801 = vmatmul.mubr.bf16.gmra.mrb[0].mxu0 %v766
      %v802 = vpop.f32.mrb[0].mxu0
      %v803 = vadd.f32 0.0, %v802
      %v804 = vpop.f32.mrb[0].mxu0
      %v805 = vadd.f32 0.0, %v804
      %v806 = vpop.f32.mrb[0].mxu0
      %v807 = vadd.f32 0.0, %v806
      %v808 = vpop.f32.mrb[0].mxu0
      %v809 = vadd.f32 0.0, %v808
      %810 = vdwg.mxu0
      %811 = vmatprep.subr.bf16.mxu0 0
      %812 = vmatpush1.bf16.msra.mxu0 %v311
      %813 = vmatprep.subr.bf16.mxu0 0
      %814 = vmatpush1.bf16.msra.mxu0 0
      %815 = vmatprep.subr.bf16.mxu0 0
      %816 = vmatpush1.bf16.msra.mxu0 0
      %817 = vmatprep.subr.bf16.mxu0 0
      %818 = vmatpush1.bf16.msra.mxu0 0
      %819 = vmatprep.subr.bf16.mxu0 0
      %820 = vmatpush1.bf16.msra.mxu0 0
      %821 = vmatprep.subr.bf16.mxu0 0
      %822 = vmatpush1.bf16.msra.mxu0 0
      %823 = vmatprep.subr.bf16.mxu0 0
      %824 = vmatpush1.bf16.msra.mxu0 0
      %825 = vmatprep.subr.bf16.mxu0 0
      %826 = vmatpush1.bf16.msra.mxu0 0
      %827 = vmatprep.subr.bf16.mxu0 0
      %828 = vmatpush1.bf16.msra.mxu0 0
      %829 = vmatprep.subr.bf16.mxu0 0
      %830 = vmatpush1.bf16.msra.mxu0 0
      %831 = vmatprep.subr.bf16.mxu0 0
      %832 = vmatpush1.bf16.msra.mxu0 0
      %833 = vmatprep.subr.bf16.mxu0 0
      %834 = vmatpush1.bf16.msra.mxu0 0
      %835 = vmatprep.subr.bf16.mxu0 0
      %836 = vmatpush1.bf16.msra.mxu0 0
      %837 = vmatprep.subr.bf16.mxu0 0
      %838 = vmatpush1.bf16.msra.mxu0 0
      %839 = vmatprep.subr.bf16.mxu0 0
      %840 = vmatpush1.bf16.msra.mxu0 0
      %841 = vmatprep.subr.bf16.mxu0 0
      %842 = vmatpush1.bf16.msra.mxu0 0
      %843 = vmatprep.mubr.bf16.mxu0 0
      %844 = vmatmul.mubr.bf16.gmra.mrb[0].mxu0 %v766
      %v845 = vpop.f32.mrb[0].mxu0
      %v846 = vadd.f32 0.0, %v845
      %v847 = vpop.f32.mrb[0].mxu0
      %v848 = vpop.f32.mrb[0].mxu0
      %v849 = vadd.f32 0.0, %v848
      %v850 = vpop.f32.mrb[0].mxu0
      %851 = vdwg.mxu0
      %v852 = vadd.f32 %v748, %v803
      %v853 = vadd.f32 %v749, %v805
      %v854 = vadd.f32 %v750, %v846
      %v855 = vadd.f32 %v751, %v807
      %v856 = vadd.f32 %v752, %v809
      %v857 = vadd.f32 %v753, %v849
      %s858 = scalar_lea.vmem %s1, 40
      %v859 = vld [vmem:[%s858] sm:$0xf]
      %v860 = vld [vmem:[%s858 + $0x4] sm:$0xf]
      %v863 = vunpack.c.l.b16 %v859
      %v864 = vunpack.c.l.b16 %v860
      %v865 = vpack.c.b16 %v864, %v863
      %v868 = vunpack.c.l.b16 %v282
      %v869 = vunpack.c.l.b16 %v285
      %v870 = vpack.c.b16 %v869, %v868
      %871 = vrot.lane.b32.xlu0 %v309, 127
      %v872 = vpop.permute.xlu0 %871
      %873 = vrot.lane.b32.xlu0 %v310, 127
      %v874 = vpop.permute.xlu0 %873
      %875 = vrot.lane.b32.xlu0 %v311, 127
      %v876 = vpop.permute.xlu0 %875
      %877 = vrot.lane.b32.xlu0 %v870, 127
      %v878 = vpop.permute.xlu0 %877
      %vm879 = vcmask 1039360
      %v880 = vsel %vm879, %v872, %v874
      %v881 = vsel %vm879, %v874, %v876
      %v882 = vsel %vm879, %v876, %v878
      %v887 = vsel %vm327, %v865, 0
      %889 = vmatprep.subr.bf16.mxu0 %v881
      %890 = vmatpush1.bf16.msra.mxu0 %v880
      %891 = vmatprep.subr.bf16.mxu0 0
      %892 = vmatpush1.bf16.msra.mxu0 0
      %893 = vmatprep.subr.bf16.mxu0 0
      %894 = vmatpush1.bf16.msra.mxu0 0
      %895 = vmatprep.subr.bf16.mxu0 0
      %896 = vmatpush1.bf16.msra.mxu0 0
      %897 = vmatprep.subr.bf16.mxu0 0
      %898 = vmatpush1.bf16.msra.mxu0 0
      %899 = vmatprep.subr.bf16.mxu0 0
      %900 = vmatpush1.bf16.msra.mxu0 0
      %901 = vmatprep.subr.bf16.mxu0 0
      %902 = vmatpush1.bf16.msra.mxu0 0
      %903 = vmatprep.subr.bf16.mxu0 0
      %904 = vmatpush1.bf16.msra.mxu0 0
      %905 = vmatprep.subr.bf16.mxu0 0
      %906 = vmatpush1.bf16.msra.mxu0 0
      %907 = vmatprep.subr.bf16.mxu0 0
      %908 = vmatpush1.bf16.msra.mxu0 0
      %909 = vmatprep.subr.bf16.mxu0 0
      %910 = vmatpush1.bf16.msra.mxu0 0
      %911 = vmatprep.subr.bf16.mxu0 0
      %912 = vmatpush1.bf16.msra.mxu0 0
      %913 = vmatprep.subr.bf16.mxu0 0
      %914 = vmatpush1.bf16.msra.mxu0 0
      %915 = vmatprep.subr.bf16.mxu0 0
      %916 = vmatpush1.bf16.msra.mxu0 0
      %917 = vmatprep.subr.bf16.mxu0 0
      %918 = vmatpush1.bf16.msra.mxu0 0
      %919 = vmatprep.subr.bf16.mxu0 0
      %920 = vmatpush1.bf16.msra.mxu0 0
      %921 = vmatprep.mubr.bf16.mxu0 0
      %922 = vmatmul.mubr.bf16.gmra.mrb[0].mxu0 %v887
      %v923 = vpop.f32.mrb[0].mxu0
      %v924 = vadd.f32 0.0, %v923
      %v925 = vpop.f32.mrb[0].mxu0
      %v926 = vadd.f32 0.0, %v925
      %v927 = vpop.f32.mrb[0].mxu0
      %v928 = vadd.f32 0.0, %v927
      %v929 = vpop.f32.mrb[0].mxu0
      %v930 = vadd.f32 0.0, %v929
      %931 = vdwg.mxu0
      %932 = vmatprep.subr.bf16.mxu0 0
      %933 = vmatpush1.bf16.msra.mxu0 %v882
      %934 = vmatprep.subr.bf16.mxu0 0
      %935 = vmatpush1.bf16.msra.mxu0 0
      %936 = vmatprep.subr.bf16.mxu0 0
      %937 = vmatpush1.bf16.msra.mxu0 0
      %938 = vmatprep.subr.bf16.mxu0 0
      %939 = vmatpush1.bf16.msra.mxu0 0
      %940 = vmatprep.subr.bf16.mxu0 0
      %941 = vmatpush1.bf16.msra.mxu0 0
      %942 = vmatprep.subr.bf16.mxu0 0
      %943 = vmatpush1.bf16.msra.mxu0 0
      %944 = vmatprep.subr.bf16.mxu0 0
      %945 = vmatpush1.bf16.msra.mxu0 0
      %946 = vmatprep.subr.bf16.mxu0 0
      %947 = vmatpush1.bf16.msra.mxu0 0
      %948 = vmatprep.subr.bf16.mxu0 0
      %949 = vmatpush1.bf16.msra.mxu0 0
      %950 = vmatprep.subr.bf16.mxu0 0
      %951 = vmatpush1.bf16.msra.mxu0 0
      %952 = vmatprep.subr.bf16.mxu0 0
      %953 = vmatpush1.bf16.msra.mxu0 0
      %954 = vmatprep.subr.bf16.mxu0 0
      %955 = vmatpush1.bf16.msra.mxu0 0
      %956 = vmatprep.subr.bf16.mxu0 0
      %957 = vmatpush1.bf16.msra.mxu0 0
      %958 = vmatprep.subr.bf16.mxu0 0
      %959 = vmatpush1.bf16.msra.mxu0 0
      %960 = vmatprep.subr.bf16.mxu0 0
      %961 = vmatpush1.bf16.msra.mxu0 0
      %962 = vmatprep.subr.bf16.mxu0 0
      %963 = vmatpush1.bf16.msra.mxu0 0
      %964 = vmatprep.mubr.bf16.mxu0 0
      %965 = vmatmul.mubr.bf16.gmra.mrb[0].mxu0 %v887
      %v966 = vpop.f32.mrb[0].mxu0
      %v967 = vadd.f32 0.0, %v966
      %v968 = vpop.f32.mrb[0].mxu0
      %v969 = vpop.f32.mrb[0].mxu0
      %v970 = vadd.f32 0.0, %v969
      %v971 = vpop.f32.mrb[0].mxu0
      %972 = vdwg.mxu0
      %v973 = vadd.f32 %v852, %v924
      %v974 = vadd.f32 %v853, %v926
      %v975 = vadd.f32 %v854, %v967
      %v976 = vadd.f32 %v855, %v928
      %v977 = vadd.f32 %v856, %v930
      %v978 = vadd.f32 %v857, %v970
      %s979 = scalar_lea.vmem %s1, 48
      %v980 = vld [vmem:[%s979] sm:$0xf]
      %v981 = vld [vmem:[%s979 + $0x4] sm:$0xf]
      %v984 = vunpack.c.l.b16 %v980
      %v985 = vunpack.c.l.b16 %v981
      %v986 = vpack.c.b16 %v985, %v984
      %987 = vrot.lane.b32.xlu0 %v309, 111
      %v988 = vpop.permute.xlu0 %987
      %989 = vrot.lane.b32.xlu0 %v310, 111
      %v990 = vpop.permute.xlu0 %989
      %991 = vrot.lane.b32.xlu0 %v311, 111
      %v992 = vpop.permute.xlu0 %991
      %993 = vrot.lane.b32.xlu0 %v870, 111
      %v994 = vpop.permute.xlu0 %993
      %vm995 = vcmask 908288
      %v996 = vsel %vm995, %v988, %v990
      %v997 = vsel %vm995, %v990, %v992
      %v998 = vsel %vm995, %v992, %v994
      %v1003 = vsel %vm327, %v986, 0
      %1005 = vmatprep.subr.bf16.mxu0 %v997
      %1006 = vmatpush1.bf16.msra.mxu0 %v996
      %1007 = vmatprep.subr.bf16.mxu0 0
      %1008 = vmatpush1.bf16.msra.mxu0 0
      %1009 = vmatprep.subr.bf16.mxu0 0
      %1010 = vmatpush1.bf16.msra.mxu0 0
      %1011 = vmatprep.subr.bf16.mxu0 0
      %1012 = vmatpush1.bf16.msra.mxu0 0
      %1013 = vmatprep.subr.bf16.mxu0 0
      %1014 = vmatpush1.bf16.msra.mxu0 0
      %1015 = vmatprep.subr.bf16.mxu0 0
      %1016 = vmatpush1.bf16.msra.mxu0 0
      %1017 = vmatprep.subr.bf16.mxu0 0
      %1018 = vmatpush1.bf16.msra.mxu0 0
      %1019 = vmatprep.subr.bf16.mxu0 0
      %1020 = vmatpush1.bf16.msra.mxu0 0
      %1021 = vmatprep.subr.bf16.mxu0 0
      %1022 = vmatpush1.bf16.msra.mxu0 0
      %1023 = vmatprep.subr.bf16.mxu0 0
      %1024 = vmatpush1.bf16.msra.mxu0 0
      %1025 = vmatprep.subr.bf16.mxu0 0
      %1026 = vmatpush1.bf16.msra.mxu0 0
      %1027 = vmatprep.subr.bf16.mxu0 0
      %1028 = vmatpush1.bf16.msra.mxu0 0
      %1029 = vmatprep.subr.bf16.mxu0 0
      %1030 = vmatpush1.bf16.msra.mxu0 0
      %1031 = vmatprep.subr.bf16.mxu0 0
      %1032 = vmatpush1.bf16.msra.mxu0 0
      %1033 = vmatprep.subr.bf16.mxu0 0
      %1034 = vmatpush1.bf16.msra.mxu0 0
      %1035 = vmatprep.subr.bf16.mxu0 0
      %1036 = vmatpush1.bf16.msra.mxu0 0
      %1037 = vmatprep.mubr.bf16.mxu0 0
      %1038 = vmatmul.mubr.bf16.gmra.mrb[0].mxu0 %v1003
      %v1039 = vpop.f32.mrb[0].mxu0
      %v1040 = vadd.f32 0.0, %v1039
      %v1041 = vpop.f32.mrb[0].mxu0
      %v1042 = vadd.f32 0.0, %v1041
      %v1043 = vpop.f32.mrb[0].mxu0
      %v1044 = vadd.f32 0.0, %v1043
      %v1045 = vpop.f32.mrb[0].mxu0
      %v1046 = vadd.f32 0.0, %v1045
      %1047 = vdwg.mxu0
      %1048 = vmatprep.subr.bf16.mxu0 0
      %1049 = vmatpush1.bf16.msra.mxu0 %v998
      %1050 = vmatprep.subr.bf16.mxu0 0
      %1051 = vmatpush1.bf16.msra.mxu0 0
      %1052 = vmatprep.subr.bf16.mxu0 0
      %1053 = vmatpush1.bf16.msra.mxu0 0
      %1054 = vmatprep.subr.bf16.mxu0 0
      %1055 = vmatpush1.bf16.msra.mxu0 0
      %1056 = vmatprep.subr.bf16.mxu0 0
      %1057 = vmatpush1.bf16.msra.mxu0 0
      %1058 = vmatprep.subr.bf16.mxu0 0
      %1059 = vmatpush1.bf16.msra.mxu0 0
      %1060 = vmatprep.subr.bf16.mxu0 0
      %1061 = vmatpush1.bf16.msra.mxu0 0
      %1062 = vmatprep.subr.bf16.mxu0 0
      %1063 = vmatpush1.bf16.msra.mxu0 0
      %1064 = vmatprep.subr.bf16.mxu0 0
      %1065 = vmatpush1.bf16.msra.mxu0 0
      %1066 = vmatprep.subr.bf16.mxu0 0
      %1067 = vmatpush1.bf16.msra.mxu0 0
      %1068 = vmatprep.subr.bf16.mxu0 0
      %1069 = vmatpush1.bf16.msra.mxu0 0
      %1070 = vmatprep.subr.bf16.mxu0 0
      %1071 = vmatpush1.bf16.msra.mxu0 0
      %1072 = vmatprep.subr.bf16.mxu0 0
      %1073 = vmatpush1.bf16.msra.mxu0 0
      %1074 = vmatprep.subr.bf16.mxu0 0
      %1075 = vmatpush1.bf16.msra.mxu0 0
      %1076 = vmatprep.subr.bf16.mxu0 0
      %1077 = vmatpush1.bf16.msra.mxu0 0
      %1078 = vmatprep.subr.bf16.mxu0 0
      %1079 = vmatpush1.bf16.msra.mxu0 0
      %1080 = vmatprep.mubr.bf16.mxu0 0
      %1081 = vmatmul.mubr.bf16.gmra.mrb[0].mxu0 %v1003
      %v1082 = vpop.f32.mrb[0].mxu0
      %v1083 = vadd.f32 0.0, %v1082
      %v1084 = vpop.f32.mrb[0].mxu0
      %v1085 = vpop.f32.mrb[0].mxu0
      %v1086 = vadd.f32 0.0, %v1085
      %v1087 = vpop.f32.mrb[0].mxu0
      %1088 = vdwg.mxu0
      %v1089 = vadd.f32 %v973, %v1040
      %v1090 = vadd.f32 %v974, %v1042
      %v1091 = vadd.f32 %v975, %v1083
      %v1092 = vadd.f32 %v976, %v1044
      %v1093 = vadd.f32 %v977, %v1046
      %v1094 = vadd.f32 %v978, %v1086
      %s1095 = scalar_lea.vmem %s1, 56
      %v1096 = vld [vmem:[%s1095] sm:$0xf]
      %v1097 = vld [vmem:[%s1095 + $0x4] sm:$0xf]
      %v1100 = vunpack.c.l.b16 %v1096
      %v1101 = vunpack.c.l.b16 %v1097
      %v1102 = vpack.c.b16 %v1101, %v1100
      %1103 = vrot.lane.b32.xlu0 %v309, 110
      %v1104 = vpop.permute.xlu0 %1103
      %1105 = vrot.lane.b32.xlu0 %v310, 110
      %v1106 = vpop.permute.xlu0 %1105
      %1107 = vrot.lane.b32.xlu0 %v311, 110
      %v1108 = vpop.permute.xlu0 %1107
      %1109 = vrot.lane.b32.xlu0 %v870, 110
      %v1110 = vpop.permute.xlu0 %1109
      %vm1111 = vcmask 900096
      %v1112 = vsel %vm1111, %v1104, %v1106
      %v1113 = vsel %vm1111, %v1106, %v1108
      %v1114 = vsel %vm1111, %v1108, %v1110
      %v1119 = vsel %vm327, %v1102, 0
      %1121 = vmatprep.subr.bf16.mxu0 %v1113
      %1122 = vmatpush1.bf16.msra.mxu0 %v1112
      %1123 = vmatprep.subr.bf16.mxu0 0
      %1124 = vmatpush1.bf16.msra.mxu0 0
      %1125 = vmatprep.subr.bf16.mxu0 0
      %1126 = vmatpush1.bf16.msra.mxu0 0
      %1127 = vmatprep.subr.bf16.mxu0 0
      %1128 = vmatpush1.bf16.msra.mxu0 0
      %1129 = vmatprep.subr.bf16.mxu0 0
      %1130 = vmatpush1.bf16.msra.mxu0 0
      %1131 = vmatprep.subr.bf16.mxu0 0
      %1132 = vmatpush1.bf16.msra.mxu0 0
      %1133 = vmatprep.subr.bf16.mxu0 0
      %1134 = vmatpush1.bf16.msra.mxu0 0
      %1135 = vmatprep.subr.bf16.mxu0 0
      %1136 = vmatpush1.bf16.msra.mxu0 0
      %1137 = vmatprep.subr.bf16.mxu0 0
      %1138 = vmatpush1.bf16.msra.mxu0 0
      %1139 = vmatprep.subr.bf16.mxu0 0
      %1140 = vmatpush1.bf16.msra.mxu0 0
      %1141 = vmatprep.subr.bf16.mxu0 0
      %1142 = vmatpush1.bf16.msra.mxu0 0
      %1143 = vmatprep.subr.bf16.mxu0 0
      %1144 = vmatpush1.bf16.msra.mxu0 0
      %1145 = vmatprep.subr.bf16.mxu0 0
      %1146 = vmatpush1.bf16.msra.mxu0 0
      %1147 = vmatprep.subr.bf16.mxu0 0
      %1148 = vmatpush1.bf16.msra.mxu0 0
      %1149 = vmatprep.subr.bf16.mxu0 0
      %1150 = vmatpush1.bf16.msra.mxu0 0
      %1151 = vmatprep.subr.bf16.mxu0 0
      %1152 = vmatpush1.bf16.msra.mxu0 0
      %1153 = vmatprep.mubr.bf16.mxu0 0
      %1154 = vmatmul.mubr.bf16.gmra.mrb[0].mxu0 %v1119
      %v1155 = vpop.f32.mrb[0].mxu0
      %v1156 = vadd.f32 0.0, %v1155
      %v1157 = vpop.f32.mrb[0].mxu0
      %v1158 = vadd.f32 0.0, %v1157
      %v1159 = vpop.f32.mrb[0].mxu0
      %v1160 = vadd.f32 0.0, %v1159
      %v1161 = vpop.f32.mrb[0].mxu0
      %v1162 = vadd.f32 0.0, %v1161
      %1163 = vdwg.mxu0
      %1164 = vmatprep.subr.bf16.mxu0 0
      %1165 = vmatpush1.bf16.msra.mxu0 %v1114
      %1166 = vmatprep.subr.bf16.mxu0 0
      %1167 = vmatpush1.bf16.msra.mxu0 0
      %1168 = vmatprep.subr.bf16.mxu0 0
      %1169 = vmatpush1.bf16.msra.mxu0 0
      %1170 = vmatprep.subr.bf16.mxu0 0
      %1171 = vmatpush1.bf16.msra.mxu0 0
      %1172 = vmatprep.subr.bf16.mxu0 0
      %1173 = vmatpush1.bf16.msra.mxu0 0
      %1174 = vmatprep.subr.bf16.mxu0 0
      %1175 = vmatpush1.bf16.msra.mxu0 0
      %1176 = vmatprep.subr.bf16.mxu0 0
      %1177 = vmatpush1.bf16.msra.mxu0 0
      %1178 = vmatprep.subr.bf16.mxu0 0
      %1179 = vmatpush1.bf16.msra.mxu0 0
      %1180 = vmatprep.subr.bf16.mxu0 0
      %1181 = vmatpush1.bf16.msra.mxu0 0
      %1182 = vmatprep.subr.bf16.mxu0 0
      %1183 = vmatpush1.bf16.msra.mxu0 0
      %1184 = vmatprep.subr.bf16.mxu0 0
      %1185 = vmatpush1.bf16.msra.mxu0 0
      %1186 = vmatprep.subr.bf16.mxu0 0
      %1187 = vmatpush1.bf16.msra.mxu0 0
      %1188 = vmatprep.subr.bf16.mxu0 0
      %1189 = vmatpush1.bf16.msra.mxu0 0
      %1190 = vmatprep.subr.bf16.mxu0 0
      %1191 = vmatpush1.bf16.msra.mxu0 0
      %1192 = vmatprep.subr.bf16.mxu0 0
      %1193 = vmatpush1.bf16.msra.mxu0 0
      %1194 = vmatprep.subr.bf16.mxu0 0
      %1195 = vmatpush1.bf16.msra.mxu0 0
      %1196 = vmatprep.mubr.bf16.mxu0 0
      %1197 = vmatmul.mubr.bf16.gmra.mrb[0].mxu0 %v1119
      %v1198 = vpop.f32.mrb[0].mxu0
      %v1199 = vadd.f32 0.0, %v1198
      %v1200 = vpop.f32.mrb[0].mxu0
      %v1201 = vpop.f32.mrb[0].mxu0
      %v1202 = vadd.f32 0.0, %v1201
      %v1203 = vpop.f32.mrb[0].mxu0
      %1204 = vdwg.mxu0
      %v1205 = vadd.f32 %v1089, %v1156
      %v1206 = vadd.f32 %v1090, %v1158
      %v1207 = vadd.f32 %v1091, %v1199
      %v1208 = vadd.f32 %v1092, %v1160
      %v1209 = vadd.f32 %v1093, %v1162
      %v1210 = vadd.f32 %v1094, %v1202
      %s1211 = scalar_lea.vmem %s1, 64
      %v1212 = vld [vmem:[%s1211] sm:$0xf]
      %v1213 = vld [vmem:[%s1211 + $0x4] sm:$0xf]
      %v1216 = vunpack.c.l.b16 %v1212
      %v1217 = vunpack.c.l.b16 %v1213
      %v1218 = vpack.c.b16 %v1217, %v1216
      %1219 = vrot.lane.b32.xlu0 %v309, 109
      %v1220 = vpop.permute.xlu0 %1219
      %1221 = vrot.lane.b32.xlu0 %v310, 109
      %v1222 = vpop.permute.xlu0 %1221
      %1223 = vrot.lane.b32.xlu0 %v311, 109
      %v1224 = vpop.permute.xlu0 %1223
      %1225 = vrot.lane.b32.xlu0 %v870, 109
      %v1226 = vpop.permute.xlu0 %1225
      %vm1227 = vcmask 891904
      %v1228 = vsel %vm1227, %v1220, %v1222
      %v1229 = vsel %vm1227, %v1222, %v1224
      %v1230 = vsel %vm1227, %v1224, %v1226
      %v1235 = vsel %vm327, %v1218, 0
      %1237 = vmatprep.subr.bf16.mxu0 %v1229
      %1238 = vmatpush1.bf16.msra.mxu0 %v1228
      %1239 = vmatprep.subr.bf16.mxu0 0
      %1240 = vmatpush1.bf16.msra.mxu0 0
      %1241 = vmatprep.subr.bf16.mxu0 0
      %1242 = vmatpush1.bf16.msra.mxu0 0
      %1243 = vmatprep.subr.bf16.mxu0 0
      %1244 = vmatpush1.bf16.msra.mxu0 0
      %1245 = vmatprep.subr.bf16.mxu0 0
      %1246 = vmatpush1.bf16.msra.mxu0 0
      %1247 = vmatprep.subr.bf16.mxu0 0
      %1248 = vmatpush1.bf16.msra.mxu0 0
      %1249 = vmatprep.subr.bf16.mxu0 0
      %1250 = vmatpush1.bf16.msra.mxu0 0
      %1251 = vmatprep.subr.bf16.mxu0 0
      %1252 = vmatpush1.bf16.msra.mxu0 0
      %1253 = vmatprep.subr.bf16.mxu0 0
      %1254 = vmatpush1.bf16.msra.mxu0 0
      %1255 = vmatprep.subr.bf16.mxu0 0
      %1256 = vmatpush1.bf16.msra.mxu0 0
      %1257 = vmatprep.subr.bf16.mxu0 0
      %1258 = vmatpush1.bf16.msra.mxu0 0
      %1259 = vmatprep.subr.bf16.mxu0 0
      %1260 = vmatpush1.bf16.msra.mxu0 0
      %1261 = vmatprep.subr.bf16.mxu0 0
      %1262 = vmatpush1.bf16.msra.mxu0 0
      %1263 = vmatprep.subr.bf16.mxu0 0
      %1264 = vmatpush1.bf16.msra.mxu0 0
      %1265 = vmatprep.subr.bf16.mxu0 0
      %1266 = vmatpush1.bf16.msra.mxu0 0
      %1267 = vmatprep.subr.bf16.mxu0 0
      %1268 = vmatpush1.bf16.msra.mxu0 0
      %1269 = vmatprep.mubr.bf16.mxu0 0
      %1270 = vmatmul.mubr.bf16.gmra.mrb[0].mxu0 %v1235
      %v1271 = vpop.f32.mrb[0].mxu0
      %v1272 = vadd.f32 0.0, %v1271
      %v1273 = vpop.f32.mrb[0].mxu0
      %v1274 = vadd.f32 0.0, %v1273
      %v1275 = vpop.f32.mrb[0].mxu0
      %v1276 = vadd.f32 0.0, %v1275
      %v1277 = vpop.f32.mrb[0].mxu0
      %v1278 = vadd.f32 0.0, %v1277
      %1279 = vdwg.mxu0
      %1280 = vmatprep.subr.bf16.mxu0 0
      %1281 = vmatpush1.bf16.msra.mxu0 %v1230
      %1282 = vmatprep.subr.bf16.mxu0 0
      %1283 = vmatpush1.bf16.msra.mxu0 0
      %1284 = vmatprep.subr.bf16.mxu0 0
      %1285 = vmatpush1.bf16.msra.mxu0 0
      %1286 = vmatprep.subr.bf16.mxu0 0
      %1287 = vmatpush1.bf16.msra.mxu0 0
      %1288 = vmatprep.subr.bf16.mxu0 0
      %1289 = vmatpush1.bf16.msra.mxu0 0
      %1290 = vmatprep.subr.bf16.mxu0 0
      %1291 = vmatpush1.bf16.msra.mxu0 0
      %1292 = vmatprep.subr.bf16.mxu0 0
      %1293 = vmatpush1.bf16.msra.mxu0 0
      %1294 = vmatprep.subr.bf16.mxu0 0
      %1295 = vmatpush1.bf16.msra.mxu0 0
      %1296 = vmatprep.subr.bf16.mxu0 0
      %1297 = vmatpush1.bf16.msra.mxu0 0
      %1298 = vmatprep.subr.bf16.mxu0 0
      %1299 = vmatpush1.bf16.msra.mxu0 0
      %1300 = vmatprep.subr.bf16.mxu0 0
      %1301 = vmatpush1.bf16.msra.mxu0 0
      %1302 = vmatprep.subr.bf16.mxu0 0
      %1303 = vmatpush1.bf16.msra.mxu0 0
      %1304 = vmatprep.subr.bf16.mxu0 0
      %1305 = vmatpush1.bf16.msra.mxu0 0
      %1306 = vmatprep.subr.bf16.mxu0 0
      %1307 = vmatpush1.bf16.msra.mxu0 0
      %1308 = vmatprep.subr.bf16.mxu0 0
      %1309 = vmatpush1.bf16.msra.mxu0 0
      %1310 = vmatprep.subr.bf16.mxu0 0
      %1311 = vmatpush1.bf16.msra.mxu0 0
      %1312 = vmatprep.mubr.bf16.mxu0 0
      %1313 = vmatmul.mubr.bf16.gmra.mrb[0].mxu0 %v1235
      %v1314 = vpop.f32.mrb[0].mxu0
      %v1315 = vadd.f32 0.0, %v1314
      %v1316 = vpop.f32.mrb[0].mxu0
      %v1317 = vpop.f32.mrb[0].mxu0
      %v1318 = vadd.f32 0.0, %v1317
      %v1319 = vpop.f32.mrb[0].mxu0
      %1320 = vdwg.mxu0
      %v1321 = vadd.f32 %v1205, %v1272
      %v1322 = vadd.f32 %v1206, %v1274
      %v1323 = vadd.f32 %v1207, %v1315
      %v1324 = vadd.f32 %v1208, %v1276
      %v1325 = vadd.f32 %v1209, %v1278
      %v1326 = vadd.f32 %v1210, %v1318
      %v1327 = vld [vmem:[%s2] sm:$0xff]
      %v1328 = vld [vmem:[%s2 + $0x8] sm:$0xff]
      %1330 = vset.pattern.permute.xlu0 0
      %1331 = vperm.xlu0 %1330, %v1327
      %v1332 = vpop.permute.xlu0 %1331
      %1335 = vset.pattern.permute.xlu0 0
      %1336 = vperm.xlu0 %1335, %v1328
      %v1337 = vpop.permute.xlu0 %1336
      %v1339 = vadd.f32 %v1321, %v1332
      %v1340 = vadd.f32 %v1322, %v1332
      %v1341 = vadd.f32 %v1323, %v1332
      %v1342 = vadd.f32 %v1324, %v1337
      %v1343 = vadd.f32 %v1325, %v1337
      %v1344 = vadd.f32 %v1326, %v1337
      %v1345 = vsel %vm279, 1, 0
      %v1346 = vrot.slane %v1345, 1
      %vm1347 = vcmp.ne.s32.totalorder %v1346, 0
      %v1348 = vsel %vm1347, 1, 0
      %v1349 = vlaneseq
      %v1350 = vshrl.u32 %v1349, 7
      %v1351 = vsub.s32 0, %v1350
      %v1352 = vrot.slane %v1348, %v1351
      %v1353 = vlaneseq
      %v1354 = vshrl.u32 %v1353, 7
      %v1355 = vsub.s32 1, %v1354
      %v1356 = vrot.slane %v1348, %v1355
      %v1357 = vlaneseq
      %v1358 = vshrl.u32 %v1357, 7
      %v1359 = vsub.s32 2, %v1358
      %v1360 = vrot.slane %v1348, %v1359
      %vm1361 = vcmp.eq.s32.totalorder %v1352, 1
      %vm1362 = vcmp.eq.s32.totalorder %v1356, 1
      %vm1363 = vcmp.eq.s32.totalorder %v1360, 1
      %v1364 = vsel %vm1361, %v1339, 0.0
      %v1365 = vsel %vm1362, %v1340, 0.0
      %v1366 = vsel %vm1363, %v1341, 0.0
      %v1367 = vsel %vm1361, %v1342, 0.0
      %v1368 = vsel %vm1362, %v1343, 0.0
      %v1369 = vsel %vm1363, %v1344, 0.0
      %v1370 = vadd.f32 %v1364, %v1365
      %v1371 = vadd.f32 %v1370, %v1366
      %1372 = vadd.xlane.f32.xlu0 %v1371
      %v1373 = vpop.xlane.xlu0 %1372
      %v1374 = vadd.f32 %v1367, %v1368
      %v1375 = vadd.f32 %v1374, %v1369
      %1376 = vadd.xlane.f32.xlu0 %v1375
      %v1377 = vpop.xlane.xlu0 %1376
      %v1378 = vmul.f32 %v1373, 0.00390625
      %v1379 = vmul.f32 %v1377, 0.00390625
      %v1380 = vsub.f32 %v1364, %v1378
      %v1381 = vsub.f32 %v1365, %v1378
      %v1382 = vsub.f32 %v1366, %v1378
      %v1383 = vsub.f32 %v1367, %v1379
      %v1384 = vsub.f32 %v1368, %v1379
      %v1385 = vsub.f32 %v1369, %v1379
      %v1386 = vsel %vm1361, %v1380, 0.0
      %v1387 = vsel %vm1362, %v1381, 0.0
      %v1388 = vsel %vm1363, %v1382, 0.0
      %v1389 = vsel %vm1361, %v1383, 0.0
      %v1390 = vsel %vm1362, %v1384, 0.0
      %v1391 = vsel %vm1363, %v1385, 0.0
      %v1392 = vmul.f32 %v1386, %v1386
      %v1393 = vmul.f32 %v1387, %v1387
      %v1394 = vmul.f32 %v1388, %v1388
      %v1395 = vmul.f32 %v1389, %v1389
      %v1396 = vmul.f32 %v1390, %v1390
      %v1397 = vmul.f32 %v1391, %v1391
      %v1398 = vadd.f32 %v1392, %v1393
      %v1399 = vadd.f32 %v1398, %v1394
      %1400 = vadd.xlane.f32.xlu0 %v1399
      %v1401 = vpop.xlane.xlu0 %1400
      %v1402 = vadd.f32 %v1395, %v1396
      %v1403 = vadd.f32 %v1402, %v1397
      %1404 = vadd.xlane.f32.xlu0 %v1403
      %v1405 = vpop.xlane.xlu0 %1404
      %1406 = vst [vmem:[%s266] sm:$0xf] 0
      %1407 = vst [vmem:[%s266 + $0x14] sm:$0xf] 0
      %1408 = vst [vmem:[%s266 + $0x10] sm:$0xf] 0
      %1409 = vst [vmem:[%s266 + $0x24] sm:$0xf] 0
      %v1410 = vpack.c.bf16 %v1367, %v1364
      %v1411 = vpack.c.bf16 %v1368, %v1365
      %v1412 = vpack.c.bf16 %v1369, %v1366
      %v1416 = vunpack.c.l.b16 %v1410
      %v1417 = vunpack.c.l.b16 %v1411
      %v1418 = vunpack.c.l.b16 %v1412
      %v1419 = vunpack.c.h.b16 %v1410
      %v1420 = vunpack.c.h.b16 %v1411
      %v1421 = vunpack.c.h.b16 %v1412
      %v1422 = vpack.c.b16 %v1417, %v1416
      %v1423 = vpack.c.b16 %v1418, %v1418
      %v1424 = vpack.c.b16 %v1420, %v1419
      %v1425 = vpack.c.b16 %v1421, %v1421
      %1430 = vst [vmem:[%s266 + $0x4] sm:$0xff] %v1422
      %1431 = vst [vmem:[%s266 + $0xc] sm:$0xf] %v1423
      %1432 = vst [vmem:[%s266 + $0x18] sm:$0xff] %v1424
      %1433 = vst [vmem:[%s266 + $0x20] sm:$0xf] %v1425
      %vm1434 = vcmask 7168
      %1435 = vst.msk [vmem:[%s271] sm:$0xff] %vm1434, %v1373
      %1436 = vst.msk [vmem:[%s271 + $0x8] sm:$0xff] %vm1434, %v1377
      %1437 = vst.msk [vmem:[%s276] sm:$0xff] %vm1434, %v1401
      %1438 = vst.msk [vmem:[%s276 + $0x8] sm:$0xff] %vm1434, %v1405
      %p1439 = scmp.lt.s32.totalorder %s18, 1
      %s1440 = scalar_select %p1439, %s18, 1
      %s1441 = smul.addr %s1440, 10
      %s1442 = smul.addr %s1441, 4
      %s1443 = scalar_lea.vmem %s4, %s1442
      %p1444 = scmp.lt.s32.totalorder %s18, 1
      %s1445 = scalar_select %p1444, %s18, 1
      %s1446 = smul.addr %s1445, 2
      %s1447 = smul.addr %s1446, 8
      %s1448 = scalar_lea.vmem %s5, %s1447
      %p1449 = scmp.lt.s32.totalorder %s18, 1
      %s1450 = scalar_select %p1449, %s18, 1
      %s1451 = smul.addr %s1450, 2
      %s1452 = smul.addr %s1451, 8
      %s1453 = scalar_lea.vmem %s6, %s1452
      // Predicated region
      $region37: #{residual_block_forward.3} parent=35 // pred_check
        %p1454 = pneg %p125
      $region38: #{residual_block_forward.3} parent=35 // pred_check_branch
        %1456 = sbr.rel (%p1454) target = $region40
      $region39: #{residual_block_forward.3} parent=35 // pred_region
        _
      $region40: #{residual_block_forward.3} parent=35 // pred_fallthru
        _
      // Predicated region
      $region41: #{residual_block_forward.3} parent=35 // pred_check
        %p1457 = pneg %p151
      $region42: #{residual_block_forward.3} parent=35 // pred_check_branch
        %1459 = sbr.rel (%p1457) target = $region44
      $region43: #{residual_block_forward.3} parent=35 // pred_region
        _
      $region44: #{residual_block_forward.3} parent=35 // pred_fallthru
        _
      // Predicated region
      $region45: #{residual_block_forward.3} parent=35 // pred_check
        %p1460 = pneg %p177
      $region46: #{residual_block_forward.3} parent=35 // pred_check_branch
        %1462 = sbr.rel (%p1460) target = $region48
      $region47: #{residual_block_forward.3} parent=35 // pred_region
        _
      $region48: #{residual_block_forward.3} parent=35 // pred_fallthru
        _
    $region36: #{residual_block_forward.3} parent=5 // pred_fallthru
      _
    %p1463 = scmp.le.s32.totalorder 2, %s13
    // Predicated region
    $region49: #{residual_block_forward.3} parent=5 // pred_check
      %p1464 = pneg %p1463
    $region50: #{residual_block_forward.3} parent=5 // pred_check_branch
      %1466 = sbr.rel (%p1464) target = $region52
    $region51: #{residual_block_forward.3} parent=5 // pred_region
      %s1467 = ssub.s32 %s13, 2
      // Predicated region
      $region53: #{residual_block_forward.3} parent=51 // pred_check
        %p1468 = pneg %p131
      $region54: #{residual_block_forward.3} parent=51 // pred_check_branch
        %1470 = sbr.rel (%p1468) target = $region56
      $region55: #{residual_block_forward.3} parent=51 // pred_region
        %p1471 = scmp.lt.s32.totalorder %s19, 1
        %s1472 = scalar_select %p1471, %s19, 1
        %s1473 = smul.addr %s1472, 10
        %s1474 = smul.addr %s1473, 4
        %s1475 = scalar_lea.vmem %s4, %s1474
      $region56: #{residual_block_forward.3} parent=51 // pred_fallthru
        _
      // Predicated region
      $region57: #{residual_block_forward.3} parent=51 // pred_check
        %p1476 = pneg %p157
      $region58: #{residual_block_forward.3} parent=51 // pred_check_branch
        %1478 = sbr.rel (%p1476) target = $region60
      $region59: #{residual_block_forward.3} parent=51 // pred_region
        %p1479 = scmp.lt.s32.totalorder %s19, 1
        %s1480 = scalar_select %p1479, %s19, 1
        %s1481 = smul.addr %s1480, 2
        %s1482 = smul.addr %s1481, 8
        %s1483 = scalar_lea.vmem %s5, %s1482
      $region60: #{residual_block_forward.3} parent=51 // pred_fallthru
        _
      // Predicated region
      $region61: #{residual_block_forward.3} parent=51 // pred_check
        %p1484 = pneg %p183
      $region62: #{residual_block_forward.3} parent=51 // pred_check_branch
        %1486 = sbr.rel (%p1484) target = $region64
      $region63: #{residual_block_forward.3} parent=51 // pred_region
        %p1487 = scmp.lt.s32.totalorder %s19, 1
        %s1488 = scalar_select %p1487, %s19, 1
        %s1489 = smul.addr %s1488, 2
        %s1490 = smul.addr %s1489, 8
        %s1491 = scalar_lea.vmem %s6, %s1490
      $region64: #{residual_block_forward.3} parent=51 // pred_fallthru
        _
    $region52: #{residual_block_forward.3} parent=5 // pred_fallthru
      _
  $region6: #{residual_block_forward.3} parent=0 // loop_footer
    %s17 = sadd.s32 1, %s13
  $region7: #{residual_block_forward.3} parent=0 // loop_footer_branch
    %12 = sbr.rel target = $region3
  $region8: #{residual_block_forward.3} parent=0 // loop_exit
    _

</llo_original>
